<compile_context>
chip_gen: v6e
topology: v6e:2x2x1
jax: 0.10.0
libtpu: 0.0.40
codegen_flags: <defaults>
</compile_context>

<pallas_src>
import math

import jax
import jax.numpy as jnp
from jax import lax
from jax.experimental import pallas as pl
from jax.experimental.pallas import tpu as pltpu


HIDDEN_DIM = 32
NUM_CLASSES = 10
D1 = 2048
D2 = 512
LANES = 128
D1_CHUNK = 512                 # fc1->fc2 fusion chunk along the 2048 axis
N_CHUNKS = D1 // D1_CHUNK      # 4
TILE_M_DEFAULT = 512           # safe batch-tile cap across v5e/v6e/v7x


def _round_up(x, m):
    return ((x + m - 1) // m) * m


def _pick_tile(batch, max_tile):
    """Adaptive batch tile: balanced tiles (no near-empty trailing tile),
    >=2 grid steps once the batch is compute-bound (v7x megacore), 8-aligned."""
    n_tiles = max(1, math.ceil(batch / max_tile))
    if batch >= 512:                       # compute-bound: let both v7x TCs work
        n_tiles = max(n_tiles, 2)
    return _round_up(math.ceil(batch / n_tiles), 8)


def _mlp_kernel(x_ref, w1_ref, b1_ref, w2_ref, b2_ref, w3_ref, b3_ref, o_ref):
    # dropout1 / dropout2 are identity in eval/inference mode.
    x = x_ref[...].astype(jnp.bfloat16)            # (tm, hidden) bf16 for the MXU
    tm = x.shape[0]

    # fc1 (+bias, ReLU) fused chunk-wise into fc2's K-reduction; the full
    # (tm, 2048) h1 activation is never materialized in VMEM.
    def chunk_body(c, acc):
        off = pl.multiple_of(c * D1_CHUNK, D1_CHUNK)
        h1c = jnp.dot(x, w1_ref[:, pl.ds(off, D1_CHUNK)],
                      preferred_element_type=jnp.float32)
        h1c = jnp.maximum(h1c + b1_ref[:, pl.ds(off, D1_CHUNK)], 0.0)
        return acc + jnp.dot(h1c.astype(jnp.bfloat16),
                             w2_ref[pl.ds(off, D1_CHUNK), :],
                             preferred_element_type=jnp.float32)

    h2 = lax.fori_loop(0, N_CHUNKS, chunk_body,
                       jnp.zeros((tm, D2), jnp.float32), unroll=True)
    h2 = jnp.maximum(h2 + b2_ref[...], 0.0)

    # fc3 logits into a lane-dense (tm, 128) slab (w3/b3 zero-padded).
    out = jnp.dot(h2.astype(jnp.bfloat16), w3_ref[...],
                  preferred_element_type=jnp.float32)
    o_ref[...] = (out + b3_ref[...]).astype(o_ref.dtype)


def prepare_params(params):
    """One-time parameter prep (call once, NOT per forward):
       * weights cast to bf16 (MXU-native operands; f32 accumulation in-kernel),
       * w3/b3 zero-padded to a 128-lane-dense fc3 output slab,
       * biases kept f32."""
    w1, b1, w2, b2, w3, b3 = params
    num_classes = w3.shape[1]
    nc_pad = _round_up(num_classes, LANES)
    w3p = jnp.pad(w3, ((0, 0), (0, nc_pad - num_classes)))
    b3p = jnp.pad(b3, ((0, 0), (0, nc_pad - num_classes)))
    bf = jnp.bfloat16
    return (w1.astype(bf), b1.astype(jnp.float32),
            w2.astype(bf), b2.astype(jnp.float32),
            w3p.astype(bf), b3p.astype(jnp.float32), num_classes)


def bilstm_kmer_branch_classifier(x, prepared, *, tile_m=TILE_M_DEFAULT):
    """x: (B, hidden_dim) float32 -> (B, num_classes) float32 logits.
    `prepared` comes from prepare_params (bf16 weights, padded fc3)."""
    w1, b1, w2, b2, w3p, b3p, num_classes = prepared
    B, hidden_dim = x.shape
    nc_pad = w3p.shape[1]

    tm = _pick_tile(B, tile_m)
    b_pad = _round_up(B, tm)
    if b_pad != B:
        x = jnp.pad(x, ((0, b_pad - B), (0, 0)))

    # Weights/biases: VMEM-resident (constant index_map), single-buffered
    # (second pipeline buffer would be dead weight since the block never changes).
    def const(a):
        return pl.BlockSpec(a.shape, lambda i: (0,) * a.ndim,
                            pipeline_mode=pl.Buffered(1))

    out_padded = pl.pallas_call(
        _mlp_kernel,
        out_shape=jax.ShapeDtypeStruct((b_pad, nc_pad), jnp.float32),
        grid_spec=pltpu.PrefetchScalarGridSpec(
            num_scalar_prefetch=0,
            grid=(b_pad // tm,),
            in_specs=[
                pl.BlockSpec((tm, hidden_dim), lambda i: (i, 0)),   # x tile (f32)
                const(w1), const(b1),
                const(w2), const(b2),
                const(w3p), const(b3p),
            ],
            out_specs=pl.BlockSpec((tm, nc_pad), lambda i: (i, 0)),
        ),
        compiler_params=pltpu.CompilerParams(
            dimension_semantics=("parallel",),
            vmem_limit_bytes=32 * 1024 * 1024,   # headroom for big tiles on v5e's 16 MiB default
        ),
    )(x, w1, b1, w2, b2, w3p, b3p)

    return out_padded[:B, :num_classes]


def init_params(key, hidden_dim, num_classes):
    """Deterministic synthetic parameters (PyTorch-Linear-like uniform init)."""
    ks = jax.random.split(key, 6)

    def linear(kw, kb, fan_in, fan_out):
        bound = 1.0 / math.sqrt(fan_in)
        w = jax.random.uniform(kw, (fan_in, fan_out), jnp.float32, -bound, bound)
        b = jax.random.uniform(kb, (1, fan_out), jnp.float32, -bound, bound)
        return w, b

    w1, b1 = linear(ks[0], ks[1], hidden_dim, D1)
    w2, b2 = linear(ks[2], ks[3], D1, D2)
    w3, b3 = linear(ks[4], ks[5], D2, num_classes)
    return (w1, b1, w2, b2, w3, b3)


def reference_forward_f32(x, params):
    w1, b1, w2, b2, w3, b3 = params
    h1 = jnp.maximum(x @ w1 + b1, 0.0)
    h2 = jnp.maximum(h1 @ w2 + b2, 0.0)
    return h2 @ w3 + b3


def reference_forward_bf16(x, params):
    """Mirrors the kernel's precision path: bf16 operands, f32 accumulation."""
    w1, b1, w2, b2, w3, b3 = params
    bf = jnp.bfloat16
    h1 = jnp.dot(x.astype(bf), w1.astype(bf), preferred_element_type=jnp.float32)
    h1 = jnp.maximum(h1 + b1, 0.0)
    h2 = jnp.dot(h1.astype(bf), w2.astype(bf), preferred_element_type=jnp.float32)
    h2 = jnp.maximum(h2 + b2, 0.0)
    out = jnp.dot(h2.astype(bf), w3.astype(bf), preferred_element_type=jnp.float32)
    return out + b3


if __name__ == "__main__":
    key = jax.random.PRNGKey(0)
    k_x, k_p = jax.random.split(key)

    B = 2
    x = jax.random.normal(k_x, (B, HIDDEN_DIM), jnp.float32)
    params = init_params(k_p, HIDDEN_DIM, NUM_CLASSES)
    prepared = prepare_params(params)      # one-time: bf16 cast + fc3 lane padding

    out = jax.block_until_ready(bilstm_kmer_branch_classifier(x, prepared))

    assert out.shape == (B, NUM_CLASSES)
    assert out.dtype == jnp.float32

    # Exact-path check vs a reference using the same bf16-operand / f32-acc path.
    ref_bf = reference_forward_bf16(x, params)
    assert jnp.allclose(out, ref_bf, atol=1e-2, rtol=1e-2), "mismatch vs bf16 ref"

    # Loose sanity check vs the full-f32 reference (bf16 operand cast dominates).
    ref_f32 = reference_forward_f32(x, params)
    assert jnp.allclose(out, ref_f32, atol=1e-1, rtol=1e-1), "mismatch vs f32 ref"

    print("KERNEL_OK")
</pallas_src>

<mosaic_0001>
module attributes {stable_mosaic.version = 11 : i64} {
  func.func @_mlp_kernel(%arg0: i32, %arg1: memref<8x32xf32, #tpu.memory_space<vmem>>, %arg2: memref<32x2048xbf16, #tpu.memory_space<vmem>>, %arg3: memref<1x2048xf32, #tpu.memory_space<vmem>>, %arg4: memref<2048x512xbf16, #tpu.memory_space<vmem>>, %arg5: memref<1x512xf32, #tpu.memory_space<vmem>>, %arg6: memref<512x128xbf16, #tpu.memory_space<vmem>>, %arg7: memref<1x128xf32, #tpu.memory_space<vmem>>, %arg8: memref<8x128xf32, #tpu.memory_space<vmem>>) attributes {dimension_semantics = [#tpu.dimension_semantics<parallel>], iteration_bounds = array<i64: 1>, scalar_prefetch = 0 : i64, scratch_operands = 0 : i64, tpu.core_type = #tpu.core_type<tc>, window_params = [{transform_indices = @transform_0, window_bounds = array<i64: 8, 32>}, {pipeline_mode = #tpu.pipeline_mode<synchronous>, transform_indices = @transform_1, window_bounds = array<i64: 32, 2048>}, {pipeline_mode = #tpu.pipeline_mode<synchronous>, transform_indices = @transform_2, window_bounds = array<i64: 1, 2048>}, {pipeline_mode = #tpu.pipeline_mode<synchronous>, transform_indices = @transform_3, window_bounds = array<i64: 2048, 512>}, {pipeline_mode = #tpu.pipeline_mode<synchronous>, transform_indices = @transform_4, window_bounds = array<i64: 1, 512>}, {pipeline_mode = #tpu.pipeline_mode<synchronous>, transform_indices = @transform_5, window_bounds = array<i64: 512, 128>}, {pipeline_mode = #tpu.pipeline_mode<synchronous>, transform_indices = @transform_6, window_bounds = array<i64: 1, 128>}, {transform_indices = @transform_7, window_bounds = array<i64: 8, 128>}]} {
    %c0 = arith.constant 0 : index
    %c0_0 = arith.constant 0 : index
    %0 = vector.load %arg1[%c0, %c0_0] : memref<8x32xf32, #tpu.memory_space<vmem>>, vector<8x32xf32>
    %1 = arith.truncf %0 : vector<8x32xf32> to vector<8x32xbf16>
    %cst = arith.constant 0.000000e+00 : f32
    %2 = vector.broadcast %cst : f32 to vector<8x512xf32>
    %c0_i32 = arith.constant 0 : i32
    %c512_i32 = arith.constant 512 : i32
    %3 = arith.muli %c0_i32, %c512_i32 : i32
    %4 = tpu.assume_multiple %3, 512 : i32
    %c0_1 = arith.constant 0 : index
    %5 = arith.index_cast %4 : i32 to index
    %6 = vector.load %arg2[%c0_1, %5] : memref<32x2048xbf16, #tpu.memory_space<vmem>>, vector<32x512xbf16>
    %cst_2 = arith.constant dense<0.000000e+00> : vector<8x512xf32>
    %7 = tpu.matmul %1, %6, %cst_2 {dimension_numbers = #tpu.dot_dimension_numbers<[1], [0], [0], [1], [0, 0, 1, 1], [], []>} : vector<8x32xbf16>, vector<32x512xbf16>, vector<8x512xf32> -> vector<8x512xf32>
    %c0_3 = arith.constant 0 : index
    %8 = arith.index_cast %4 : i32 to index
    %9 = vector.load %arg3[%c0_3, %8] : memref<1x2048xf32, #tpu.memory_space<vmem>>, vector<1x512xf32>
    %10 = vector.broadcast %9 : vector<1x512xf32> to vector<8x512xf32>
    %11 = arith.addf %7, %10 : vector<8x512xf32>
    %cst_4 = arith.constant 0.000000e+00 : f32
    %12 = vector.broadcast %cst_4 : f32 to vector<8x512xf32>
    %13 = arith.maximumf %11, %12 : vector<8x512xf32>
    %14 = arith.truncf %13 : vector<8x512xf32> to vector<8x512xbf16>
    %15 = arith.index_cast %4 : i32 to index
    %c0_5 = arith.constant 0 : index
    %16 = vector.load %arg4[%15, %c0_5] : memref<2048x512xbf16, #tpu.memory_space<vmem>>, vector<512x512xbf16>
    %cst_6 = arith.constant dense<0.000000e+00> : vector<8x512xf32>
    %17 = tpu.matmul %14, %16, %cst_6 {dimension_numbers = #tpu.dot_dimension_numbers<[1], [0], [0], [1], [0, 0, 1, 1], [], []>} : vector<8x512xbf16>, vector<512x512xbf16>, vector<8x512xf32> -> vector<8x512xf32>
    %18 = arith.addf %2, %17 : vector<8x512xf32>
    %c1_i32 = arith.constant 1 : i32
    %c512_i32_7 = arith.constant 512 : i32
    %19 = arith.muli %c1_i32, %c512_i32_7 : i32
    %20 = tpu.assume_multiple %19, 512 : i32
    %c0_8 = arith.constant 0 : index
    %21 = arith.index_cast %20 : i32 to index
    %22 = vector.load %arg2[%c0_8, %21] : memref<32x2048xbf16, #tpu.memory_space<vmem>>, vector<32x512xbf16>
    %cst_9 = arith.constant dense<0.000000e+00> : vector<8x512xf32>
    %23 = tpu.matmul %1, %22, %cst_9 {dimension_numbers = #tpu.dot_dimension_numbers<[1], [0], [0], [1], [0, 0, 1, 1], [], []>} : vector<8x32xbf16>, vector<32x512xbf16>, vector<8x512xf32> -> vector<8x512xf32>
    %c0_10 = arith.constant 0 : index
    %24 = arith.index_cast %20 : i32 to index
    %25 = vector.load %arg3[%c0_10, %24] : memref<1x2048xf32, #tpu.memory_space<vmem>>, vector<1x512xf32>
    %26 = vector.broadcast %25 : vector<1x512xf32> to vector<8x512xf32>
    %27 = arith.addf %23, %26 : vector<8x512xf32>
    %cst_11 = arith.constant 0.000000e+00 : f32
    %28 = vector.broadcast %cst_11 : f32 to vector<8x512xf32>
    %29 = arith.maximumf %27, %28 : vector<8x512xf32>
    %30 = arith.truncf %29 : vector<8x512xf32> to vector<8x512xbf16>
    %31 = arith.index_cast %20 : i32 to index
    %c0_12 = arith.constant 0 : index
    %32 = vector.load %arg4[%31, %c0_12] : memref<2048x512xbf16, #tpu.memory_space<vmem>>, vector<512x512xbf16>
    %cst_13 = arith.constant dense<0.000000e+00> : vector<8x512xf32>
    %33 = tpu.matmul %30, %32, %cst_13 {dimension_numbers = #tpu.dot_dimension_numbers<[1], [0], [0], [1], [0, 0, 1, 1], [], []>} : vector<8x512xbf16>, vector<512x512xbf16>, vector<8x512xf32> -> vector<8x512xf32>
    %34 = arith.addf %18, %33 : vector<8x512xf32>
    %c2_i32 = arith.constant 2 : i32
    %c512_i32_14 = arith.constant 512 : i32
    %35 = arith.muli %c2_i32, %c512_i32_14 : i32
    %36 = tpu.assume_multiple %35, 512 : i32
    %c0_15 = arith.constant 0 : index
    %37 = arith.index_cast %36 : i32 to index
    %38 = vector.load %arg2[%c0_15, %37] : memref<32x2048xbf16, #tpu.memory_space<vmem>>, vector<32x512xbf16>
    %cst_16 = arith.constant dense<0.000000e+00> : vector<8x512xf32>
    %39 = tpu.matmul %1, %38, %cst_16 {dimension_numbers = #tpu.dot_dimension_numbers<[1], [0], [0], [1], [0, 0, 1, 1], [], []>} : vector<8x32xbf16>, vector<32x512xbf16>, vector<8x512xf32> -> vector<8x512xf32>
    %c0_17 = arith.constant 0 : index
    %40 = arith.index_cast %36 : i32 to index
    %41 = vector.load %arg3[%c0_17, %40] : memref<1x2048xf32, #tpu.memory_space<vmem>>, vector<1x512xf32>
    %42 = vector.broadcast %41 : vector<1x512xf32> to vector<8x512xf32>
    %43 = arith.addf %39, %42 : vector<8x512xf32>
    %cst_18 = arith.constant 0.000000e+00 : f32
    %44 = vector.broadcast %cst_18 : f32 to vector<8x512xf32>
    %45 = arith.maximumf %43, %44 : vector<8x512xf32>
    %46 = arith.truncf %45 : vector<8x512xf32> to vector<8x512xbf16>
    %47 = arith.index_cast %36 : i32 to index
    %c0_19 = arith.constant 0 : index
    %48 = vector.load %arg4[%47, %c0_19] : memref<2048x512xbf16, #tpu.memory_space<vmem>>, vector<512x512xbf16>
    %cst_20 = arith.constant dense<0.000000e+00> : vector<8x512xf32>
    %49 = tpu.matmul %46, %48, %cst_20 {dimension_numbers = #tpu.dot_dimension_numbers<[1], [0], [0], [1], [0, 0, 1, 1], [], []>} : vector<8x512xbf16>, vector<512x512xbf16>, vector<8x512xf32> -> vector<8x512xf32>
    %50 = arith.addf %34, %49 : vector<8x512xf32>
    %c3_i32 = arith.constant 3 : i32
    %c512_i32_21 = arith.constant 512 : i32
    %51 = arith.muli %c3_i32, %c512_i32_21 : i32
    %52 = tpu.assume_multiple %51, 512 : i32
    %c0_22 = arith.constant 0 : index
    %53 = arith.index_cast %52 : i32 to index
    %54 = vector.load %arg2[%c0_22, %53] : memref<32x2048xbf16, #tpu.memory_space<vmem>>, vector<32x512xbf16>
    %cst_23 = arith.constant dense<0.000000e+00> : vector<8x512xf32>
    %55 = tpu.matmul %1, %54, %cst_23 {dimension_numbers = #tpu.dot_dimension_numbers<[1], [0], [0], [1], [0, 0, 1, 1], [], []>} : vector<8x32xbf16>, vector<32x512xbf16>, vector<8x512xf32> -> vector<8x512xf32>
    %c0_24 = arith.constant 0 : index
    %56 = arith.index_cast %52 : i32 to index
    %57 = vector.load %arg3[%c0_24, %56] : memref<1x2048xf32, #tpu.memory_space<vmem>>, vector<1x512xf32>
    %58 = vector.broadcast %57 : vector<1x512xf32> to vector<8x512xf32>
    %59 = arith.addf %55, %58 : vector<8x512xf32>
    %cst_25 = arith.constant 0.000000e+00 : f32
    %60 = vector.broadcast %cst_25 : f32 to vector<8x512xf32>
    %61 = arith.maximumf %59, %60 : vector<8x512xf32>
    %62 = arith.truncf %61 : vector<8x512xf32> to vector<8x512xbf16>
    %63 = arith.index_cast %52 : i32 to index
    %c0_26 = arith.constant 0 : index
    %64 = vector.load %arg4[%63, %c0_26] : memref<2048x512xbf16, #tpu.memory_space<vmem>>, vector<512x512xbf16>
    %cst_27 = arith.constant dense<0.000000e+00> : vector<8x512xf32>
    %65 = tpu.matmul %62, %64, %cst_27 {dimension_numbers = #tpu.dot_dimension_numbers<[1], [0], [0], [1], [0, 0, 1, 1], [], []>} : vector<8x512xbf16>, vector<512x512xbf16>, vector<8x512xf32> -> vector<8x512xf32>
    %66 = arith.addf %50, %65 : vector<8x512xf32>
    %c4_i32 = arith.constant 4 : i32
    %c0_28 = arith.constant 0 : index
    %c0_29 = arith.constant 0 : index
    %67 = vector.load %arg5[%c0_28, %c0_29] : memref<1x512xf32, #tpu.memory_space<vmem>>, vector<1x512xf32>
    %68 = vector.broadcast %67 : vector<1x512xf32> to vector<8x512xf32>
    %69 = arith.addf %66, %68 : vector<8x512xf32>
    %cst_30 = arith.constant 0.000000e+00 : f32
    %70 = vector.broadcast %cst_30 : f32 to vector<8x512xf32>
    %71 = arith.maximumf %69, %70 : vector<8x512xf32>
    %72 = arith.truncf %71 : vector<8x512xf32> to vector<8x512xbf16>
    %c0_31 = arith.constant 0 : index
    %c0_32 = arith.constant 0 : index
    %73 = vector.load %arg6[%c0_31, %c0_32] : memref<512x128xbf16, #tpu.memory_space<vmem>>, vector<512x128xbf16>
    %cst_33 = arith.constant dense<0.000000e+00> : vector<8x128xf32>
    %74 = tpu.matmul %72, %73, %cst_33 {dimension_numbers = #tpu.dot_dimension_numbers<[1], [0], [0], [1], [0, 0, 1, 1], [], []>} : vector<8x512xbf16>, vector<512x128xbf16>, vector<8x128xf32> -> vector<8x128xf32>
    %c0_34 = arith.constant 0 : index
    %c0_35 = arith.constant 0 : index
    %75 = vector.load %arg7[%c0_34, %c0_35] : memref<1x128xf32, #tpu.memory_space<vmem>>, vector<1x128xf32>
    %76 = vector.broadcast %75 : vector<1x128xf32> to vector<8x128xf32>
    %77 = arith.addf %74, %76 : vector<8x128xf32>
    %c0_36 = arith.constant 0 : index
    %c0_37 = arith.constant 0 : index
    %78 = vector.load %arg8[%c0_36, %c0_37] : memref<8x128xf32, #tpu.memory_space<vmem>>, vector<8x128xf32>
    tpu.vector_store %arg8[%c0_36, %c0_37], %77 {strides = array<i32>} : memref<8x128xf32, #tpu.memory_space<vmem>>, vector<8x128xf32>,
    return
  }
  func.func @transform_0(%arg0: i32) -> (i32, i32) {
    %c0_i32 = arith.constant 0 : i32
    %c0_i32_0 = arith.constant 0 : i32
    return %arg0, %c0_i32 : i32, i32
  }
  func.func @transform_1(%arg0: i32) -> (i32, i32) {
    %c0_i32 = arith.constant 0 : i32
    %c0_i32_0 = arith.constant 0 : i32
    %c0_i32_1 = arith.constant 0 : i32
    return %c0_i32, %c0_i32_0 : i32, i32
  }
  func.func @transform_2(%arg0: i32) -> (i32, i32) {
    %c0_i32 = arith.constant 0 : i32
    %c0_i32_0 = arith.constant 0 : i32
    %c0_i32_1 = arith.constant 0 : i32
    return %c0_i32, %c0_i32_0 : i32, i32
  }
  func.func @transform_3(%arg0: i32) -> (i32, i32) {
    %c0_i32 = arith.constant 0 : i32
    %c0_i32_0 = arith.constant 0 : i32
    %c0_i32_1 = arith.constant 0 : i32
    return %c0_i32, %c0_i32_0 : i32, i32
  }
  func.func @transform_4(%arg0: i32) -> (i32, i32) {
    %c0_i32 = arith.constant 0 : i32
    %c0_i32_0 = arith.constant 0 : i32
    %c0_i32_1 = arith.constant 0 : i32
    return %c0_i32, %c0_i32_0 : i32, i32
  }
  func.func @transform_5(%arg0: i32) -> (i32, i32) {
    %c0_i32 = arith.constant 0 : i32
    %c0_i32_0 = arith.constant 0 : i32
    %c0_i32_1 = arith.constant 0 : i32
    return %c0_i32, %c0_i32_0 : i32, i32
  }
  func.func @transform_6(%arg0: i32) -> (i32, i32) {
    %c0_i32 = arith.constant 0 : i32
    %c0_i32_0 = arith.constant 0 : i32
    %c0_i32_1 = arith.constant 0 : i32
    return %c0_i32, %c0_i32_0 : i32, i32
  }
  func.func @transform_7(%arg0: i32) -> (i32, i32) {
    %c0_i32 = arith.constant 0 : i32
    %c0_i32_0 = arith.constant 0 : i32
    return %arg0, %c0_i32 : i32, i32
  }
}

</mosaic_0001>

<llo_original>
// kernel: tpu_custom_call.1
$region0: #{tpu_custom_call.1}
  #allocation0 [shape = 'u32[]', space=smem, size = 0x4, offset = 0x4, fixed_abs, tag = 'smem constant byte address 0x4 - core index']
  #allocation1 [shape = 'u32[144,128]{1,0:T(1,128)}', space=vmem, size = 0x12000, scoped, tag = 'internal scratch']
  %s0 = inlined_call_operand.hbm [shape: f32[8,32], index: 0, kind: input, shape index: {}]
  %s1 = inlined_call_operand.hbm [shape: bf16[32,2048], index: 1, kind: input, shape index: {}]
  %s2 = inlined_call_operand.hbm [shape: f32[1,2048], index: 2, kind: input, shape index: {}]
  %s3 = inlined_call_operand.hbm [shape: bf16[2048,512], index: 3, kind: input, shape index: {}]
  %s4 = inlined_call_operand.hbm [shape: f32[1,512], index: 4, kind: input, shape index: {}]
  %s5 = inlined_call_operand.hbm [shape: bf16[512,128], index: 5, kind: input, shape index: {}]
  %s6 = inlined_call_operand.hbm [shape: f32[1,128], index: 6, kind: input, shape index: {}]
  %s7 = inlined_call_operand.hbm [shape: f32[8,128], index: 7, kind: output, shape index: {}]
  %s8 = sld [smem:[#allocation0]]
  $region66: #{tpu_custom_call.1} parent=0
    _
  %s10 = ssub.s32 1, %s8
  %s11 = scalar_select 0, %s10, %s8
  $region1: #{tpu_custom_call.1} parent=0
    #allocation2 [shape = 'u8[4096]{0}', space=vmem, size = 0x1000, scoped, tag = 'input window, operand 0, single buffered']
    #allocation3 [shape = 's32[1]{0}', space=sflag, size = 0x4, scoped, tag = 'scoped memory for tpu_custom_call.1']
    #allocation4 [shape = 's32[1]{0}', space=sflag, size = 0x4, scoped, tag = 'scoped memory for tpu_custom_call.1']
    #allocation5 [shape = 'u8[131072]{0}', space=vmem, size = 0x20000, scoped, tag = 'input window, operand 1, single buffered']
    #allocation6 [shape = 's32[1]{0}', space=sflag, size = 0x4, scoped, tag = 'scoped memory for tpu_custom_call.1']
    #allocation7 [shape = 'u8[8192]{0}', space=vmem, size = 0x2000, scoped, tag = 'input window, operand 2, single buffered']
    #allocation8 [shape = 'u8[2097152]{0}', space=vmem, size = 0x200000, scoped, tag = 'input window, operand 3, single buffered']
    #allocation9 [shape = 's32[1]{0}', space=sflag, size = 0x4, scoped, tag = 'scoped memory for tpu_custom_call.1']
    #allocation10 [shape = 'u8[2048]{0}', space=vmem, size = 0x800, scoped, tag = 'input window, operand 4, single buffered']
    #allocation11 [shape = 'u8[131072]{0}', space=vmem, size = 0x20000, scoped, tag = 'input window, operand 5, single buffered']
    #allocation12 [shape = 's32[1]{0}', space=sflag, size = 0x4, scoped, tag = 'scoped memory for tpu_custom_call.1']
    #allocation13 [shape = 'u8[512]{0}', space=vmem, size = 0x400, scoped, tag = 'input window, operand 6, single buffered']
    #allocation14 [shape = 'u8[4096]{0}', space=vmem, size = 0x1000, scoped, tag = 'output window, operand 0, single buffered']
    %12 = vsyncpa [#allocation3], 0
    %13 = vsyncpa [#allocation6], 0
    %14 = vsyncpa [#allocation9], 0
    %15 = vsyncpa [#allocation12], 0
    %16 = vsyncpa [#allocation4], 0
    // Predicated region
    $region2: #{tpu_custom_call.1} parent=1 // pred_check
      _
    $region3: #{tpu_custom_call.1} parent=1 // pred_check_branch
      %18 = sbr.rel (0) target = $region5
    $region4: #{tpu_custom_call.1} parent=1 // pred_region
      %s20 = ssub.s32 128, 128
      %21 = vsyncadd [#allocation3], %s20
      %s23 = sshll.u32 [#allocation2], 4
      %s24 = int_to_ptr.vmem [resolvable:$true] %s23
      %26 = dma.hbm_to_vmem [thread:$0]  %s0, 128, %s24, [#allocation3]
    $region5: #{tpu_custom_call.1} parent=1 // pred_fallthru
      _
    // Predicated region
    $region6: #{tpu_custom_call.1} parent=1 // pred_check
      _
    $region7: #{tpu_custom_call.1} parent=1 // pred_check_branch
      %28 = sbr.rel (0) target = $region9
    $region8: #{tpu_custom_call.1} parent=1 // pred_region
      %s30 = ssub.s32 4096, 4096
      %31 = vsyncadd [#allocation6], %s30
      %s32 = sshll.u32 [#allocation5], 4
      %s33 = int_to_ptr.vmem [resolvable:$true] %s32
      %38 = dma.hbm_to_vmem [thread:$0]  %s1, 4096, %s33, [#allocation6], 1024, 1024, 64
    $region9: #{tpu_custom_call.1} parent=1 // pred_fallthru
      _
    // Predicated region
    $region10: #{tpu_custom_call.1} parent=1 // pred_check
      _
    $region11: #{tpu_custom_call.1} parent=1 // pred_check_branch
      %40 = sbr.rel (0) target = $region13
    $region12: #{tpu_custom_call.1} parent=1 // pred_region
      %s42 = ssub.s32 256, 256
      %43 = vsyncadd [#allocation6], %s42
      %s45 = sshll.u32 [#allocation7], 4
      %s46 = int_to_ptr.vmem [resolvable:$true] %s45
      %48 = dma.hbm_to_vmem [thread:$0]  %s2, 256, %s46, [#allocation6]
    $region13: #{tpu_custom_call.1} parent=1 // pred_fallthru
      _
    // Predicated region
    $region14: #{tpu_custom_call.1} parent=1 // pred_check
      _
    $region15: #{tpu_custom_call.1} parent=1 // pred_check_branch
      %50 = sbr.rel (0) target = $region17
    $region16: #{tpu_custom_call.1} parent=1 // pred_region
      %s52 = ssub.s32 65536, 65536
      %53 = vsyncadd [#allocation9], %s52
      %s54 = sshll.u32 [#allocation8], 4
      %s55 = int_to_ptr.vmem [resolvable:$true] %s54
      %60 = dma.hbm_to_vmem [thread:$0]  %s3, 65536, %s55, [#allocation9], 256, 256, 16
    $region17: #{tpu_custom_call.1} parent=1 // pred_fallthru
      _
    // Predicated region
    $region18: #{tpu_custom_call.1} parent=1 // pred_check
      _
    $region19: #{tpu_custom_call.1} parent=1 // pred_check_branch
      %62 = sbr.rel (0) target = $region21
    $region20: #{tpu_custom_call.1} parent=1 // pred_region
      %s64 = ssub.s32 64, 64
      %65 = vsyncadd [#allocation9], %s64
      %s67 = sshll.u32 [#allocation10], 4
      %s68 = int_to_ptr.vmem [resolvable:$true] %s67
      %70 = dma.hbm_to_vmem [thread:$0]  %s4, 64, %s68, [#allocation9]
    $region21: #{tpu_custom_call.1} parent=1 // pred_fallthru
      _
    // Predicated region
    $region22: #{tpu_custom_call.1} parent=1 // pred_check
      _
    $region23: #{tpu_custom_call.1} parent=1 // pred_check_branch
      %72 = sbr.rel (0) target = $region25
    $region24: #{tpu_custom_call.1} parent=1 // pred_region
      %s74 = ssub.s32 4096, 4096
      %75 = vsyncadd [#allocation12], %s74
      %s76 = sshll.u32 [#allocation11], 4
      %s77 = int_to_ptr.vmem [resolvable:$true] %s76
      %82 = dma.hbm_to_vmem [thread:$0]  %s5, 4096, %s77, [#allocation12], 64, 64, 4
    $region25: #{tpu_custom_call.1} parent=1 // pred_fallthru
      _
    // Predicated region
    $region26: #{tpu_custom_call.1} parent=1 // pred_check
      _
    $region27: #{tpu_custom_call.1} parent=1 // pred_check_branch
      %84 = sbr.rel (0) target = $region29
    $region28: #{tpu_custom_call.1} parent=1 // pred_region
      %s86 = ssub.s32 16, 16
      %87 = vsyncadd [#allocation12], %s86
      %s89 = sshll.u32 [#allocation13], 4
      %s90 = int_to_ptr.vmem [resolvable:$true] %s89
      %92 = dma.hbm_to_vmem [thread:$0]  %s6, 16, %s90, [#allocation12]
    $region29: #{tpu_custom_call.1} parent=1 // pred_fallthru
      _
    // Predicated region
    $region30: #{tpu_custom_call.1} parent=1 // pred_check
      _
    $region31: #{tpu_custom_call.1} parent=1 // pred_check_branch
      %94 = sbr.rel (0) target = $region33
    $region32: #{tpu_custom_call.1} parent=1 // pred_region
      %95 = dma.done [#allocation3], 128
    $region33: #{tpu_custom_call.1} parent=1 // pred_fallthru
      _
    // Predicated region
    $region34: #{tpu_custom_call.1} parent=1 // pred_check
      _
    $region35: #{tpu_custom_call.1} parent=1 // pred_check_branch
      %97 = sbr.rel (0) target = $region37
    $region36: #{tpu_custom_call.1} parent=1 // pred_region
      %98 = dma.done [#allocation6], 4096
    $region37: #{tpu_custom_call.1} parent=1 // pred_fallthru
      _
    // Predicated region
    $region38: #{tpu_custom_call.1} parent=1 // pred_check
      _
    $region39: #{tpu_custom_call.1} parent=1 // pred_check_branch
      %100 = sbr.rel (0) target = $region41
    $region40: #{tpu_custom_call.1} parent=1 // pred_region
      %101 = dma.done [#allocation6], 256
    $region41: #{tpu_custom_call.1} parent=1 // pred_fallthru
      _
    // Predicated region
    $region42: #{tpu_custom_call.1} parent=1 // pred_check
      _
    $region43: #{tpu_custom_call.1} parent=1 // pred_check_branch
      %103 = sbr.rel (0) target = $region45
    $region44: #{tpu_custom_call.1} parent=1 // pred_region
      %104 = dma.done [#allocation9], 65536
    $region45: #{tpu_custom_call.1} parent=1 // pred_fallthru
      _
    // Predicated region
    $region46: #{tpu_custom_call.1} parent=1 // pred_check
      _
    $region47: #{tpu_custom_call.1} parent=1 // pred_check_branch
      %106 = sbr.rel (0) target = $region49
    $region48: #{tpu_custom_call.1} parent=1 // pred_region
      %107 = dma.done [#allocation9], 64
    $region49: #{tpu_custom_call.1} parent=1 // pred_fallthru
      _
    // Predicated region
    $region50: #{tpu_custom_call.1} parent=1 // pred_check
      _
    $region51: #{tpu_custom_call.1} parent=1 // pred_check_branch
      %109 = sbr.rel (0) target = $region53
    $region52: #{tpu_custom_call.1} parent=1 // pred_region
      %110 = dma.done [#allocation12], 4096
    $region53: #{tpu_custom_call.1} parent=1 // pred_fallthru
      _
    // Predicated region
    $region54: #{tpu_custom_call.1} parent=1 // pred_check
      _
    $region55: #{tpu_custom_call.1} parent=1 // pred_check_branch
      %112 = sbr.rel (0) target = $region57
    $region56: #{tpu_custom_call.1} parent=1 // pred_region
      %113 = dma.done [#allocation12], 16
    $region57: #{tpu_custom_call.1} parent=1 // pred_fallthru
      _
    %v115 = vld [vmem:[#allocation2] sm:$0xff]
    %v116 = vpack.c.bf16 %v115, %v115
    %v117 = vld [vmem:[#allocation5] sm:$0xff]
    %v118 = vld [vmem:[#allocation5 + $0x8] sm:$0xff]
    %v119 = vld [vmem:[#allocation5 + $0x40] sm:$0xff]
    %v120 = vld [vmem:[#allocation5 + $0x48] sm:$0xff]
    %v121 = vld [vmem:[#allocation5 + $0x80] sm:$0xff]
    %v122 = vld [vmem:[#allocation5 + $0x88] sm:$0xff]
    %v123 = vld [vmem:[#allocation5 + $0xc0] sm:$0xff]
    %v124 = vld [vmem:[#allocation5 + $0xc8] sm:$0xff]
    %v125 = vld [vmem:[#allocation7] sm:$0xf]
    %v127 = vlaneseq
    %v128 = vshrl.u32 %v127, 7
    %v129 = vsub.s32 0, %v128
    %v130 = vrot.slane %v125, %v129
    %v131 = vlaneseq
    %v132 = vshrl.u32 %v131, 7
    %v133 = vsub.s32 1, %v132
    %v134 = vrot.slane %v125, %v133
    %v135 = vlaneseq
    %v136 = vshrl.u32 %v135, 7
    %v137 = vsub.s32 2, %v136
    %v138 = vrot.slane %v125, %v137
    %v139 = vlaneseq
    %v140 = vshrl.u32 %v139, 7
    %v141 = vsub.s32 3, %v140
    %v142 = vrot.slane %v125, %v141
    %v155 = vunpack.c.l.b16 %v117
    %v156 = vunpack.c.h.b16 %v117
    %v157 = vunpack.c.l.b16 %v118
    %v158 = vunpack.c.h.b16 %v118
    %v159 = vunpack.c.l.b16 %v119
    %v160 = vunpack.c.h.b16 %v119
    %v161 = vunpack.c.l.b16 %v120
    %v162 = vunpack.c.h.b16 %v120
    %v163 = vunpack.c.l.b16 %v121
    %v164 = vunpack.c.h.b16 %v121
    %v165 = vunpack.c.l.b16 %v122
    %v166 = vunpack.c.h.b16 %v122
    %v167 = vunpack.c.l.b16 %v123
    %v168 = vunpack.c.h.b16 %v123
    %v169 = vunpack.c.l.b16 %v124
    %v170 = vunpack.c.h.b16 %v124
    %v171 = vpack.c.b16 %v159, %v155
    %v172 = vpack.c.b16 %v160, %v156
    %v173 = vpack.c.b16 %v161, %v157
    %v174 = vpack.c.b16 %v162, %v158
    %v175 = vpack.c.b16 %v167, %v163
    %v176 = vpack.c.b16 %v168, %v164
    %v177 = vpack.c.b16 %v169, %v165
    %v178 = vpack.c.b16 %v170, %v166
    %vm187 = vcmask 261120
    %v189 = vsel %vm187, %v116, 0
    %191 = vmatprep.subr.bf16.mxu0 0
    %192 = vmatpush1.bf16.msra.mxu0 0
    %193 = vmatprep.subr.bf16.mxu0 0
    %194 = vmatpush1.bf16.msra.mxu0 0
    %195 = vmatprep.subr.bf16.mxu0 0
    %196 = vmatpush1.bf16.msra.mxu0 0
    %197 = vmatprep.subr.bf16.mxu0 0
    %198 = vmatpush1.bf16.msra.mxu0 0
    %199 = vmatprep.subr.bf16.mxu0 0
    %200 = vmatpush1.bf16.msra.mxu0 0
    %201 = vmatprep.subr.bf16.mxu0 0
    %202 = vmatpush1.bf16.msra.mxu0 0
    %203 = vmatprep.subr.bf16.mxu0 %v176
    %204 = vmatpush1.bf16.msra.mxu0 %v175
    %205 = vmatprep.subr.bf16.mxu0 %v172
    %206 = vmatpush1.bf16.msra.mxu0 %v171
    %207 = vmatprep.subr.bf16.mxu0 0
    %208 = vmatpush2.bf16.msra.mxu0 0
    %209 = vmatprep.subr.bf16.mxu0 0
    %210 = vmatpush2.bf16.msra.mxu0 0
    %211 = vmatprep.subr.bf16.mxu0 0
    %212 = vmatpush2.bf16.msra.mxu0 0
    %213 = vmatprep.subr.bf16.mxu0 0
    %214 = vmatpush2.bf16.msra.mxu0 0
    %215 = vmatprep.subr.bf16.mxu0 0
    %216 = vmatpush2.bf16.msra.mxu0 0
    %217 = vmatprep.subr.bf16.mxu0 0
    %218 = vmatpush2.bf16.msra.mxu0 0
    %219 = vmatprep.subr.bf16.mxu0 0
    %220 = vmatpush2.bf16.msra.mxu0 0
    %221 = vmatprep.subr.bf16.mxu0 0
    %222 = vmatpush2.bf16.msra.mxu0 0
    %223 = vmatprep.mubr.bf16.mxu0 0
    %224 = vmatmul.mubr.bf16.gmra.mxu0 %v189
    %v225 = vpop.f32.mrf.mxu0
    %v226 = vadd.f32 %v130, %v225
    %v227 = vpop.f32.mrf.mxu0
    %v228 = vadd.f32 %v134, %v227
    %v229 = vpop.f32.mrf.mxu0
    %v230 = vpop.f32.mrf.mxu0
    %231 = vdwg.mxu0
    %232 = vmatprep.subr.bf16.mxu0 0
    %233 = vmatpush1.bf16.msra.mxu0 0
    %234 = vmatprep.subr.bf16.mxu0 0
    %235 = vmatpush1.bf16.msra.mxu0 0
    %236 = vmatprep.subr.bf16.mxu0 0
    %237 = vmatpush1.bf16.msra.mxu0 0
    %238 = vmatprep.subr.bf16.mxu0 0
    %239 = vmatpush1.bf16.msra.mxu0 0
    %240 = vmatprep.subr.bf16.mxu0 0
    %241 = vmatpush1.bf16.msra.mxu0 0
    %242 = vmatprep.subr.bf16.mxu0 0
    %243 = vmatpush1.bf16.msra.mxu0 0
    %244 = vmatprep.subr.bf16.mxu0 %v178
    %245 = vmatpush1.bf16.msra.mxu0 %v177
    %246 = vmatprep.subr.bf16.mxu0 %v174
    %247 = vmatpush1.bf16.msra.mxu0 %v173
    %248 = vmatprep.subr.bf16.mxu0 0
    %249 = vmatpush2.bf16.msra.mxu0 0
    %250 = vmatprep.subr.bf16.mxu0 0
    %251 = vmatpush2.bf16.msra.mxu0 0
    %252 = vmatprep.subr.bf16.mxu0 0
    %253 = vmatpush2.bf16.msra.mxu0 0
    %254 = vmatprep.subr.bf16.mxu0 0
    %255 = vmatpush2.bf16.msra.mxu0 0
    %256 = vmatprep.subr.bf16.mxu0 0
    %257 = vmatpush2.bf16.msra.mxu0 0
    %258 = vmatprep.subr.bf16.mxu0 0
    %259 = vmatpush2.bf16.msra.mxu0 0
    %260 = vmatprep.subr.bf16.mxu0 0
    %261 = vmatpush2.bf16.msra.mxu0 0
    %262 = vmatprep.subr.bf16.mxu0 0
    %263 = vmatpush2.bf16.msra.mxu0 0
    %264 = vmatprep.mubr.bf16.mxu0 0
    %265 = vmatmul.mubr.bf16.gmra.mxu0 %v189
    %v266 = vpop.f32.mrf.mxu0
    %v267 = vadd.f32 %v138, %v266
    %v268 = vpop.f32.mrf.mxu0
    %v269 = vadd.f32 %v142, %v268
    %v270 = vpop.f32.mrf.mxu0
    %v271 = vpop.f32.mrf.mxu0
    %272 = vdwg.mxu0
    %v273 = vmax.f32 %v226, 0.0
    %v274 = vmax.f32 %v228, 0.0
    %v275 = vmax.f32 %v267, 0.0
    %v276 = vmax.f32 %v269, 0.0
    %v277 = vpack.c.bf16 %v273, %v273
    %v278 = vpack.c.bf16 %v274, %v274
    %v279 = vpack.c.bf16 %v275, %v275
    %v280 = vpack.c.bf16 %v276, %v276
    %s281 = smul.u32 0, 4
    %s282 = smul.addr %s281, 4
    %s283 = scalar_lea.vmem [#allocation8], %s282
    %v284 = vld [vmem:[%s283] sm:$0xff]
    %v285 = vld [vmem:[%s283 + $0x8] sm:$0xff]
    %v286 = vld [vmem:[%s283 + $0x10] sm:$0xff]
    %v287 = vld [vmem:[%s283 + $0x18] sm:$0xff]
    %v288 = vld [vmem:[%s283 + $0x20] sm:$0xff]
    %v289 = vld [vmem:[%s283 + $0x28] sm:$0xff]
    %v290 = vld [vmem:[%s283 + $0x30] sm:$0xff]
    %v291 = vld [vmem:[%s283 + $0x38] sm:$0xff]
    %v292 = vld [vmem:[%s283 + $0x40] sm:$0xff]
    %v293 = vld [vmem:[%s283 + $0x48] sm:$0xff]
    %v294 = vld [vmem:[%s283 + $0x50] sm:$0xff]
    %v295 = vld [vmem:[%s283 + $0x58] sm:$0xff]
    %v296 = vld [vmem:[%s283 + $0x60] sm:$0xff]
    %v297 = vld [vmem:[%s283 + $0x68] sm:$0xff]
    %v298 = vld [vmem:[%s283 + $0x70] sm:$0xff]
    %v299 = vld [vmem:[%s283 + $0x78] sm:$0xff]
    %v300 = vld [vmem:[%s283 + $0x80] sm:$0xff]
    %v301 = vld [vmem:[%s283 + $0x88] sm:$0xff]
    %v302 = vld [vmem:[%s283 + $0x90] sm:$0xff]
    %v303 = vld [vmem:[%s283 + $0x98] sm:$0xff]
    %v304 = vld [vmem:[%s283 + $0xa0] sm:$0xff]
    %v305 = vld [vmem:[%s283 + $0xa8] sm:$0xff]
    %v306 = vld [vmem:[%s283 + $0xb0] sm:$0xff]
    %v307 = vld [vmem:[%s283 + $0xb8] sm:$0xff]
    %v308 = vld [vmem:[%s283 + $0xc0] sm:$0xff]
    %v309 = vld [vmem:[%s283 + $0xc8] sm:$0xff]
    %v310 = vld [vmem:[%s283 + $0xd0] sm:$0xff]
    %v311 = vld [vmem:[%s283 + $0xd8] sm:$0xff]
    %v312 = vld [vmem:[%s283 + $0xe0] sm:$0xff]
    %v313 = vld [vmem:[%s283 + $0xe8] sm:$0xff]
    %v314 = vld [vmem:[%s283 + $0xf0] sm:$0xff]
    %v315 = vld [vmem:[%s283 + $0xf8] sm:$0xff]
    %v316 = vld [vmem:[%s283 + $0x100] sm:$0xff]
    %v317 = vld [vmem:[%s283 + $0x108] sm:$0xff]
    %v318 = vld [vmem:[%s283 + $0x110] sm:$0xff]
    %v319 = vld [vmem:[%s283 + $0x118] sm:$0xff]
    %v320 = vld [vmem:[%s283 + $0x120] sm:$0xff]
    %v321 = vld [vmem:[%s283 + $0x128] sm:$0xff]
    %v322 = vld [vmem:[%s283 + $0x130] sm:$0xff]
    %v323 = vld [vmem:[%s283 + $0x138] sm:$0xff]
    %v324 = vld [vmem:[%s283 + $0x140] sm:$0xff]
    %v325 = vld [vmem:[%s283 + $0x148] sm:$0xff]
    %v326 = vld [vmem:[%s283 + $0x150] sm:$0xff]
    %v327 = vld [vmem:[%s283 + $0x158] sm:$0xff]
    %v328 = vld [vmem:[%s283 + $0x160] sm:$0xff]
    %v329 = vld [vmem:[%s283 + $0x168] sm:$0xff]
    %v330 = vld [vmem:[%s283 + $0x170] sm:$0xff]
    %v331 = vld [vmem:[%s283 + $0x178] sm:$0xff]
    %v332 = vld [vmem:[%s283 + $0x180] sm:$0xff]
    %v333 = vld [vmem:[%s283 + $0x188] sm:$0xff]
    %v334 = vld [vmem:[%s283 + $0x190] sm:$0xff]
    %v335 = vld [vmem:[%s283 + $0x198] sm:$0xff]
    %v336 = vld [vmem:[%s283 + $0x1a0] sm:$0xff]
    %v337 = vld [vmem:[%s283 + $0x1a8] sm:$0xff]
    %v338 = vld [vmem:[%s283 + $0x1b0] sm:$0xff]
    %v339 = vld [vmem:[%s283 + $0x1b8] sm:$0xff]
    %v340 = vld [vmem:[%s283 + $0x1c0] sm:$0xff]
    %v341 = vld [vmem:[%s283 + $0x1c8] sm:$0xff]
    %v342 = vld [vmem:[%s283 + $0x1d0] sm:$0xff]
    %v343 = vld [vmem:[%s283 + $0x1d8] sm:$0xff]
    %v344 = vld [vmem:[%s283 + $0x1e0] sm:$0xff]
    %v345 = vld [vmem:[%s283 + $0x1e8] sm:$0xff]
    %v346 = vld [vmem:[%s283 + $0x1f0] sm:$0xff]
    %v347 = vld [vmem:[%s283 + $0x1f8] sm:$0xff]
    %v348 = vld [vmem:[%s283 + $0x200] sm:$0xff]
    %v349 = vld [vmem:[%s283 + $0x208] sm:$0xff]
    %v350 = vld [vmem:[%s283 + $0x210] sm:$0xff]
    %v351 = vld [vmem:[%s283 + $0x218] sm:$0xff]
    %v352 = vld [vmem:[%s283 + $0x220] sm:$0xff]
    %v353 = vld [vmem:[%s283 + $0x228] sm:$0xff]
    %v354 = vld [vmem:[%s283 + $0x230] sm:$0xff]
    %v355 = vld [vmem:[%s283 + $0x238] sm:$0xff]
    %v356 = vld [vmem:[%s283 + $0x240] sm:$0xff]
    %v357 = vld [vmem:[%s283 + $0x248] sm:$0xff]
    %v358 = vld [vmem:[%s283 + $0x250] sm:$0xff]
    %v359 = vld [vmem:[%s283 + $0x258] sm:$0xff]
    %v360 = vld [vmem:[%s283 + $0x260] sm:$0xff]
    %v361 = vld [vmem:[%s283 + $0x268] sm:$0xff]
    %v362 = vld [vmem:[%s283 + $0x270] sm:$0xff]
    %v363 = vld [vmem:[%s283 + $0x278] sm:$0xff]
    %v364 = vld [vmem:[%s283 + $0x280] sm:$0xff]
    %v365 = vld [vmem:[%s283 + $0x288] sm:$0xff]
    %v366 = vld [vmem:[%s283 + $0x290] sm:$0xff]
    %v367 = vld [vmem:[%s283 + $0x298] sm:$0xff]
    %v368 = vld [vmem:[%s283 + $0x2a0] sm:$0xff]
    %v369 = vld [vmem:[%s283 + $0x2a8] sm:$0xff]
    %v370 = vld [vmem:[%s283 + $0x2b0] sm:$0xff]
    %v371 = vld [vmem:[%s283 + $0x2b8] sm:$0xff]
    %v372 = vld [vmem:[%s283 + $0x2c0] sm:$0xff]
    %v373 = vld [vmem:[%s283 + $0x2c8] sm:$0xff]
    %v374 = vld [vmem:[%s283 + $0x2d0] sm:$0xff]
    %v375 = vld [vmem:[%s283 + $0x2d8] sm:$0xff]
    %v376 = vld [vmem:[%s283 + $0x2e0] sm:$0xff]
    %v377 = vld [vmem:[%s283 + $0x2e8] sm:$0xff]
    %v378 = vld [vmem:[%s283 + $0x2f0] sm:$0xff]
    %v379 = vld [vmem:[%s283 + $0x2f8] sm:$0xff]
    %v380 = vld [vmem:[%s283 + $0x300] sm:$0xff]
    %v381 = vld [vmem:[%s283 + $0x308] sm:$0xff]
    %v382 = vld [vmem:[%s283 + $0x310] sm:$0xff]
    %v383 = vld [vmem:[%s283 + $0x318] sm:$0xff]
    %v384 = vld [vmem:[%s283 + $0x320] sm:$0xff]
    %v385 = vld [vmem:[%s283 + $0x328] sm:$0xff]
    %v386 = vld [vmem:[%s283 + $0x330] sm:$0xff]
    %v387 = vld [vmem:[%s283 + $0x338] sm:$0xff]
    %v388 = vld [vmem:[%s283 + $0x340] sm:$0xff]
    %v389 = vld [vmem:[%s283 + $0x348] sm:$0xff]
    %v390 = vld [vmem:[%s283 + $0x350] sm:$0xff]
    %v391 = vld [vmem:[%s283 + $0x358] sm:$0xff]
    %v392 = vld [vmem:[%s283 + $0x360] sm:$0xff]
    %v393 = vld [vmem:[%s283 + $0x368] sm:$0xff]
    %v394 = vld [vmem:[%s283 + $0x370] sm:$0xff]
    %v395 = vld [vmem:[%s283 + $0x378] sm:$0xff]
    %v396 = vld [vmem:[%s283 + $0x380] sm:$0xff]
    %v397 = vld [vmem:[%s283 + $0x388] sm:$0xff]
    %v398 = vld [vmem:[%s283 + $0x390] sm:$0xff]
    %v399 = vld [vmem:[%s283 + $0x398] sm:$0xff]
    %v400 = vld [vmem:[%s283 + $0x3a0] sm:$0xff]
    %v401 = vld [vmem:[%s283 + $0x3a8] sm:$0xff]
    %v402 = vld [vmem:[%s283 + $0x3b0] sm:$0xff]
    %v403 = vld [vmem:[%s283 + $0x3b8] sm:$0xff]
    %v404 = vld [vmem:[%s283 + $0x3c0] sm:$0xff]
    %v405 = vld [vmem:[%s283 + $0x3c8] sm:$0xff]
    %v406 = vld [vmem:[%s283 + $0x3d0] sm:$0xff]
    %v407 = vld [vmem:[%s283 + $0x3d8] sm:$0xff]
    %v408 = vld [vmem:[%s283 + $0x3e0] sm:$0xff]
    %v409 = vld [vmem:[%s283 + $0x3e8] sm:$0xff]
    %v410 = vld [vmem:[%s283 + $0x3f0] sm:$0xff]
    %v411 = vld [vmem:[%s283 + $0x3f8] sm:$0xff]
    %s412 = scalar_lea.vmem [#allocation5], 16
    %v413 = vld [vmem:[%s412] sm:$0xff]
    %v414 = vld [vmem:[%s412 + $0x8] sm:$0xff]
    %v415 = vld [vmem:[%s412 + $0x40] sm:$0xff]
    %v416 = vld [vmem:[%s412 + $0x48] sm:$0xff]
    %v417 = vld [vmem:[%s412 + $0x80] sm:$0xff]
    %v418 = vld [vmem:[%s412 + $0x88] sm:$0xff]
    %v419 = vld [vmem:[%s412 + $0xc0] sm:$0xff]
    %v420 = vld [vmem:[%s412 + $0xc8] sm:$0xff]
    %s421 = scalar_lea.vmem [#allocation7], 4
    %v422 = vld [vmem:[%s421] sm:$0xf]
    %v424 = vlaneseq
    %v425 = vshrl.u32 %v424, 7
    %v426 = vsub.s32 0, %v425
    %v427 = vrot.slane %v422, %v426
    %v428 = vlaneseq
    %v429 = vshrl.u32 %v428, 7
    %v430 = vsub.s32 1, %v429
    %v431 = vrot.slane %v422, %v430
    %v432 = vlaneseq
    %v433 = vshrl.u32 %v432, 7
    %v434 = vsub.s32 2, %v433
    %v435 = vrot.slane %v422, %v434
    %v436 = vlaneseq
    %v437 = vshrl.u32 %v436, 7
    %v438 = vsub.s32 3, %v437
    %v439 = vrot.slane %v422, %v438
    %v452 = vunpack.c.l.b16 %v413
    %v453 = vunpack.c.h.b16 %v413
    %v454 = vunpack.c.l.b16 %v414
    %v455 = vunpack.c.h.b16 %v414
    %v456 = vunpack.c.l.b16 %v415
    %v457 = vunpack.c.h.b16 %v415
    %v458 = vunpack.c.l.b16 %v416
    %v459 = vunpack.c.h.b16 %v416
    %v460 = vunpack.c.l.b16 %v417
    %v461 = vunpack.c.h.b16 %v417
    %v462 = vunpack.c.l.b16 %v418
    %v463 = vunpack.c.h.b16 %v418
    %v464 = vunpack.c.l.b16 %v419
    %v465 = vunpack.c.h.b16 %v419
    %v466 = vunpack.c.l.b16 %v420
    %v467 = vunpack.c.h.b16 %v420
    %v468 = vpack.c.b16 %v456, %v452
    %v469 = vpack.c.b16 %v457, %v453
    %v470 = vpack.c.b16 %v458, %v454
    %v471 = vpack.c.b16 %v459, %v455
    %v472 = vpack.c.b16 %v464, %v460
    %v473 = vpack.c.b16 %v465, %v461
    %v474 = vpack.c.b16 %v466, %v462
    %v475 = vpack.c.b16 %v467, %v463
    %484 = vmatprep.subr.bf16.mxu0 0
    %485 = vmatpush1.bf16.msra.mxu0 0
    %486 = vmatprep.subr.bf16.mxu0 0
    %487 = vmatpush1.bf16.msra.mxu0 0
    %488 = vmatprep.subr.bf16.mxu0 0
    %489 = vmatpush1.bf16.msra.mxu0 0
    %490 = vmatprep.subr.bf16.mxu0 0
    %491 = vmatpush1.bf16.msra.mxu0 0
    %492 = vmatprep.subr.bf16.mxu0 0
    %493 = vmatpush1.bf16.msra.mxu0 0
    %494 = vmatprep.subr.bf16.mxu0 0
    %495 = vmatpush1.bf16.msra.mxu0 0
    %496 = vmatprep.subr.bf16.mxu0 %v473
    %497 = vmatpush1.bf16.msra.mxu0 %v472
    %498 = vmatprep.subr.bf16.mxu0 %v469
    %499 = vmatpush1.bf16.msra.mxu0 %v468
    %500 = vmatprep.subr.bf16.mxu0 0
    %501 = vmatpush2.bf16.msra.mxu0 0
    %502 = vmatprep.subr.bf16.mxu0 0
    %503 = vmatpush2.bf16.msra.mxu0 0
    %504 = vmatprep.subr.bf16.mxu0 0
    %505 = vmatpush2.bf16.msra.mxu0 0
    %506 = vmatprep.subr.bf16.mxu0 0
    %507 = vmatpush2.bf16.msra.mxu0 0
    %508 = vmatprep.subr.bf16.mxu0 0
    %509 = vmatpush2.bf16.msra.mxu0 0
    %510 = vmatprep.subr.bf16.mxu0 0
    %511 = vmatpush2.bf16.msra.mxu0 0
    %512 = vmatprep.subr.bf16.mxu0 0
    %513 = vmatpush2.bf16.msra.mxu0 0
    %514 = vmatprep.subr.bf16.mxu0 0
    %515 = vmatpush2.bf16.msra.mxu0 0
    %516 = vmatprep.mubr.bf16.mxu0 0
    %517 = vmatmul.mubr.bf16.gmra.mxu0 %v189
    %v518 = vpop.f32.mrf.mxu0
    %v519 = vadd.f32 %v427, %v518
    %v520 = vpop.f32.mrf.mxu0
    %v521 = vadd.f32 %v431, %v520
    %v522 = vpop.f32.mrf.mxu0
    %v523 = vpop.f32.mrf.mxu0
    %524 = vdwg.mxu0
    %525 = vmatprep.subr.bf16.mxu0 0
    %526 = vmatpush1.bf16.msra.mxu0 0
    %527 = vmatprep.subr.bf16.mxu0 0
    %528 = vmatpush1.bf16.msra.mxu0 0
    %529 = vmatprep.subr.bf16.mxu0 0
    %530 = vmatpush1.bf16.msra.mxu0 0
    %531 = vmatprep.subr.bf16.mxu0 0
    %532 = vmatpush1.bf16.msra.mxu0 0
    %533 = vmatprep.subr.bf16.mxu0 0
    %534 = vmatpush1.bf16.msra.mxu0 0
    %535 = vmatprep.subr.bf16.mxu0 0
    %536 = vmatpush1.bf16.msra.mxu0 0
    %537 = vmatprep.subr.bf16.mxu0 %v475
    %538 = vmatpush1.bf16.msra.mxu0 %v474
    %539 = vmatprep.subr.bf16.mxu0 %v471
    %540 = vmatpush1.bf16.msra.mxu0 %v470
    %541 = vmatprep.subr.bf16.mxu0 0
    %542 = vmatpush2.bf16.msra.mxu0 0
    %543 = vmatprep.subr.bf16.mxu0 0
    %544 = vmatpush2.bf16.msra.mxu0 0
    %545 = vmatprep.subr.bf16.mxu0 0
    %546 = vmatpush2.bf16.msra.mxu0 0
    %547 = vmatprep.subr.bf16.mxu0 0
    %548 = vmatpush2.bf16.msra.mxu0 0
    %549 = vmatprep.subr.bf16.mxu0 0
    %550 = vmatpush2.bf16.msra.mxu0 0
    %551 = vmatprep.subr.bf16.mxu0 0
    %552 = vmatpush2.bf16.msra.mxu0 0
    %553 = vmatprep.subr.bf16.mxu0 0
    %554 = vmatpush2.bf16.msra.mxu0 0
    %555 = vmatprep.subr.bf16.mxu0 0
    %556 = vmatpush2.bf16.msra.mxu0 0
    %557 = vmatprep.mubr.bf16.mxu0 0
    %558 = vmatmul.mubr.bf16.gmra.mxu0 %v189
    %v559 = vpop.f32.mrf.mxu0
    %v560 = vadd.f32 %v435, %v559
    %v561 = vpop.f32.mrf.mxu0
    %v562 = vadd.f32 %v439, %v561
    %v563 = vpop.f32.mrf.mxu0
    %v564 = vpop.f32.mrf.mxu0
    %565 = vdwg.mxu0
    %v566 = vmax.f32 %v519, 0.0
    %v567 = vmax.f32 %v521, 0.0
    %v568 = vmax.f32 %v560, 0.0
    %v569 = vmax.f32 %v562, 0.0
    %v570 = vpack.c.bf16 %v566, %v566
    %v571 = vpack.c.bf16 %v567, %v567
    %v572 = vpack.c.bf16 %v568, %v568
    %v573 = vpack.c.bf16 %v569, %v569
    %s574 = smul.u32 64, 4
    %s575 = smul.addr %s574, 4
    %s576 = scalar_lea.vmem [#allocation8], %s575
    %v577 = vld [vmem:[%s576] sm:$0xff]
    %v578 = vld [vmem:[%s576 + $0x8] sm:$0xff]
    %v579 = vld [vmem:[%s576 + $0x10] sm:$0xff]
    %v580 = vld [vmem:[%s576 + $0x18] sm:$0xff]
    %v581 = vld [vmem:[%s576 + $0x20] sm:$0xff]
    %v582 = vld [vmem:[%s576 + $0x28] sm:$0xff]
    %v583 = vld [vmem:[%s576 + $0x30] sm:$0xff]
    %v584 = vld [vmem:[%s576 + $0x38] sm:$0xff]
    %v585 = vld [vmem:[%s576 + $0x40] sm:$0xff]
    %v586 = vld [vmem:[%s576 + $0x48] sm:$0xff]
    %v587 = vld [vmem:[%s576 + $0x50] sm:$0xff]
    %v588 = vld [vmem:[%s576 + $0x58] sm:$0xff]
    %v589 = vld [vmem:[%s576 + $0x60] sm:$0xff]
    %v590 = vld [vmem:[%s576 + $0x68] sm:$0xff]
    %v591 = vld [vmem:[%s576 + $0x70] sm:$0xff]
    %v592 = vld [vmem:[%s576 + $0x78] sm:$0xff]
    %v593 = vld [vmem:[%s576 + $0x80] sm:$0xff]
    %v594 = vld [vmem:[%s576 + $0x88] sm:$0xff]
    %v595 = vld [vmem:[%s576 + $0x90] sm:$0xff]
    %v596 = vld [vmem:[%s576 + $0x98] sm:$0xff]
    %v597 = vld [vmem:[%s576 + $0xa0] sm:$0xff]
    %v598 = vld [vmem:[%s576 + $0xa8] sm:$0xff]
    %v599 = vld [vmem:[%s576 + $0xb0] sm:$0xff]
    %v600 = vld [vmem:[%s576 + $0xb8] sm:$0xff]
    %v601 = vld [vmem:[%s576 + $0xc0] sm:$0xff]
    %v602 = vld [vmem:[%s576 + $0xc8] sm:$0xff]
    %v603 = vld [vmem:[%s576 + $0xd0] sm:$0xff]
    %v604 = vld [vmem:[%s576 + $0xd8] sm:$0xff]
    %v605 = vld [vmem:[%s576 + $0xe0] sm:$0xff]
    %v606 = vld [vmem:[%s576 + $0xe8] sm:$0xff]
    %v607 = vld [vmem:[%s576 + $0xf0] sm:$0xff]
    %v608 = vld [vmem:[%s576 + $0xf8] sm:$0xff]
    %v609 = vld [vmem:[%s576 + $0x100] sm:$0xff]
    %v610 = vld [vmem:[%s576 + $0x108] sm:$0xff]
    %v611 = vld [vmem:[%s576 + $0x110] sm:$0xff]
    %v612 = vld [vmem:[%s576 + $0x118] sm:$0xff]
    %v613 = vld [vmem:[%s576 + $0x120] sm:$0xff]
    %v614 = vld [vmem:[%s576 + $0x128] sm:$0xff]
    %v615 = vld [vmem:[%s576 + $0x130] sm:$0xff]
    %v616 = vld [vmem:[%s576 + $0x138] sm:$0xff]
    %v617 = vld [vmem:[%s576 + $0x140] sm:$0xff]
    %v618 = vld [vmem:[%s576 + $0x148] sm:$0xff]
    %v619 = vld [vmem:[%s576 + $0x150] sm:$0xff]
    %v620 = vld [vmem:[%s576 + $0x158] sm:$0xff]
    %v621 = vld [vmem:[%s576 + $0x160] sm:$0xff]
    %v622 = vld [vmem:[%s576 + $0x168] sm:$0xff]
    %v623 = vld [vmem:[%s576 + $0x170] sm:$0xff]
    %v624 = vld [vmem:[%s576 + $0x178] sm:$0xff]
    %v625 = vld [vmem:[%s576 + $0x180] sm:$0xff]
    %v626 = vld [vmem:[%s576 + $0x188] sm:$0xff]
    %v627 = vld [vmem:[%s576 + $0x190] sm:$0xff]
    %v628 = vld [vmem:[%s576 + $0x198] sm:$0xff]
    %v629 = vld [vmem:[%s576 + $0x1a0] sm:$0xff]
    %v630 = vld [vmem:[%s576 + $0x1a8] sm:$0xff]
    %v631 = vld [vmem:[%s576 + $0x1b0] sm:$0xff]
    %v632 = vld [vmem:[%s576 + $0x1b8] sm:$0xff]
    %v633 = vld [vmem:[%s576 + $0x1c0] sm:$0xff]
    %v634 = vld [vmem:[%s576 + $0x1c8] sm:$0xff]
    %v635 = vld [vmem:[%s576 + $0x1d0] sm:$0xff]
    %v636 = vld [vmem:[%s576 + $0x1d8] sm:$0xff]
    %v637 = vld [vmem:[%s576 + $0x1e0] sm:$0xff]
    %v638 = vld [vmem:[%s576 + $0x1e8] sm:$0xff]
    %v639 = vld [vmem:[%s576 + $0x1f0] sm:$0xff]
    %v640 = vld [vmem:[%s576 + $0x1f8] sm:$0xff]
    %v641 = vld [vmem:[%s576 + $0x200] sm:$0xff]
    %v642 = vld [vmem:[%s576 + $0x208] sm:$0xff]
    %v643 = vld [vmem:[%s576 + $0x210] sm:$0xff]
    %v644 = vld [vmem:[%s576 + $0x218] sm:$0xff]
    %v645 = vld [vmem:[%s576 + $0x220] sm:$0xff]
    %v646 = vld [vmem:[%s576 + $0x228] sm:$0xff]
    %v647 = vld [vmem:[%s576 + $0x230] sm:$0xff]
    %v648 = vld [vmem:[%s576 + $0x238] sm:$0xff]
    %v649 = vld [vmem:[%s576 + $0x240] sm:$0xff]
    %v650 = vld [vmem:[%s576 + $0x248] sm:$0xff]
    %v651 = vld [vmem:[%s576 + $0x250] sm:$0xff]
    %v652 = vld [vmem:[%s576 + $0x258] sm:$0xff]
    %v653 = vld [vmem:[%s576 + $0x260] sm:$0xff]
    %v654 = vld [vmem:[%s576 + $0x268] sm:$0xff]
    %v655 = vld [vmem:[%s576 + $0x270] sm:$0xff]
    %v656 = vld [vmem:[%s576 + $0x278] sm:$0xff]
    %v657 = vld [vmem:[%s576 + $0x280] sm:$0xff]
    %v658 = vld [vmem:[%s576 + $0x288] sm:$0xff]
    %v659 = vld [vmem:[%s576 + $0x290] sm:$0xff]
    %v660 = vld [vmem:[%s576 + $0x298] sm:$0xff]
    %v661 = vld [vmem:[%s576 + $0x2a0] sm:$0xff]
    %v662 = vld [vmem:[%s576 + $0x2a8] sm:$0xff]
    %v663 = vld [vmem:[%s576 + $0x2b0] sm:$0xff]
    %v664 = vld [vmem:[%s576 + $0x2b8] sm:$0xff]
    %v665 = vld [vmem:[%s576 + $0x2c0] sm:$0xff]
    %v666 = vld [vmem:[%s576 + $0x2c8] sm:$0xff]
    %v667 = vld [vmem:[%s576 + $0x2d0] sm:$0xff]
    %v668 = vld [vmem:[%s576 + $0x2d8] sm:$0xff]
    %v669 = vld [vmem:[%s576 + $0x2e0] sm:$0xff]
    %v670 = vld [vmem:[%s576 + $0x2e8] sm:$0xff]
    %v671 = vld [vmem:[%s576 + $0x2f0] sm:$0xff]
    %v672 = vld [vmem:[%s576 + $0x2f8] sm:$0xff]
    %v673 = vld [vmem:[%s576 + $0x300] sm:$0xff]
    %v674 = vld [vmem:[%s576 + $0x308] sm:$0xff]
    %v675 = vld [vmem:[%s576 + $0x310] sm:$0xff]
    %v676 = vld [vmem:[%s576 + $0x318] sm:$0xff]
    %v677 = vld [vmem:[%s576 + $0x320] sm:$0xff]
    %v678 = vld [vmem:[%s576 + $0x328] sm:$0xff]
    %v679 = vld [vmem:[%s576 + $0x330] sm:$0xff]
    %v680 = vld [vmem:[%s576 + $0x338] sm:$0xff]
    %v681 = vld [vmem:[%s576 + $0x340] sm:$0xff]
    %v682 = vld [vmem:[%s576 + $0x348] sm:$0xff]
    %v683 = vld [vmem:[%s576 + $0x350] sm:$0xff]
    %v684 = vld [vmem:[%s576 + $0x358] sm:$0xff]
    %v685 = vld [vmem:[%s576 + $0x360] sm:$0xff]
    %v686 = vld [vmem:[%s576 + $0x368] sm:$0xff]
    %v687 = vld [vmem:[%s576 + $0x370] sm:$0xff]
    %v688 = vld [vmem:[%s576 + $0x378] sm:$0xff]
    %v689 = vld [vmem:[%s576 + $0x380] sm:$0xff]
    %v690 = vld [vmem:[%s576 + $0x388] sm:$0xff]
    %v691 = vld [vmem:[%s576 + $0x390] sm:$0xff]
    %v692 = vld [vmem:[%s576 + $0x398] sm:$0xff]
    %v693 = vld [vmem:[%s576 + $0x3a0] sm:$0xff]
    %v694 = vld [vmem:[%s576 + $0x3a8] sm:$0xff]
    %v695 = vld [vmem:[%s576 + $0x3b0] sm:$0xff]
    %v696 = vld [vmem:[%s576 + $0x3b8] sm:$0xff]
    %v697 = vld [vmem:[%s576 + $0x3c0] sm:$0xff]
    %v698 = vld [vmem:[%s576 + $0x3c8] sm:$0xff]
    %v699 = vld [vmem:[%s576 + $0x3d0] sm:$0xff]
    %v700 = vld [vmem:[%s576 + $0x3d8] sm:$0xff]
    %v701 = vld [vmem:[%s576 + $0x3e0] sm:$0xff]
    %v702 = vld [vmem:[%s576 + $0x3e8] sm:$0xff]
    %v703 = vld [vmem:[%s576 + $0x3f0] sm:$0xff]
    %v704 = vld [vmem:[%s576 + $0x3f8] sm:$0xff]
    %v833 = vunpack.c.l.b16 %v577
    %v834 = vunpack.c.h.b16 %v577
    %v835 = vunpack.c.l.b16 %v578
    %v836 = vunpack.c.h.b16 %v578
    %v837 = vunpack.c.l.b16 %v579
    %v838 = vunpack.c.h.b16 %v579
    %v839 = vunpack.c.l.b16 %v580
    %v840 = vunpack.c.h.b16 %v580
    %v841 = vunpack.c.l.b16 %v581
    %v842 = vunpack.c.h.b16 %v581
    %v843 = vunpack.c.l.b16 %v582
    %v844 = vunpack.c.h.b16 %v582
    %v845 = vunpack.c.l.b16 %v583
    %v846 = vunpack.c.h.b16 %v583
    %v847 = vunpack.c.l.b16 %v584
    %v848 = vunpack.c.h.b16 %v584
    %v849 = vunpack.c.l.b16 %v585
    %v850 = vunpack.c.h.b16 %v585
    %v851 = vunpack.c.l.b16 %v586
    %v852 = vunpack.c.h.b16 %v586
    %v853 = vunpack.c.l.b16 %v587
    %v854 = vunpack.c.h.b16 %v587
    %v855 = vunpack.c.l.b16 %v588
    %v856 = vunpack.c.h.b16 %v588
    %v857 = vunpack.c.l.b16 %v589
    %v858 = vunpack.c.h.b16 %v589
    %v859 = vunpack.c.l.b16 %v590
    %v860 = vunpack.c.h.b16 %v590
    %v861 = vunpack.c.l.b16 %v591
    %v862 = vunpack.c.h.b16 %v591
    %v863 = vunpack.c.l.b16 %v592
    %v864 = vunpack.c.h.b16 %v592
    %v865 = vunpack.c.l.b16 %v593
    %v866 = vunpack.c.h.b16 %v593
    %v867 = vunpack.c.l.b16 %v594
    %v868 = vunpack.c.h.b16 %v594
    %v869 = vunpack.c.l.b16 %v595
    %v870 = vunpack.c.h.b16 %v595
    %v871 = vunpack.c.l.b16 %v596
    %v872 = vunpack.c.h.b16 %v596
    %v873 = vunpack.c.l.b16 %v597
    %v874 = vunpack.c.h.b16 %v597
    %v875 = vunpack.c.l.b16 %v598
    %v876 = vunpack.c.h.b16 %v598
    %v877 = vunpack.c.l.b16 %v599
    %v878 = vunpack.c.h.b16 %v599
    %v879 = vunpack.c.l.b16 %v600
    %v880 = vunpack.c.h.b16 %v600
    %v881 = vunpack.c.l.b16 %v601
    %v882 = vunpack.c.h.b16 %v601
    %v883 = vunpack.c.l.b16 %v602
    %v884 = vunpack.c.h.b16 %v602
    %v885 = vunpack.c.l.b16 %v603
    %v886 = vunpack.c.h.b16 %v603
    %v887 = vunpack.c.l.b16 %v604
    %v888 = vunpack.c.h.b16 %v604
    %v889 = vunpack.c.l.b16 %v605
    %v890 = vunpack.c.h.b16 %v605
    %v891 = vunpack.c.l.b16 %v606
    %v892 = vunpack.c.h.b16 %v606
    %v893 = vunpack.c.l.b16 %v607
    %v894 = vunpack.c.h.b16 %v607
    %v895 = vunpack.c.l.b16 %v608
    %v896 = vunpack.c.h.b16 %v608
    %v897 = vunpack.c.l.b16 %v609
    %v898 = vunpack.c.h.b16 %v609
    %v899 = vunpack.c.l.b16 %v610
    %v900 = vunpack.c.h.b16 %v610
    %v901 = vunpack.c.l.b16 %v611
    %v902 = vunpack.c.h.b16 %v611
    %v903 = vunpack.c.l.b16 %v612
    %v904 = vunpack.c.h.b16 %v612
    %v905 = vunpack.c.l.b16 %v613
    %v906 = vunpack.c.h.b16 %v613
    %v907 = vunpack.c.l.b16 %v614
    %v908 = vunpack.c.h.b16 %v614
    %v909 = vunpack.c.l.b16 %v615
    %v910 = vunpack.c.h.b16 %v615
    %v911 = vunpack.c.l.b16 %v616
    %v912 = vunpack.c.h.b16 %v616
    %v913 = vunpack.c.l.b16 %v617
    %v914 = vunpack.c.h.b16 %v617
    %v915 = vunpack.c.l.b16 %v618
    %v916 = vunpack.c.h.b16 %v618
    %v917 = vunpack.c.l.b16 %v619
    %v918 = vunpack.c.h.b16 %v619
    %v919 = vunpack.c.l.b16 %v620
    %v920 = vunpack.c.h.b16 %v620
    %v921 = vunpack.c.l.b16 %v621
    %v922 = vunpack.c.h.b16 %v621
    %v923 = vunpack.c.l.b16 %v622
    %v924 = vunpack.c.h.b16 %v622
    %v925 = vunpack.c.l.b16 %v623
    %v926 = vunpack.c.h.b16 %v623
    %v927 = vunpack.c.l.b16 %v624
    %v928 = vunpack.c.h.b16 %v624
    %v929 = vunpack.c.l.b16 %v625
    %v930 = vunpack.c.h.b16 %v625
    %v931 = vunpack.c.l.b16 %v626
    %v932 = vunpack.c.h.b16 %v626
    %v933 = vunpack.c.l.b16 %v627
    %v934 = vunpack.c.h.b16 %v627
    %v935 = vunpack.c.l.b16 %v628
    %v936 = vunpack.c.h.b16 %v628
    %v937 = vunpack.c.l.b16 %v629
    %v938 = vunpack.c.h.b16 %v629
    %v939 = vunpack.c.l.b16 %v630
    %v940 = vunpack.c.h.b16 %v630
    %v941 = vunpack.c.l.b16 %v631
    %v942 = vunpack.c.h.b16 %v631
    %v943 = vunpack.c.l.b16 %v632
    %v944 = vunpack.c.h.b16 %v632
    %v945 = vunpack.c.l.b16 %v633
    %v946 = vunpack.c.h.b16 %v633
    %v947 = vunpack.c.l.b16 %v634
    %v948 = vunpack.c.h.b16 %v634
    %v949 = vunpack.c.l.b16 %v635
    %v950 = vunpack.c.h.b16 %v635
    %v951 = vunpack.c.l.b16 %v636
    %v952 = vunpack.c.h.b16 %v636
    %v953 = vunpack.c.l.b16 %v637
    %v954 = vunpack.c.h.b16 %v637
    %v955 = vunpack.c.l.b16 %v638
    %v956 = vunpack.c.h.b16 %v638
    %v957 = vunpack.c.l.b16 %v639
    %v958 = vunpack.c.h.b16 %v639
    %v959 = vunpack.c.l.b16 %v640
    %v960 = vunpack.c.h.b16 %v640
    %v961 = vunpack.c.l.b16 %v641
    %v962 = vunpack.c.h.b16 %v641
    %v963 = vunpack.c.l.b16 %v642
    %v964 = vunpack.c.h.b16 %v642
    %v965 = vunpack.c.l.b16 %v643
    %v966 = vunpack.c.h.b16 %v643
    %v967 = vunpack.c.l.b16 %v644
    %v968 = vunpack.c.h.b16 %v644
    %v969 = vunpack.c.l.b16 %v645
    %v970 = vunpack.c.h.b16 %v645
    %v971 = vunpack.c.l.b16 %v646
    %v972 = vunpack.c.h.b16 %v646
    %v973 = vunpack.c.l.b16 %v647
    %v974 = vunpack.c.h.b16 %v647
    %v975 = vunpack.c.l.b16 %v648
    %v976 = vunpack.c.h.b16 %v648
    %v977 = vunpack.c.l.b16 %v649
    %v978 = vunpack.c.h.b16 %v649
    %v979 = vunpack.c.l.b16 %v650
    %v980 = vunpack.c.h.b16 %v650
    %v981 = vunpack.c.l.b16 %v651
    %v982 = vunpack.c.h.b16 %v651
    %v983 = vunpack.c.l.b16 %v652
    %v984 = vunpack.c.h.b16 %v652
    %v985 = vunpack.c.l.b16 %v653
    %v986 = vunpack.c.h.b16 %v653
    %v987 = vunpack.c.l.b16 %v654
    %v988 = vunpack.c.h.b16 %v654
    %v989 = vunpack.c.l.b16 %v655
    %v990 = vunpack.c.h.b16 %v655
    %v991 = vunpack.c.l.b16 %v656
    %v992 = vunpack.c.h.b16 %v656
    %v993 = vunpack.c.l.b16 %v657
    %v994 = vunpack.c.h.b16 %v657
    %v995 = vunpack.c.l.b16 %v658
    %v996 = vunpack.c.h.b16 %v658
    %v997 = vunpack.c.l.b16 %v659
    %v998 = vunpack.c.h.b16 %v659
    %v999 = vunpack.c.l.b16 %v660
    %v1000 = vunpack.c.h.b16 %v660
    %v1001 = vunpack.c.l.b16 %v661
    %v1002 = vunpack.c.h.b16 %v661
    %v1003 = vunpack.c.l.b16 %v662
    %v1004 = vunpack.c.h.b16 %v662
    %v1005 = vunpack.c.l.b16 %v663
    %v1006 = vunpack.c.h.b16 %v663
    %v1007 = vunpack.c.l.b16 %v664
    %v1008 = vunpack.c.h.b16 %v664
    %v1009 = vunpack.c.l.b16 %v665
    %v1010 = vunpack.c.h.b16 %v665
    %v1011 = vunpack.c.l.b16 %v666
    %v1012 = vunpack.c.h.b16 %v666
    %v1013 = vunpack.c.l.b16 %v667
    %v1014 = vunpack.c.h.b16 %v667
    %v1015 = vunpack.c.l.b16 %v668
    %v1016 = vunpack.c.h.b16 %v668
    %v1017 = vunpack.c.l.b16 %v669
    %v1018 = vunpack.c.h.b16 %v669
    %v1019 = vunpack.c.l.b16 %v670
    %v1020 = vunpack.c.h.b16 %v670
    %v1021 = vunpack.c.l.b16 %v671
    %v1022 = vunpack.c.h.b16 %v671
    %v1023 = vunpack.c.l.b16 %v672
    %v1024 = vunpack.c.h.b16 %v672
    %v1025 = vunpack.c.l.b16 %v673
    %v1026 = vunpack.c.h.b16 %v673
    %v1027 = vunpack.c.l.b16 %v674
    %v1028 = vunpack.c.h.b16 %v674
    %v1029 = vunpack.c.l.b16 %v675
    %v1030 = vunpack.c.h.b16 %v675
    %v1031 = vunpack.c.l.b16 %v676
    %v1032 = vunpack.c.h.b16 %v676
    %v1033 = vunpack.c.l.b16 %v677
    %v1034 = vunpack.c.h.b16 %v677
    %v1035 = vunpack.c.l.b16 %v678
    %v1036 = vunpack.c.h.b16 %v678
    %v1037 = vunpack.c.l.b16 %v679
    %v1038 = vunpack.c.h.b16 %v679
    %v1039 = vunpack.c.l.b16 %v680
    %v1040 = vunpack.c.h.b16 %v680
    %v1041 = vunpack.c.l.b16 %v681
    %v1042 = vunpack.c.h.b16 %v681
    %v1043 = vunpack.c.l.b16 %v682
    %v1044 = vunpack.c.h.b16 %v682
    %v1045 = vunpack.c.l.b16 %v683
    %v1046 = vunpack.c.h.b16 %v683
    %v1047 = vunpack.c.l.b16 %v684
    %v1048 = vunpack.c.h.b16 %v684
    %v1049 = vunpack.c.l.b16 %v685
    %v1050 = vunpack.c.h.b16 %v685
    %v1051 = vunpack.c.l.b16 %v686
    %v1052 = vunpack.c.h.b16 %v686
    %v1053 = vunpack.c.l.b16 %v687
    %v1054 = vunpack.c.h.b16 %v687
    %v1055 = vunpack.c.l.b16 %v688
    %v1056 = vunpack.c.h.b16 %v688
    %v1057 = vunpack.c.l.b16 %v689
    %v1058 = vunpack.c.h.b16 %v689
    %v1059 = vunpack.c.l.b16 %v690
    %v1060 = vunpack.c.h.b16 %v690
    %v1061 = vunpack.c.l.b16 %v691
    %v1062 = vunpack.c.h.b16 %v691
    %v1063 = vunpack.c.l.b16 %v692
    %v1064 = vunpack.c.h.b16 %v692
    %v1065 = vunpack.c.l.b16 %v693
    %v1066 = vunpack.c.h.b16 %v693
    %v1067 = vunpack.c.l.b16 %v694
    %v1068 = vunpack.c.h.b16 %v694
    %v1069 = vunpack.c.l.b16 %v695
    %v1070 = vunpack.c.h.b16 %v695
    %v1071 = vunpack.c.l.b16 %v696
    %v1072 = vunpack.c.h.b16 %v696
    %v1073 = vunpack.c.l.b16 %v697
    %v1074 = vunpack.c.h.b16 %v697
    %v1075 = vunpack.c.l.b16 %v698
    %v1076 = vunpack.c.h.b16 %v698
    %v1077 = vunpack.c.l.b16 %v699
    %v1078 = vunpack.c.h.b16 %v699
    %v1079 = vunpack.c.l.b16 %v700
    %v1080 = vunpack.c.h.b16 %v700
    %v1081 = vunpack.c.l.b16 %v701
    %v1082 = vunpack.c.h.b16 %v701
    %v1083 = vunpack.c.l.b16 %v702
    %v1084 = vunpack.c.h.b16 %v702
    %v1085 = vunpack.c.l.b16 %v703
    %v1086 = vunpack.c.h.b16 %v703
    %v1087 = vunpack.c.l.b16 %v704
    %v1088 = vunpack.c.h.b16 %v704
    %v1089 = vpack.c.b16 %v837, %v833
    %v1090 = vpack.c.b16 %v838, %v834
    %v1091 = vpack.c.b16 %v839, %v835
    %v1092 = vpack.c.b16 %v840, %v836
    %v1093 = vpack.c.b16 %v845, %v841
    %v1094 = vpack.c.b16 %v846, %v842
    %v1095 = vpack.c.b16 %v847, %v843
    %v1096 = vpack.c.b16 %v848, %v844
    %v1097 = vpack.c.b16 %v853, %v849
    %v1098 = vpack.c.b16 %v854, %v850
    %v1099 = vpack.c.b16 %v855, %v851
    %v1100 = vpack.c.b16 %v856, %v852
    %v1101 = vpack.c.b16 %v861, %v857
    %v1102 = vpack.c.b16 %v862, %v858
    %v1103 = vpack.c.b16 %v863, %v859
    %v1104 = vpack.c.b16 %v864, %v860
    %v1105 = vpack.c.b16 %v869, %v865
    %v1106 = vpack.c.b16 %v870, %v866
    %v1107 = vpack.c.b16 %v871, %v867
    %v1108 = vpack.c.b16 %v872, %v868
    %v1109 = vpack.c.b16 %v877, %v873
    %v1110 = vpack.c.b16 %v878, %v874
    %v1111 = vpack.c.b16 %v879, %v875
    %v1112 = vpack.c.b16 %v880, %v876
    %v1113 = vpack.c.b16 %v885, %v881
    %v1114 = vpack.c.b16 %v886, %v882
    %v1115 = vpack.c.b16 %v887, %v883
    %v1116 = vpack.c.b16 %v888, %v884
    %v1117 = vpack.c.b16 %v893, %v889
    %v1118 = vpack.c.b16 %v894, %v890
    %v1119 = vpack.c.b16 %v895, %v891
    %v1120 = vpack.c.b16 %v896, %v892
    %v1121 = vpack.c.b16 %v901, %v897
    %v1122 = vpack.c.b16 %v902, %v898
    %v1123 = vpack.c.b16 %v903, %v899
    %v1124 = vpack.c.b16 %v904, %v900
    %v1125 = vpack.c.b16 %v909, %v905
    %v1126 = vpack.c.b16 %v910, %v906
    %v1127 = vpack.c.b16 %v911, %v907
    %v1128 = vpack.c.b16 %v912, %v908
    %v1129 = vpack.c.b16 %v917, %v913
    %v1130 = vpack.c.b16 %v918, %v914
    %v1131 = vpack.c.b16 %v919, %v915
    %v1132 = vpack.c.b16 %v920, %v916
    %v1133 = vpack.c.b16 %v925, %v921
    %v1134 = vpack.c.b16 %v926, %v922
    %v1135 = vpack.c.b16 %v927, %v923
    %v1136 = vpack.c.b16 %v928, %v924
    %v1137 = vpack.c.b16 %v933, %v929
    %v1138 = vpack.c.b16 %v934, %v930
    %v1139 = vpack.c.b16 %v935, %v931
    %v1140 = vpack.c.b16 %v936, %v932
    %v1141 = vpack.c.b16 %v941, %v937
    %v1142 = vpack.c.b16 %v942, %v938
    %v1143 = vpack.c.b16 %v943, %v939
    %v1144 = vpack.c.b16 %v944, %v940
    %v1145 = vpack.c.b16 %v949, %v945
    %v1146 = vpack.c.b16 %v950, %v946
    %v1147 = vpack.c.b16 %v951, %v947
    %v1148 = vpack.c.b16 %v952, %v948
    %v1149 = vpack.c.b16 %v957, %v953
    %v1150 = vpack.c.b16 %v958, %v954
    %v1151 = vpack.c.b16 %v959, %v955
    %v1152 = vpack.c.b16 %v960, %v956
    %v1153 = vpack.c.b16 %v965, %v961
    %v1154 = vpack.c.b16 %v966, %v962
    %v1155 = vpack.c.b16 %v967, %v963
    %v1156 = vpack.c.b16 %v968, %v964
    %v1157 = vpack.c.b16 %v973, %v969
    %v1158 = vpack.c.b16 %v974, %v970
    %v1159 = vpack.c.b16 %v975, %v971
    %v1160 = vpack.c.b16 %v976, %v972
    %v1161 = vpack.c.b16 %v981, %v977
    %v1162 = vpack.c.b16 %v982, %v978
    %v1163 = vpack.c.b16 %v983, %v979
    %v1164 = vpack.c.b16 %v984, %v980
    %v1165 = vpack.c.b16 %v989, %v985
    %v1166 = vpack.c.b16 %v990, %v986
    %v1167 = vpack.c.b16 %v991, %v987
    %v1168 = vpack.c.b16 %v992, %v988
    %v1169 = vpack.c.b16 %v997, %v993
    %v1170 = vpack.c.b16 %v998, %v994
    %v1171 = vpack.c.b16 %v999, %v995
    %v1172 = vpack.c.b16 %v1000, %v996
    %v1173 = vpack.c.b16 %v1005, %v1001
    %v1174 = vpack.c.b16 %v1006, %v1002
    %v1175 = vpack.c.b16 %v1007, %v1003
    %v1176 = vpack.c.b16 %v1008, %v1004
    %v1177 = vpack.c.b16 %v1013, %v1009
    %v1178 = vpack.c.b16 %v1014, %v1010
    %v1179 = vpack.c.b16 %v1015, %v1011
    %v1180 = vpack.c.b16 %v1016, %v1012
    %v1181 = vpack.c.b16 %v1021, %v1017
    %v1182 = vpack.c.b16 %v1022, %v1018
    %v1183 = vpack.c.b16 %v1023, %v1019
    %v1184 = vpack.c.b16 %v1024, %v1020
    %v1185 = vpack.c.b16 %v1029, %v1025
    %v1186 = vpack.c.b16 %v1030, %v1026
    %v1187 = vpack.c.b16 %v1031, %v1027
    %v1188 = vpack.c.b16 %v1032, %v1028
    %v1189 = vpack.c.b16 %v1037, %v1033
    %v1190 = vpack.c.b16 %v1038, %v1034
    %v1191 = vpack.c.b16 %v1039, %v1035
    %v1192 = vpack.c.b16 %v1040, %v1036
    %v1193 = vpack.c.b16 %v1045, %v1041
    %v1194 = vpack.c.b16 %v1046, %v1042
    %v1195 = vpack.c.b16 %v1047, %v1043
    %v1196 = vpack.c.b16 %v1048, %v1044
    %v1197 = vpack.c.b16 %v1053, %v1049
    %v1198 = vpack.c.b16 %v1054, %v1050
    %v1199 = vpack.c.b16 %v1055, %v1051
    %v1200 = vpack.c.b16 %v1056, %v1052
    %v1201 = vpack.c.b16 %v1061, %v1057
    %v1202 = vpack.c.b16 %v1062, %v1058
    %v1203 = vpack.c.b16 %v1063, %v1059
    %v1204 = vpack.c.b16 %v1064, %v1060
    %v1205 = vpack.c.b16 %v1069, %v1065
    %v1206 = vpack.c.b16 %v1070, %v1066
    %v1207 = vpack.c.b16 %v1071, %v1067
    %v1208 = vpack.c.b16 %v1072, %v1068
    %v1209 = vpack.c.b16 %v1077, %v1073
    %v1210 = vpack.c.b16 %v1078, %v1074
    %v1211 = vpack.c.b16 %v1079, %v1075
    %v1212 = vpack.c.b16 %v1080, %v1076
    %v1213 = vpack.c.b16 %v1085, %v1081
    %v1214 = vpack.c.b16 %v1086, %v1082
    %v1215 = vpack.c.b16 %v1087, %v1083
    %v1216 = vpack.c.b16 %v1088, %v1084
    %1345 = vmatprep.subr.bf16.mxu0 %v1118
    %1346 = vmatpush1.bf16.msra.mxu0 %v1117
    %1347 = vmatprep.subr.bf16.mxu0 %v1114
    %1348 = vmatpush1.bf16.msra.mxu0 %v1113
    %1349 = vmatprep.subr.bf16.mxu0 %v1110
    %1350 = vmatpush1.bf16.msra.mxu0 %v1109
    %1351 = vmatprep.subr.bf16.mxu0 %v1106
    %1352 = vmatpush1.bf16.msra.mxu0 %v1105
    %1353 = vmatprep.subr.bf16.mxu0 %v1102
    %1354 = vmatpush1.bf16.msra.mxu0 %v1101
    %1355 = vmatprep.subr.bf16.mxu0 %v1098
    %1356 = vmatpush1.bf16.msra.mxu0 %v1097
    %1357 = vmatprep.subr.bf16.mxu0 %v1094
    %1358 = vmatpush1.bf16.msra.mxu0 %v1093
    %1359 = vmatprep.subr.bf16.mxu0 %v1090
    %1360 = vmatpush1.bf16.msra.mxu0 %v1089
    %1361 = vmatprep.subr.bf16.mxu0 %v1150
    %1362 = vmatpush2.bf16.msra.mxu0 %v1149
    %1363 = vmatprep.subr.bf16.mxu0 %v1146
    %1364 = vmatpush2.bf16.msra.mxu0 %v1145
    %1365 = vmatprep.subr.bf16.mxu0 %v1142
    %1366 = vmatpush2.bf16.msra.mxu0 %v1141
    %1367 = vmatprep.subr.bf16.mxu0 %v1138
    %1368 = vmatpush2.bf16.msra.mxu0 %v1137
    %1369 = vmatprep.subr.bf16.mxu0 %v1134
    %1370 = vmatpush2.bf16.msra.mxu0 %v1133
    %1371 = vmatprep.subr.bf16.mxu0 %v1130
    %1372 = vmatpush2.bf16.msra.mxu0 %v1129
    %1373 = vmatprep.subr.bf16.mxu0 %v1126
    %1374 = vmatpush2.bf16.msra.mxu0 %v1125
    %1375 = vmatprep.subr.bf16.mxu0 %v1122
    %1376 = vmatpush2.bf16.msra.mxu0 %v1121
    %1377 = vmatprep.mubr.bf16.mxu0 %v571
    %1378 = vmatmul.mubr.bf16.gmra.mxu0 %v570
    %v1379 = vpop.f32.mrf.mxu0
    %v1380 = vadd.f32 0.0, %v1379
    %v1381 = vpop.f32.mrf.mxu0
    %v1382 = vadd.f32 0.0, %v1381
    %v1383 = vpop.f32.mrf.mxu0
    %v1384 = vpop.f32.mrf.mxu0
    %1385 = vdwg.mxu0
    %1386 = vmatprep.subr.bf16.mxu0 %v1182
    %1387 = vmatpush1.bf16.msra.mxu0 %v1181
    %1388 = vmatprep.subr.bf16.mxu0 %v1178
    %1389 = vmatpush1.bf16.msra.mxu0 %v1177
    %1390 = vmatprep.subr.bf16.mxu0 %v1174
    %1391 = vmatpush1.bf16.msra.mxu0 %v1173
    %1392 = vmatprep.subr.bf16.mxu0 %v1170
    %1393 = vmatpush1.bf16.msra.mxu0 %v1169
    %1394 = vmatprep.subr.bf16.mxu0 %v1166
    %1395 = vmatpush1.bf16.msra.mxu0 %v1165
    %1396 = vmatprep.subr.bf16.mxu0 %v1162
    %1397 = vmatpush1.bf16.msra.mxu0 %v1161
    %1398 = vmatprep.subr.bf16.mxu0 %v1158
    %1399 = vmatpush1.bf16.msra.mxu0 %v1157
    %1400 = vmatprep.subr.bf16.mxu0 %v1154
    %1401 = vmatpush1.bf16.msra.mxu0 %v1153
    %1402 = vmatprep.subr.bf16.mxu0 %v1214
    %1403 = vmatpush2.bf16.msra.mxu0 %v1213
    %1404 = vmatprep.subr.bf16.mxu0 %v1210
    %1405 = vmatpush2.bf16.msra.mxu0 %v1209
    %1406 = vmatprep.subr.bf16.mxu0 %v1206
    %1407 = vmatpush2.bf16.msra.mxu0 %v1205
    %1408 = vmatprep.subr.bf16.mxu0 %v1202
    %1409 = vmatpush2.bf16.msra.mxu0 %v1201
    %1410 = vmatprep.subr.bf16.mxu0 %v1198
    %1411 = vmatpush2.bf16.msra.mxu0 %v1197
    %1412 = vmatprep.subr.bf16.mxu0 %v1194
    %1413 = vmatpush2.bf16.msra.mxu0 %v1193
    %1414 = vmatprep.subr.bf16.mxu0 %v1190
    %1415 = vmatpush2.bf16.msra.mxu0 %v1189
    %1416 = vmatprep.subr.bf16.mxu0 %v1186
    %1417 = vmatpush2.bf16.msra.mxu0 %v1185
    %1418 = vmatprep.mubr.bf16.mxu0 %v573
    %1419 = vmatmul.mubr.bf16.gmra.mxu0 %v572
    %v1420 = vpop.f32.mrf.mxu0
    %v1421 = vadd.f32 %v1380, %v1420
    %v1422 = vpop.f32.mrf.mxu0
    %v1423 = vadd.f32 %v1382, %v1422
    %v1424 = vpop.f32.mrf.mxu0
    %v1425 = vpop.f32.mrf.mxu0
    %1426 = vdwg.mxu0
    %1427 = vmatprep.subr.bf16.mxu0 %v1120
    %1428 = vmatpush1.bf16.msra.mxu0 %v1119
    %1429 = vmatprep.subr.bf16.mxu0 %v1116
    %1430 = vmatpush1.bf16.msra.mxu0 %v1115
    %1431 = vmatprep.subr.bf16.mxu0 %v1112
    %1432 = vmatpush1.bf16.msra.mxu0 %v1111
    %1433 = vmatprep.subr.bf16.mxu0 %v1108
    %1434 = vmatpush1.bf16.msra.mxu0 %v1107
    %1435 = vmatprep.subr.bf16.mxu0 %v1104
    %1436 = vmatpush1.bf16.msra.mxu0 %v1103
    %1437 = vmatprep.subr.bf16.mxu0 %v1100
    %1438 = vmatpush1.bf16.msra.mxu0 %v1099
    %1439 = vmatprep.subr.bf16.mxu0 %v1096
    %1440 = vmatpush1.bf16.msra.mxu0 %v1095
    %1441 = vmatprep.subr.bf16.mxu0 %v1092
    %1442 = vmatpush1.bf16.msra.mxu0 %v1091
    %1443 = vmatprep.subr.bf16.mxu0 %v1152
    %1444 = vmatpush2.bf16.msra.mxu0 %v1151
    %1445 = vmatprep.subr.bf16.mxu0 %v1148
    %1446 = vmatpush2.bf16.msra.mxu0 %v1147
    %1447 = vmatprep.subr.bf16.mxu0 %v1144
    %1448 = vmatpush2.bf16.msra.mxu0 %v1143
    %1449 = vmatprep.subr.bf16.mxu0 %v1140
    %1450 = vmatpush2.bf16.msra.mxu0 %v1139
    %1451 = vmatprep.subr.bf16.mxu0 %v1136
    %1452 = vmatpush2.bf16.msra.mxu0 %v1135
    %1453 = vmatprep.subr.bf16.mxu0 %v1132
    %1454 = vmatpush2.bf16.msra.mxu0 %v1131
    %1455 = vmatprep.subr.bf16.mxu0 %v1128
    %1456 = vmatpush2.bf16.msra.mxu0 %v1127
    %1457 = vmatprep.subr.bf16.mxu0 %v1124
    %1458 = vmatpush2.bf16.msra.mxu0 %v1123
    %1459 = vmatprep.mubr.bf16.mxu0 %v571
    %1460 = vmatmul.mubr.bf16.gmra.mxu0 %v570
    %v1461 = vpop.f32.mrf.mxu0
    %v1462 = vadd.f32 0.0, %v1461
    %v1463 = vpop.f32.mrf.mxu0
    %v1464 = vadd.f32 0.0, %v1463
    %v1465 = vpop.f32.mrf.mxu0
    %v1466 = vpop.f32.mrf.mxu0
    %1467 = vdwg.mxu0
    %1468 = vmatprep.subr.bf16.mxu0 %v1184
    %1469 = vmatpush1.bf16.msra.mxu0 %v1183
    %1470 = vmatprep.subr.bf16.mxu0 %v1180
    %1471 = vmatpush1.bf16.msra.mxu0 %v1179
    %1472 = vmatprep.subr.bf16.mxu0 %v1176
    %1473 = vmatpush1.bf16.msra.mxu0 %v1175
    %1474 = vmatprep.subr.bf16.mxu0 %v1172
    %1475 = vmatpush1.bf16.msra.mxu0 %v1171
    %1476 = vmatprep.subr.bf16.mxu0 %v1168
    %1477 = vmatpush1.bf16.msra.mxu0 %v1167
    %1478 = vmatprep.subr.bf16.mxu0 %v1164
    %1479 = vmatpush1.bf16.msra.mxu0 %v1163
    %1480 = vmatprep.subr.bf16.mxu0 %v1160
    %1481 = vmatpush1.bf16.msra.mxu0 %v1159
    %1482 = vmatprep.subr.bf16.mxu0 %v1156
    %1483 = vmatpush1.bf16.msra.mxu0 %v1155
    %1484 = vmatprep.subr.bf16.mxu0 %v1216
    %1485 = vmatpush2.bf16.msra.mxu0 %v1215
    %1486 = vmatprep.subr.bf16.mxu0 %v1212
    %1487 = vmatpush2.bf16.msra.mxu0 %v1211
    %1488 = vmatprep.subr.bf16.mxu0 %v1208
    %1489 = vmatpush2.bf16.msra.mxu0 %v1207
    %1490 = vmatprep.subr.bf16.mxu0 %v1204
    %1491 = vmatpush2.bf16.msra.mxu0 %v1203
    %1492 = vmatprep.subr.bf16.mxu0 %v1200
    %1493 = vmatpush2.bf16.msra.mxu0 %v1199
    %1494 = vmatprep.subr.bf16.mxu0 %v1196
    %1495 = vmatpush2.bf16.msra.mxu0 %v1195
    %1496 = vmatprep.subr.bf16.mxu0 %v1192
    %1497 = vmatpush2.bf16.msra.mxu0 %v1191
    %1498 = vmatprep.subr.bf16.mxu0 %v1188
    %1499 = vmatpush2.bf16.msra.mxu0 %v1187
    %1500 = vmatprep.mubr.bf16.mxu0 %v573
    %1501 = vmatmul.mubr.bf16.gmra.mxu0 %v572
    %v1502 = vpop.f32.mrf.mxu0
    %v1503 = vadd.f32 %v1462, %v1502
    %v1504 = vpop.f32.mrf.mxu0
    %v1505 = vadd.f32 %v1464, %v1504
    %v1506 = vpop.f32.mrf.mxu0
    %v1507 = vpop.f32.mrf.mxu0
    %1508 = vdwg.mxu0
    %v1637 = vunpack.c.l.b16 %v284
    %v1638 = vunpack.c.h.b16 %v284
    %v1639 = vunpack.c.l.b16 %v285
    %v1640 = vunpack.c.h.b16 %v285
    %v1641 = vunpack.c.l.b16 %v286
    %v1642 = vunpack.c.h.b16 %v286
    %v1643 = vunpack.c.l.b16 %v287
    %v1644 = vunpack.c.h.b16 %v287
    %v1645 = vunpack.c.l.b16 %v288
    %v1646 = vunpack.c.h.b16 %v288
    %v1647 = vunpack.c.l.b16 %v289
    %v1648 = vunpack.c.h.b16 %v289
    %v1649 = vunpack.c.l.b16 %v290
    %v1650 = vunpack.c.h.b16 %v290
    %v1651 = vunpack.c.l.b16 %v291
    %v1652 = vunpack.c.h.b16 %v291
    %v1653 = vunpack.c.l.b16 %v292
    %v1654 = vunpack.c.h.b16 %v292
    %v1655 = vunpack.c.l.b16 %v293
    %v1656 = vunpack.c.h.b16 %v293
    %v1657 = vunpack.c.l.b16 %v294
    %v1658 = vunpack.c.h.b16 %v294
    %v1659 = vunpack.c.l.b16 %v295
    %v1660 = vunpack.c.h.b16 %v295
    %v1661 = vunpack.c.l.b16 %v296
    %v1662 = vunpack.c.h.b16 %v296
    %v1663 = vunpack.c.l.b16 %v297
    %v1664 = vunpack.c.h.b16 %v297
    %v1665 = vunpack.c.l.b16 %v298
    %v1666 = vunpack.c.h.b16 %v298
    %v1667 = vunpack.c.l.b16 %v299
    %v1668 = vunpack.c.h.b16 %v299
    %v1669 = vunpack.c.l.b16 %v300
    %v1670 = vunpack.c.h.b16 %v300
    %v1671 = vunpack.c.l.b16 %v301
    %v1672 = vunpack.c.h.b16 %v301
    %v1673 = vunpack.c.l.b16 %v302
    %v1674 = vunpack.c.h.b16 %v302
    %v1675 = vunpack.c.l.b16 %v303
    %v1676 = vunpack.c.h.b16 %v303
    %v1677 = vunpack.c.l.b16 %v304
    %v1678 = vunpack.c.h.b16 %v304
    %v1679 = vunpack.c.l.b16 %v305
    %v1680 = vunpack.c.h.b16 %v305
    %v1681 = vunpack.c.l.b16 %v306
    %v1682 = vunpack.c.h.b16 %v306
    %v1683 = vunpack.c.l.b16 %v307
    %v1684 = vunpack.c.h.b16 %v307
    %v1685 = vunpack.c.l.b16 %v308
    %v1686 = vunpack.c.h.b16 %v308
    %v1687 = vunpack.c.l.b16 %v309
    %v1688 = vunpack.c.h.b16 %v309
    %v1689 = vunpack.c.l.b16 %v310
    %v1690 = vunpack.c.h.b16 %v310
    %v1691 = vunpack.c.l.b16 %v311
    %v1692 = vunpack.c.h.b16 %v311
    %v1693 = vunpack.c.l.b16 %v312
    %v1694 = vunpack.c.h.b16 %v312
    %v1695 = vunpack.c.l.b16 %v313
    %v1696 = vunpack.c.h.b16 %v313
    %v1697 = vunpack.c.l.b16 %v314
    %v1698 = vunpack.c.h.b16 %v314
    %v1699 = vunpack.c.l.b16 %v315
    %v1700 = vunpack.c.h.b16 %v315
    %v1701 = vunpack.c.l.b16 %v316
    %v1702 = vunpack.c.h.b16 %v316
    %v1703 = vunpack.c.l.b16 %v317
    %v1704 = vunpack.c.h.b16 %v317
    %v1705 = vunpack.c.l.b16 %v318
    %v1706 = vunpack.c.h.b16 %v318
    %v1707 = vunpack.c.l.b16 %v319
    %v1708 = vunpack.c.h.b16 %v319
    %v1709 = vunpack.c.l.b16 %v320
    %v1710 = vunpack.c.h.b16 %v320
    %v1711 = vunpack.c.l.b16 %v321
    %v1712 = vunpack.c.h.b16 %v321
    %v1713 = vunpack.c.l.b16 %v322
    %v1714 = vunpack.c.h.b16 %v322
    %v1715 = vunpack.c.l.b16 %v323
    %v1716 = vunpack.c.h.b16 %v323
    %v1717 = vunpack.c.l.b16 %v324
    %v1718 = vunpack.c.h.b16 %v324
    %v1719 = vunpack.c.l.b16 %v325
    %v1720 = vunpack.c.h.b16 %v325
    %v1721 = vunpack.c.l.b16 %v326
    %v1722 = vunpack.c.h.b16 %v326
    %v1723 = vunpack.c.l.b16 %v327
    %v1724 = vunpack.c.h.b16 %v327
    %v1725 = vunpack.c.l.b16 %v328
    %v1726 = vunpack.c.h.b16 %v328
    %v1727 = vunpack.c.l.b16 %v329
    %v1728 = vunpack.c.h.b16 %v329
    %v1729 = vunpack.c.l.b16 %v330
    %v1730 = vunpack.c.h.b16 %v330
    %v1731 = vunpack.c.l.b16 %v331
    %v1732 = vunpack.c.h.b16 %v331
    %v1733 = vunpack.c.l.b16 %v332
    %v1734 = vunpack.c.h.b16 %v332
    %v1735 = vunpack.c.l.b16 %v333
    %v1736 = vunpack.c.h.b16 %v333
    %v1737 = vunpack.c.l.b16 %v334
    %v1738 = vunpack.c.h.b16 %v334
    %v1739 = vunpack.c.l.b16 %v335
    %v1740 = vunpack.c.h.b16 %v335
    %v1741 = vunpack.c.l.b16 %v336
    %v1742 = vunpack.c.h.b16 %v336
    %v1743 = vunpack.c.l.b16 %v337
    %v1744 = vunpack.c.h.b16 %v337
    %v1745 = vunpack.c.l.b16 %v338
    %v1746 = vunpack.c.h.b16 %v338
    %v1747 = vunpack.c.l.b16 %v339
    %v1748 = vunpack.c.h.b16 %v339
    %v1749 = vunpack.c.l.b16 %v340
    %v1750 = vunpack.c.h.b16 %v340
    %v1751 = vunpack.c.l.b16 %v341
    %v1752 = vunpack.c.h.b16 %v341
    %v1753 = vunpack.c.l.b16 %v342
    %v1754 = vunpack.c.h.b16 %v342
    %v1755 = vunpack.c.l.b16 %v343
    %v1756 = vunpack.c.h.b16 %v343
    %v1757 = vunpack.c.l.b16 %v344
    %v1758 = vunpack.c.h.b16 %v344
    %v1759 = vunpack.c.l.b16 %v345
    %v1760 = vunpack.c.h.b16 %v345
    %v1761 = vunpack.c.l.b16 %v346
    %v1762 = vunpack.c.h.b16 %v346
    %v1763 = vunpack.c.l.b16 %v347
    %v1764 = vunpack.c.h.b16 %v347
    %v1765 = vunpack.c.l.b16 %v348
    %v1766 = vunpack.c.h.b16 %v348
    %v1767 = vunpack.c.l.b16 %v349
    %v1768 = vunpack.c.h.b16 %v349
    %v1769 = vunpack.c.l.b16 %v350
    %v1770 = vunpack.c.h.b16 %v350
    %v1771 = vunpack.c.l.b16 %v351
    %v1772 = vunpack.c.h.b16 %v351
    %v1773 = vunpack.c.l.b16 %v352
    %v1774 = vunpack.c.h.b16 %v352
    %v1775 = vunpack.c.l.b16 %v353
    %v1776 = vunpack.c.h.b16 %v353
    %v1777 = vunpack.c.l.b16 %v354
    %v1778 = vunpack.c.h.b16 %v354
    %v1779 = vunpack.c.l.b16 %v355
    %v1780 = vunpack.c.h.b16 %v355
    %v1781 = vunpack.c.l.b16 %v356
    %v1782 = vunpack.c.h.b16 %v356
    %v1783 = vunpack.c.l.b16 %v357
    %v1784 = vunpack.c.h.b16 %v357
    %v1785 = vunpack.c.l.b16 %v358
    %v1786 = vunpack.c.h.b16 %v358
    %v1787 = vunpack.c.l.b16 %v359
    %v1788 = vunpack.c.h.b16 %v359
    %v1789 = vunpack.c.l.b16 %v360
    %v1790 = vunpack.c.h.b16 %v360
    %v1791 = vunpack.c.l.b16 %v361
    %v1792 = vunpack.c.h.b16 %v361
    %v1793 = vunpack.c.l.b16 %v362
    %v1794 = vunpack.c.h.b16 %v362
    %v1795 = vunpack.c.l.b16 %v363
    %v1796 = vunpack.c.h.b16 %v363
    %v1797 = vunpack.c.l.b16 %v364
    %v1798 = vunpack.c.h.b16 %v364
    %v1799 = vunpack.c.l.b16 %v365
    %v1800 = vunpack.c.h.b16 %v365
    %v1801 = vunpack.c.l.b16 %v366
    %v1802 = vunpack.c.h.b16 %v366
    %v1803 = vunpack.c.l.b16 %v367
    %v1804 = vunpack.c.h.b16 %v367
    %v1805 = vunpack.c.l.b16 %v368
    %v1806 = vunpack.c.h.b16 %v368
    %v1807 = vunpack.c.l.b16 %v369
    %v1808 = vunpack.c.h.b16 %v369
    %v1809 = vunpack.c.l.b16 %v370
    %v1810 = vunpack.c.h.b16 %v370
    %v1811 = vunpack.c.l.b16 %v371
    %v1812 = vunpack.c.h.b16 %v371
    %v1813 = vunpack.c.l.b16 %v372
    %v1814 = vunpack.c.h.b16 %v372
    %v1815 = vunpack.c.l.b16 %v373
    %v1816 = vunpack.c.h.b16 %v373
    %v1817 = vunpack.c.l.b16 %v374
    %v1818 = vunpack.c.h.b16 %v374
    %v1819 = vunpack.c.l.b16 %v375
    %v1820 = vunpack.c.h.b16 %v375
    %v1821 = vunpack.c.l.b16 %v376
    %v1822 = vunpack.c.h.b16 %v376
    %v1823 = vunpack.c.l.b16 %v377
    %v1824 = vunpack.c.h.b16 %v377
    %v1825 = vunpack.c.l.b16 %v378
    %v1826 = vunpack.c.h.b16 %v378
    %v1827 = vunpack.c.l.b16 %v379
    %v1828 = vunpack.c.h.b16 %v379
    %v1829 = vunpack.c.l.b16 %v380
    %v1830 = vunpack.c.h.b16 %v380
    %v1831 = vunpack.c.l.b16 %v381
    %v1832 = vunpack.c.h.b16 %v381
    %v1833 = vunpack.c.l.b16 %v382
    %v1834 = vunpack.c.h.b16 %v382
    %v1835 = vunpack.c.l.b16 %v383
    %v1836 = vunpack.c.h.b16 %v383
    %v1837 = vunpack.c.l.b16 %v384
    %v1838 = vunpack.c.h.b16 %v384
    %v1839 = vunpack.c.l.b16 %v385
    %v1840 = vunpack.c.h.b16 %v385
    %v1841 = vunpack.c.l.b16 %v386
    %v1842 = vunpack.c.h.b16 %v386
    %v1843 = vunpack.c.l.b16 %v387
    %v1844 = vunpack.c.h.b16 %v387
    %v1845 = vunpack.c.l.b16 %v388
    %v1846 = vunpack.c.h.b16 %v388
    %v1847 = vunpack.c.l.b16 %v389
    %v1848 = vunpack.c.h.b16 %v389
    %v1849 = vunpack.c.l.b16 %v390
    %v1850 = vunpack.c.h.b16 %v390
    %v1851 = vunpack.c.l.b16 %v391
    %v1852 = vunpack.c.h.b16 %v391
    %v1853 = vunpack.c.l.b16 %v392
    %v1854 = vunpack.c.h.b16 %v392
    %v1855 = vunpack.c.l.b16 %v393
    %v1856 = vunpack.c.h.b16 %v393
    %v1857 = vunpack.c.l.b16 %v394
    %v1858 = vunpack.c.h.b16 %v394
    %v1859 = vunpack.c.l.b16 %v395
    %v1860 = vunpack.c.h.b16 %v395
    %v1861 = vunpack.c.l.b16 %v396
    %v1862 = vunpack.c.h.b16 %v396
    %v1863 = vunpack.c.l.b16 %v397
    %v1864 = vunpack.c.h.b16 %v397
    %v1865 = vunpack.c.l.b16 %v398
    %v1866 = vunpack.c.h.b16 %v398
    %v1867 = vunpack.c.l.b16 %v399
    %v1868 = vunpack.c.h.b16 %v399
    %v1869 = vunpack.c.l.b16 %v400
    %v1870 = vunpack.c.h.b16 %v400
    %v1871 = vunpack.c.l.b16 %v401
    %v1872 = vunpack.c.h.b16 %v401
    %v1873 = vunpack.c.l.b16 %v402
    %v1874 = vunpack.c.h.b16 %v402
    %v1875 = vunpack.c.l.b16 %v403
    %v1876 = vunpack.c.h.b16 %v403
    %v1877 = vunpack.c.l.b16 %v404
    %v1878 = vunpack.c.h.b16 %v404
    %v1879 = vunpack.c.l.b16 %v405
    %v1880 = vunpack.c.h.b16 %v405
    %v1881 = vunpack.c.l.b16 %v406
    %v1882 = vunpack.c.h.b16 %v406
    %v1883 = vunpack.c.l.b16 %v407
    %v1884 = vunpack.c.h.b16 %v407
    %v1885 = vunpack.c.l.b16 %v408
    %v1886 = vunpack.c.h.b16 %v408
    %v1887 = vunpack.c.l.b16 %v409
    %v1888 = vunpack.c.h.b16 %v409
    %v1889 = vunpack.c.l.b16 %v410
    %v1890 = vunpack.c.h.b16 %v410
    %v1891 = vunpack.c.l.b16 %v411
    %v1892 = vunpack.c.h.b16 %v411
    %v1893 = vpack.c.b16 %v1641, %v1637
    %v1894 = vpack.c.b16 %v1642, %v1638
    %v1895 = vpack.c.b16 %v1643, %v1639
    %v1896 = vpack.c.b16 %v1644, %v1640
    %v1897 = vpack.c.b16 %v1649, %v1645
    %v1898 = vpack.c.b16 %v1650, %v1646
    %v1899 = vpack.c.b16 %v1651, %v1647
    %v1900 = vpack.c.b16 %v1652, %v1648
    %v1901 = vpack.c.b16 %v1657, %v1653
    %v1902 = vpack.c.b16 %v1658, %v1654
    %v1903 = vpack.c.b16 %v1659, %v1655
    %v1904 = vpack.c.b16 %v1660, %v1656
    %v1905 = vpack.c.b16 %v1665, %v1661
    %v1906 = vpack.c.b16 %v1666, %v1662
    %v1907 = vpack.c.b16 %v1667, %v1663
    %v1908 = vpack.c.b16 %v1668, %v1664
    %v1909 = vpack.c.b16 %v1673, %v1669
    %v1910 = vpack.c.b16 %v1674, %v1670
    %v1911 = vpack.c.b16 %v1675, %v1671
    %v1912 = vpack.c.b16 %v1676, %v1672
    %v1913 = vpack.c.b16 %v1681, %v1677
    %v1914 = vpack.c.b16 %v1682, %v1678
    %v1915 = vpack.c.b16 %v1683, %v1679
    %v1916 = vpack.c.b16 %v1684, %v1680
    %v1917 = vpack.c.b16 %v1689, %v1685
    %v1918 = vpack.c.b16 %v1690, %v1686
    %v1919 = vpack.c.b16 %v1691, %v1687
    %v1920 = vpack.c.b16 %v1692, %v1688
    %v1921 = vpack.c.b16 %v1697, %v1693
    %v1922 = vpack.c.b16 %v1698, %v1694
    %v1923 = vpack.c.b16 %v1699, %v1695
    %v1924 = vpack.c.b16 %v1700, %v1696
    %v1925 = vpack.c.b16 %v1705, %v1701
    %v1926 = vpack.c.b16 %v1706, %v1702
    %v1927 = vpack.c.b16 %v1707, %v1703
    %v1928 = vpack.c.b16 %v1708, %v1704
    %v1929 = vpack.c.b16 %v1713, %v1709
    %v1930 = vpack.c.b16 %v1714, %v1710
    %v1931 = vpack.c.b16 %v1715, %v1711
    %v1932 = vpack.c.b16 %v1716, %v1712
    %v1933 = vpack.c.b16 %v1721, %v1717
    %v1934 = vpack.c.b16 %v1722, %v1718
    %v1935 = vpack.c.b16 %v1723, %v1719
    %v1936 = vpack.c.b16 %v1724, %v1720
    %v1937 = vpack.c.b16 %v1729, %v1725
    %v1938 = vpack.c.b16 %v1730, %v1726
    %v1939 = vpack.c.b16 %v1731, %v1727
    %v1940 = vpack.c.b16 %v1732, %v1728
    %v1941 = vpack.c.b16 %v1737, %v1733
    %v1942 = vpack.c.b16 %v1738, %v1734
    %v1943 = vpack.c.b16 %v1739, %v1735
    %v1944 = vpack.c.b16 %v1740, %v1736
    %v1945 = vpack.c.b16 %v1745, %v1741
    %v1946 = vpack.c.b16 %v1746, %v1742
    %v1947 = vpack.c.b16 %v1747, %v1743
    %v1948 = vpack.c.b16 %v1748, %v1744
    %v1949 = vpack.c.b16 %v1753, %v1749
    %v1950 = vpack.c.b16 %v1754, %v1750
    %v1951 = vpack.c.b16 %v1755, %v1751
    %v1952 = vpack.c.b16 %v1756, %v1752
    %v1953 = vpack.c.b16 %v1761, %v1757
    %v1954 = vpack.c.b16 %v1762, %v1758
    %v1955 = vpack.c.b16 %v1763, %v1759
    %v1956 = vpack.c.b16 %v1764, %v1760
    %v1957 = vpack.c.b16 %v1769, %v1765
    %v1958 = vpack.c.b16 %v1770, %v1766
    %v1959 = vpack.c.b16 %v1771, %v1767
    %v1960 = vpack.c.b16 %v1772, %v1768
    %v1961 = vpack.c.b16 %v1777, %v1773
    %v1962 = vpack.c.b16 %v1778, %v1774
    %v1963 = vpack.c.b16 %v1779, %v1775
    %v1964 = vpack.c.b16 %v1780, %v1776
    %v1965 = vpack.c.b16 %v1785, %v1781
    %v1966 = vpack.c.b16 %v1786, %v1782
    %v1967 = vpack.c.b16 %v1787, %v1783
    %v1968 = vpack.c.b16 %v1788, %v1784
    %v1969 = vpack.c.b16 %v1793, %v1789
    %v1970 = vpack.c.b16 %v1794, %v1790
    %v1971 = vpack.c.b16 %v1795, %v1791
    %v1972 = vpack.c.b16 %v1796, %v1792
    %v1973 = vpack.c.b16 %v1801, %v1797
    %v1974 = vpack.c.b16 %v1802, %v1798
    %v1975 = vpack.c.b16 %v1803, %v1799
    %v1976 = vpack.c.b16 %v1804, %v1800
    %v1977 = vpack.c.b16 %v1809, %v1805
    %v1978 = vpack.c.b16 %v1810, %v1806
    %v1979 = vpack.c.b16 %v1811, %v1807
    %v1980 = vpack.c.b16 %v1812, %v1808
    %v1981 = vpack.c.b16 %v1817, %v1813
    %v1982 = vpack.c.b16 %v1818, %v1814
    %v1983 = vpack.c.b16 %v1819, %v1815
    %v1984 = vpack.c.b16 %v1820, %v1816
    %v1985 = vpack.c.b16 %v1825, %v1821
    %v1986 = vpack.c.b16 %v1826, %v1822
    %v1987 = vpack.c.b16 %v1827, %v1823
    %v1988 = vpack.c.b16 %v1828, %v1824
    %v1989 = vpack.c.b16 %v1833, %v1829
    %v1990 = vpack.c.b16 %v1834, %v1830
    %v1991 = vpack.c.b16 %v1835, %v1831
    %v1992 = vpack.c.b16 %v1836, %v1832
    %v1993 = vpack.c.b16 %v1841, %v1837
    %v1994 = vpack.c.b16 %v1842, %v1838
    %v1995 = vpack.c.b16 %v1843, %v1839
    %v1996 = vpack.c.b16 %v1844, %v1840
    %v1997 = vpack.c.b16 %v1849, %v1845
    %v1998 = vpack.c.b16 %v1850, %v1846
    %v1999 = vpack.c.b16 %v1851, %v1847
    %v2000 = vpack.c.b16 %v1852, %v1848
    %v2001 = vpack.c.b16 %v1857, %v1853
    %v2002 = vpack.c.b16 %v1858, %v1854
    %v2003 = vpack.c.b16 %v1859, %v1855
    %v2004 = vpack.c.b16 %v1860, %v1856
    %v2005 = vpack.c.b16 %v1865, %v1861
    %v2006 = vpack.c.b16 %v1866, %v1862
    %v2007 = vpack.c.b16 %v1867, %v1863
    %v2008 = vpack.c.b16 %v1868, %v1864
    %v2009 = vpack.c.b16 %v1873, %v1869
    %v2010 = vpack.c.b16 %v1874, %v1870
    %v2011 = vpack.c.b16 %v1875, %v1871
    %v2012 = vpack.c.b16 %v1876, %v1872
    %v2013 = vpack.c.b16 %v1881, %v1877
    %v2014 = vpack.c.b16 %v1882, %v1878
    %v2015 = vpack.c.b16 %v1883, %v1879
    %v2016 = vpack.c.b16 %v1884, %v1880
    %v2017 = vpack.c.b16 %v1889, %v1885
    %v2018 = vpack.c.b16 %v1890, %v1886
    %v2019 = vpack.c.b16 %v1891, %v1887
    %v2020 = vpack.c.b16 %v1892, %v1888
    %2149 = vmatprep.subr.bf16.mxu0 %v1922
    %2150 = vmatpush1.bf16.msra.mxu0 %v1921
    %2151 = vmatprep.subr.bf16.mxu0 %v1918
    %2152 = vmatpush1.bf16.msra.mxu0 %v1917
    %2153 = vmatprep.subr.bf16.mxu0 %v1914
    %2154 = vmatpush1.bf16.msra.mxu0 %v1913
    %2155 = vmatprep.subr.bf16.mxu0 %v1910
    %2156 = vmatpush1.bf16.msra.mxu0 %v1909
    %2157 = vmatprep.subr.bf16.mxu0 %v1906
    %2158 = vmatpush1.bf16.msra.mxu0 %v1905
    %2159 = vmatprep.subr.bf16.mxu0 %v1902
    %2160 = vmatpush1.bf16.msra.mxu0 %v1901
    %2161 = vmatprep.subr.bf16.mxu0 %v1898
    %2162 = vmatpush1.bf16.msra.mxu0 %v1897
    %2163 = vmatprep.subr.bf16.mxu0 %v1894
    %2164 = vmatpush1.bf16.msra.mxu0 %v1893
    %2165 = vmatprep.subr.bf16.mxu0 %v1954
    %2166 = vmatpush2.bf16.msra.mxu0 %v1953
    %2167 = vmatprep.subr.bf16.mxu0 %v1950
    %2168 = vmatpush2.bf16.msra.mxu0 %v1949
    %2169 = vmatprep.subr.bf16.mxu0 %v1946
    %2170 = vmatpush2.bf16.msra.mxu0 %v1945
    %2171 = vmatprep.subr.bf16.mxu0 %v1942
    %2172 = vmatpush2.bf16.msra.mxu0 %v1941
    %2173 = vmatprep.subr.bf16.mxu0 %v1938
    %2174 = vmatpush2.bf16.msra.mxu0 %v1937
    %2175 = vmatprep.subr.bf16.mxu0 %v1934
    %2176 = vmatpush2.bf16.msra.mxu0 %v1933
    %2177 = vmatprep.subr.bf16.mxu0 %v1930
    %2178 = vmatpush2.bf16.msra.mxu0 %v1929
    %2179 = vmatprep.subr.bf16.mxu0 %v1926
    %2180 = vmatpush2.bf16.msra.mxu0 %v1925
    %2181 = vmatprep.mubr.bf16.mxu0 %v278
    %2182 = vmatmul.mubr.bf16.gmra.mxu0 %v277
    %v2183 = vpop.f32.mrf.mxu0
    %v2184 = vadd.f32 %v1421, %v2183
    %v2185 = vpop.f32.mrf.mxu0
    %v2186 = vadd.f32 %v1423, %v2185
    %v2187 = vpop.f32.mrf.mxu0
    %v2188 = vpop.f32.mrf.mxu0
    %2189 = vdwg.mxu0
    %2190 = vmatprep.subr.bf16.mxu0 %v1986
    %2191 = vmatpush1.bf16.msra.mxu0 %v1985
    %2192 = vmatprep.subr.bf16.mxu0 %v1982
    %2193 = vmatpush1.bf16.msra.mxu0 %v1981
    %2194 = vmatprep.subr.bf16.mxu0 %v1978
    %2195 = vmatpush1.bf16.msra.mxu0 %v1977
    %2196 = vmatprep.subr.bf16.mxu0 %v1974
    %2197 = vmatpush1.bf16.msra.mxu0 %v1973
    %2198 = vmatprep.subr.bf16.mxu0 %v1970
    %2199 = vmatpush1.bf16.msra.mxu0 %v1969
    %2200 = vmatprep.subr.bf16.mxu0 %v1966
    %2201 = vmatpush1.bf16.msra.mxu0 %v1965
    %2202 = vmatprep.subr.bf16.mxu0 %v1962
    %2203 = vmatpush1.bf16.msra.mxu0 %v1961
    %2204 = vmatprep.subr.bf16.mxu0 %v1958
    %2205 = vmatpush1.bf16.msra.mxu0 %v1957
    %2206 = vmatprep.subr.bf16.mxu0 %v2018
    %2207 = vmatpush2.bf16.msra.mxu0 %v2017
    %2208 = vmatprep.subr.bf16.mxu0 %v2014
    %2209 = vmatpush2.bf16.msra.mxu0 %v2013
    %2210 = vmatprep.subr.bf16.mxu0 %v2010
    %2211 = vmatpush2.bf16.msra.mxu0 %v2009
    %2212 = vmatprep.subr.bf16.mxu0 %v2006
    %2213 = vmatpush2.bf16.msra.mxu0 %v2005
    %2214 = vmatprep.subr.bf16.mxu0 %v2002
    %2215 = vmatpush2.bf16.msra.mxu0 %v2001
    %2216 = vmatprep.subr.bf16.mxu0 %v1998
    %2217 = vmatpush2.bf16.msra.mxu0 %v1997
    %2218 = vmatprep.subr.bf16.mxu0 %v1994
    %2219 = vmatpush2.bf16.msra.mxu0 %v1993
    %2220 = vmatprep.subr.bf16.mxu0 %v1990
    %2221 = vmatpush2.bf16.msra.mxu0 %v1989
    %2222 = vmatprep.mubr.bf16.mxu0 %v280
    %2223 = vmatmul.mubr.bf16.gmra.mxu0 %v279
    %v2224 = vpop.f32.mrf.mxu0
    %v2225 = vadd.f32 %v2184, %v2224
    %v2226 = vpop.f32.mrf.mxu0
    %v2227 = vadd.f32 %v2186, %v2226
    %v2228 = vpop.f32.mrf.mxu0
    %v2229 = vpop.f32.mrf.mxu0
    %2230 = vdwg.mxu0
    %2231 = vmatprep.subr.bf16.mxu0 %v1924
    %2232 = vmatpush1.bf16.msra.mxu0 %v1923
    %2233 = vmatprep.subr.bf16.mxu0 %v1920
    %2234 = vmatpush1.bf16.msra.mxu0 %v1919
    %2235 = vmatprep.subr.bf16.mxu0 %v1916
    %2236 = vmatpush1.bf16.msra.mxu0 %v1915
    %2237 = vmatprep.subr.bf16.mxu0 %v1912
    %2238 = vmatpush1.bf16.msra.mxu0 %v1911
    %2239 = vmatprep.subr.bf16.mxu0 %v1908
    %2240 = vmatpush1.bf16.msra.mxu0 %v1907
    %2241 = vmatprep.subr.bf16.mxu0 %v1904
    %2242 = vmatpush1.bf16.msra.mxu0 %v1903
    %2243 = vmatprep.subr.bf16.mxu0 %v1900
    %2244 = vmatpush1.bf16.msra.mxu0 %v1899
    %2245 = vmatprep.subr.bf16.mxu0 %v1896
    %2246 = vmatpush1.bf16.msra.mxu0 %v1895
    %2247 = vmatprep.subr.bf16.mxu0 %v1956
    %2248 = vmatpush2.bf16.msra.mxu0 %v1955
    %2249 = vmatprep.subr.bf16.mxu0 %v1952
    %2250 = vmatpush2.bf16.msra.mxu0 %v1951
    %2251 = vmatprep.subr.bf16.mxu0 %v1948
    %2252 = vmatpush2.bf16.msra.mxu0 %v1947
    %2253 = vmatprep.subr.bf16.mxu0 %v1944
    %2254 = vmatpush2.bf16.msra.mxu0 %v1943
    %2255 = vmatprep.subr.bf16.mxu0 %v1940
    %2256 = vmatpush2.bf16.msra.mxu0 %v1939
    %2257 = vmatprep.subr.bf16.mxu0 %v1936
    %2258 = vmatpush2.bf16.msra.mxu0 %v1935
    %2259 = vmatprep.subr.bf16.mxu0 %v1932
    %2260 = vmatpush2.bf16.msra.mxu0 %v1931
    %2261 = vmatprep.subr.bf16.mxu0 %v1928
    %2262 = vmatpush2.bf16.msra.mxu0 %v1927
    %2263 = vmatprep.mubr.bf16.mxu0 %v278
    %2264 = vmatmul.mubr.bf16.gmra.mxu0 %v277
    %v2265 = vpop.f32.mrf.mxu0
    %v2266 = vadd.f32 %v1503, %v2265
    %v2267 = vpop.f32.mrf.mxu0
    %v2268 = vadd.f32 %v1505, %v2267
    %v2269 = vpop.f32.mrf.mxu0
    %v2270 = vpop.f32.mrf.mxu0
    %2271 = vdwg.mxu0
    %2272 = vmatprep.subr.bf16.mxu0 %v1988
    %2273 = vmatpush1.bf16.msra.mxu0 %v1987
    %2274 = vmatprep.subr.bf16.mxu0 %v1984
    %2275 = vmatpush1.bf16.msra.mxu0 %v1983
    %2276 = vmatprep.subr.bf16.mxu0 %v1980
    %2277 = vmatpush1.bf16.msra.mxu0 %v1979
    %2278 = vmatprep.subr.bf16.mxu0 %v1976
    %2279 = vmatpush1.bf16.msra.mxu0 %v1975
    %2280 = vmatprep.subr.bf16.mxu0 %v1972
    %2281 = vmatpush1.bf16.msra.mxu0 %v1971
    %2282 = vmatprep.subr.bf16.mxu0 %v1968
    %2283 = vmatpush1.bf16.msra.mxu0 %v1967
    %2284 = vmatprep.subr.bf16.mxu0 %v1964
    %2285 = vmatpush1.bf16.msra.mxu0 %v1963
    %2286 = vmatprep.subr.bf16.mxu0 %v1960
    %2287 = vmatpush1.bf16.msra.mxu0 %v1959
    %2288 = vmatprep.subr.bf16.mxu0 %v2020
    %2289 = vmatpush2.bf16.msra.mxu0 %v2019
    %2290 = vmatprep.subr.bf16.mxu0 %v2016
    %2291 = vmatpush2.bf16.msra.mxu0 %v2015
    %2292 = vmatprep.subr.bf16.mxu0 %v2012
    %2293 = vmatpush2.bf16.msra.mxu0 %v2011
    %2294 = vmatprep.subr.bf16.mxu0 %v2008
    %2295 = vmatpush2.bf16.msra.mxu0 %v2007
    %2296 = vmatprep.subr.bf16.mxu0 %v2004
    %2297 = vmatpush2.bf16.msra.mxu0 %v2003
    %2298 = vmatprep.subr.bf16.mxu0 %v2000
    %2299 = vmatpush2.bf16.msra.mxu0 %v1999
    %2300 = vmatprep.subr.bf16.mxu0 %v1996
    %2301 = vmatpush2.bf16.msra.mxu0 %v1995
    %2302 = vmatprep.subr.bf16.mxu0 %v1992
    %2303 = vmatpush2.bf16.msra.mxu0 %v1991
    %2304 = vmatprep.mubr.bf16.mxu0 %v280
    %2305 = vmatmul.mubr.bf16.gmra.mxu0 %v279
    %v2306 = vpop.f32.mrf.mxu0
    %v2307 = vadd.f32 %v2266, %v2306
    %v2308 = vpop.f32.mrf.mxu0
    %v2309 = vadd.f32 %v2268, %v2308
    %v2310 = vpop.f32.mrf.mxu0
    %v2311 = vpop.f32.mrf.mxu0
    %2312 = vdwg.mxu0
    %s2313 = scalar_lea.vmem [#allocation5], 32
    %v2314 = vld [vmem:[%s2313] sm:$0xff]
    %v2315 = vld [vmem:[%s2313 + $0x8] sm:$0xff]
    %v2316 = vld [vmem:[%s2313 + $0x40] sm:$0xff]
    %v2317 = vld [vmem:[%s2313 + $0x48] sm:$0xff]
    %v2318 = vld [vmem:[%s2313 + $0x80] sm:$0xff]
    %v2319 = vld [vmem:[%s2313 + $0x88] sm:$0xff]
    %v2320 = vld [vmem:[%s2313 + $0xc0] sm:$0xff]
    %v2321 = vld [vmem:[%s2313 + $0xc8] sm:$0xff]
    %s2322 = scalar_lea.vmem [#allocation7], 8
    %v2323 = vld [vmem:[%s2322] sm:$0xf]
    %v2325 = vlaneseq
    %v2326 = vshrl.u32 %v2325, 7
    %v2327 = vsub.s32 0, %v2326
    %v2328 = vrot.slane %v2323, %v2327
    %v2329 = vlaneseq
    %v2330 = vshrl.u32 %v2329, 7
    %v2331 = vsub.s32 1, %v2330
    %v2332 = vrot.slane %v2323, %v2331
    %v2333 = vlaneseq
    %v2334 = vshrl.u32 %v2333, 7
    %v2335 = vsub.s32 2, %v2334
    %v2336 = vrot.slane %v2323, %v2335
    %v2337 = vlaneseq
    %v2338 = vshrl.u32 %v2337, 7
    %v2339 = vsub.s32 3, %v2338
    %v2340 = vrot.slane %v2323, %v2339
    %v2353 = vunpack.c.l.b16 %v2314
    %v2354 = vunpack.c.h.b16 %v2314
    %v2355 = vunpack.c.l.b16 %v2315
    %v2356 = vunpack.c.h.b16 %v2315
    %v2357 = vunpack.c.l.b16 %v2316
    %v2358 = vunpack.c.h.b16 %v2316
    %v2359 = vunpack.c.l.b16 %v2317
    %v2360 = vunpack.c.h.b16 %v2317
    %v2361 = vunpack.c.l.b16 %v2318
    %v2362 = vunpack.c.h.b16 %v2318
    %v2363 = vunpack.c.l.b16 %v2319
    %v2364 = vunpack.c.h.b16 %v2319
    %v2365 = vunpack.c.l.b16 %v2320
    %v2366 = vunpack.c.h.b16 %v2320
    %v2367 = vunpack.c.l.b16 %v2321
    %v2368 = vunpack.c.h.b16 %v2321
    %v2369 = vpack.c.b16 %v2357, %v2353
    %v2370 = vpack.c.b16 %v2358, %v2354
    %v2371 = vpack.c.b16 %v2359, %v2355
    %v2372 = vpack.c.b16 %v2360, %v2356
    %v2373 = vpack.c.b16 %v2365, %v2361
    %v2374 = vpack.c.b16 %v2366, %v2362
    %v2375 = vpack.c.b16 %v2367, %v2363
    %v2376 = vpack.c.b16 %v2368, %v2364
    %2385 = vmatprep.subr.bf16.mxu0 0
    %2386 = vmatpush1.bf16.msra.mxu0 0
    %2387 = vmatprep.subr.bf16.mxu0 0
    %2388 = vmatpush1.bf16.msra.mxu0 0
    %2389 = vmatprep.subr.bf16.mxu0 0
    %2390 = vmatpush1.bf16.msra.mxu0 0
    %2391 = vmatprep.subr.bf16.mxu0 0
    %2392 = vmatpush1.bf16.msra.mxu0 0
    %2393 = vmatprep.subr.bf16.mxu0 0
    %2394 = vmatpush1.bf16.msra.mxu0 0
    %2395 = vmatprep.subr.bf16.mxu0 0
    %2396 = vmatpush1.bf16.msra.mxu0 0
    %2397 = vmatprep.subr.bf16.mxu0 %v2374
    %2398 = vmatpush1.bf16.msra.mxu0 %v2373
    %2399 = vmatprep.subr.bf16.mxu0 %v2370
    %2400 = vmatpush1.bf16.msra.mxu0 %v2369
    %2401 = vmatprep.subr.bf16.mxu0 0
    %2402 = vmatpush2.bf16.msra.mxu0 0
    %2403 = vmatprep.subr.bf16.mxu0 0
    %2404 = vmatpush2.bf16.msra.mxu0 0
    %2405 = vmatprep.subr.bf16.mxu0 0
    %2406 = vmatpush2.bf16.msra.mxu0 0
    %2407 = vmatprep.subr.bf16.mxu0 0
    %2408 = vmatpush2.bf16.msra.mxu0 0
    %2409 = vmatprep.subr.bf16.mxu0 0
    %2410 = vmatpush2.bf16.msra.mxu0 0
    %2411 = vmatprep.subr.bf16.mxu0 0
    %2412 = vmatpush2.bf16.msra.mxu0 0
    %2413 = vmatprep.subr.bf16.mxu0 0
    %2414 = vmatpush2.bf16.msra.mxu0 0
    %2415 = vmatprep.subr.bf16.mxu0 0
    %2416 = vmatpush2.bf16.msra.mxu0 0
    %2417 = vmatprep.mubr.bf16.mxu0 0
    %2418 = vmatmul.mubr.bf16.gmra.mxu0 %v189
    %v2419 = vpop.f32.mrf.mxu0
    %v2420 = vadd.f32 %v2328, %v2419
    %v2421 = vpop.f32.mrf.mxu0
    %v2422 = vadd.f32 %v2332, %v2421
    %v2423 = vpop.f32.mrf.mxu0
    %v2424 = vpop.f32.mrf.mxu0
    %2425 = vdwg.mxu0
    %2426 = vmatprep.subr.bf16.mxu0 0
    %2427 = vmatpush1.bf16.msra.mxu0 0
    %2428 = vmatprep.subr.bf16.mxu0 0
    %2429 = vmatpush1.bf16.msra.mxu0 0
    %2430 = vmatprep.subr.bf16.mxu0 0
    %2431 = vmatpush1.bf16.msra.mxu0 0
    %2432 = vmatprep.subr.bf16.mxu0 0
    %2433 = vmatpush1.bf16.msra.mxu0 0
    %2434 = vmatprep.subr.bf16.mxu0 0
    %2435 = vmatpush1.bf16.msra.mxu0 0
    %2436 = vmatprep.subr.bf16.mxu0 0
    %2437 = vmatpush1.bf16.msra.mxu0 0
    %2438 = vmatprep.subr.bf16.mxu0 %v2376
    %2439 = vmatpush1.bf16.msra.mxu0 %v2375
    %2440 = vmatprep.subr.bf16.mxu0 %v2372
    %2441 = vmatpush1.bf16.msra.mxu0 %v2371
    %2442 = vmatprep.subr.bf16.mxu0 0
    %2443 = vmatpush2.bf16.msra.mxu0 0
    %2444 = vmatprep.subr.bf16.mxu0 0
    %2445 = vmatpush2.bf16.msra.mxu0 0
    %2446 = vmatprep.subr.bf16.mxu0 0
    %2447 = vmatpush2.bf16.msra.mxu0 0
    %2448 = vmatprep.subr.bf16.mxu0 0
    %2449 = vmatpush2.bf16.msra.mxu0 0
    %2450 = vmatprep.subr.bf16.mxu0 0
    %2451 = vmatpush2.bf16.msra.mxu0 0
    %2452 = vmatprep.subr.bf16.mxu0 0
    %2453 = vmatpush2.bf16.msra.mxu0 0
    %2454 = vmatprep.subr.bf16.mxu0 0
    %2455 = vmatpush2.bf16.msra.mxu0 0
    %2456 = vmatprep.subr.bf16.mxu0 0
    %2457 = vmatpush2.bf16.msra.mxu0 0
    %2458 = vmatprep.mubr.bf16.mxu0 0
    %2459 = vmatmul.mubr.bf16.gmra.mxu0 %v189
    %v2460 = vpop.f32.mrf.mxu0
    %v2461 = vadd.f32 %v2336, %v2460
    %v2462 = vpop.f32.mrf.mxu0
    %v2463 = vadd.f32 %v2340, %v2462
    %v2464 = vpop.f32.mrf.mxu0
    %v2465 = vpop.f32.mrf.mxu0
    %2466 = vdwg.mxu0
    %v2467 = vmax.f32 %v2420, 0.0
    %v2468 = vmax.f32 %v2422, 0.0
    %v2469 = vmax.f32 %v2461, 0.0
    %v2470 = vmax.f32 %v2463, 0.0
    %v2471 = vpack.c.bf16 %v2467, %v2467
    %v2472 = vpack.c.bf16 %v2468, %v2468
    %v2473 = vpack.c.bf16 %v2469, %v2469
    %v2474 = vpack.c.bf16 %v2470, %v2470
    %s2475 = smul.u32 128, 4
    %s2476 = smul.addr %s2475, 4
    %s2477 = scalar_lea.vmem [#allocation8], %s2476
    %v2478 = vld [vmem:[%s2477] sm:$0xff]
    %v2479 = vld [vmem:[%s2477 + $0x8] sm:$0xff]
    %v2480 = vld [vmem:[%s2477 + $0x10] sm:$0xff]
    %v2481 = vld [vmem:[%s2477 + $0x18] sm:$0xff]
    %v2482 = vld [vmem:[%s2477 + $0x20] sm:$0xff]
    %v2483 = vld [vmem:[%s2477 + $0x28] sm:$0xff]
    %v2484 = vld [vmem:[%s2477 + $0x30] sm:$0xff]
    %v2485 = vld [vmem:[%s2477 + $0x38] sm:$0xff]
    %v2486 = vld [vmem:[%s2477 + $0x40] sm:$0xff]
    %v2487 = vld [vmem:[%s2477 + $0x48] sm:$0xff]
    %v2488 = vld [vmem:[%s2477 + $0x50] sm:$0xff]
    %v2489 = vld [vmem:[%s2477 + $0x58] sm:$0xff]
    %v2490 = vld [vmem:[%s2477 + $0x60] sm:$0xff]
    %v2491 = vld [vmem:[%s2477 + $0x68] sm:$0xff]
    %v2492 = vld [vmem:[%s2477 + $0x70] sm:$0xff]
    %v2493 = vld [vmem:[%s2477 + $0x78] sm:$0xff]
    %v2494 = vld [vmem:[%s2477 + $0x80] sm:$0xff]
    %v2495 = vld [vmem:[%s2477 + $0x88] sm:$0xff]
    %v2496 = vld [vmem:[%s2477 + $0x90] sm:$0xff]
    %v2497 = vld [vmem:[%s2477 + $0x98] sm:$0xff]
    %v2498 = vld [vmem:[%s2477 + $0xa0] sm:$0xff]
    %v2499 = vld [vmem:[%s2477 + $0xa8] sm:$0xff]
    %v2500 = vld [vmem:[%s2477 + $0xb0] sm:$0xff]
    %v2501 = vld [vmem:[%s2477 + $0xb8] sm:$0xff]
    %v2502 = vld [vmem:[%s2477 + $0xc0] sm:$0xff]
    %v2503 = vld [vmem:[%s2477 + $0xc8] sm:$0xff]
    %v2504 = vld [vmem:[%s2477 + $0xd0] sm:$0xff]
    %v2505 = vld [vmem:[%s2477 + $0xd8] sm:$0xff]
    %v2506 = vld [vmem:[%s2477 + $0xe0] sm:$0xff]
    %v2507 = vld [vmem:[%s2477 + $0xe8] sm:$0xff]
    %v2508 = vld [vmem:[%s2477 + $0xf0] sm:$0xff]
    %v2509 = vld [vmem:[%s2477 + $0xf8] sm:$0xff]
    %v2510 = vld [vmem:[%s2477 + $0x100] sm:$0xff]
    %v2511 = vld [vmem:[%s2477 + $0x108] sm:$0xff]
    %v2512 = vld [vmem:[%s2477 + $0x110] sm:$0xff]
    %v2513 = vld [vmem:[%s2477 + $0x118] sm:$0xff]
    %v2514 = vld [vmem:[%s2477 + $0x120] sm:$0xff]
    %v2515 = vld [vmem:[%s2477 + $0x128] sm:$0xff]
    %v2516 = vld [vmem:[%s2477 + $0x130] sm:$0xff]
    %v2517 = vld [vmem:[%s2477 + $0x138] sm:$0xff]
    %v2518 = vld [vmem:[%s2477 + $0x140] sm:$0xff]
    %v2519 = vld [vmem:[%s2477 + $0x148] sm:$0xff]
    %v2520 = vld [vmem:[%s2477 + $0x150] sm:$0xff]
    %v2521 = vld [vmem:[%s2477 + $0x158] sm:$0xff]
    %v2522 = vld [vmem:[%s2477 + $0x160] sm:$0xff]
    %v2523 = vld [vmem:[%s2477 + $0x168] sm:$0xff]
    %v2524 = vld [vmem:[%s2477 + $0x170] sm:$0xff]
    %v2525 = vld [vmem:[%s2477 + $0x178] sm:$0xff]
    %v2526 = vld [vmem:[%s2477 + $0x180] sm:$0xff]
    %v2527 = vld [vmem:[%s2477 + $0x188] sm:$0xff]
    %v2528 = vld [vmem:[%s2477 + $0x190] sm:$0xff]
    %v2529 = vld [vmem:[%s2477 + $0x198] sm:$0xff]
    %v2530 = vld [vmem:[%s2477 + $0x1a0] sm:$0xff]
    %v2531 = vld [vmem:[%s2477 + $0x1a8] sm:$0xff]
    %v2532 = vld [vmem:[%s2477 + $0x1b0] sm:$0xff]
    %v2533 = vld [vmem:[%s2477 + $0x1b8] sm:$0xff]
    %v2534 = vld [vmem:[%s2477 + $0x1c0] sm:$0xff]
    %v2535 = vld [vmem:[%s2477 + $0x1c8] sm:$0xff]
    %v2536 = vld [vmem:[%s2477 + $0x1d0] sm:$0xff]
    %v2537 = vld [vmem:[%s2477 + $0x1d8] sm:$0xff]
    %v2538 = vld [vmem:[%s2477 + $0x1e0] sm:$0xff]
    %v2539 = vld [vmem:[%s2477 + $0x1e8] sm:$0xff]
    %v2540 = vld [vmem:[%s2477 + $0x1f0] sm:$0xff]
    %v2541 = vld [vmem:[%s2477 + $0x1f8] sm:$0xff]
    %v2542 = vld [vmem:[%s2477 + $0x200] sm:$0xff]
    %v2543 = vld [vmem:[%s2477 + $0x208] sm:$0xff]
    %v2544 = vld [vmem:[%s2477 + $0x210] sm:$0xff]
    %v2545 = vld [vmem:[%s2477 + $0x218] sm:$0xff]
    %v2546 = vld [vmem:[%s2477 + $0x220] sm:$0xff]
    %v2547 = vld [vmem:[%s2477 + $0x228] sm:$0xff]
    %v2548 = vld [vmem:[%s2477 + $0x230] sm:$0xff]
    %v2549 = vld [vmem:[%s2477 + $0x238] sm:$0xff]
    %v2550 = vld [vmem:[%s2477 + $0x240] sm:$0xff]
    %v2551 = vld [vmem:[%s2477 + $0x248] sm:$0xff]
    %v2552 = vld [vmem:[%s2477 + $0x250] sm:$0xff]
    %v2553 = vld [vmem:[%s2477 + $0x258] sm:$0xff]
    %v2554 = vld [vmem:[%s2477 + $0x260] sm:$0xff]
    %v2555 = vld [vmem:[%s2477 + $0x268] sm:$0xff]
    %v2556 = vld [vmem:[%s2477 + $0x270] sm:$0xff]
    %v2557 = vld [vmem:[%s2477 + $0x278] sm:$0xff]
    %v2558 = vld [vmem:[%s2477 + $0x280] sm:$0xff]
    %v2559 = vld [vmem:[%s2477 + $0x288] sm:$0xff]
    %v2560 = vld [vmem:[%s2477 + $0x290] sm:$0xff]
    %v2561 = vld [vmem:[%s2477 + $0x298] sm:$0xff]
    %v2562 = vld [vmem:[%s2477 + $0x2a0] sm:$0xff]
    %v2563 = vld [vmem:[%s2477 + $0x2a8] sm:$0xff]
    %v2564 = vld [vmem:[%s2477 + $0x2b0] sm:$0xff]
    %v2565 = vld [vmem:[%s2477 + $0x2b8] sm:$0xff]
    %v2566 = vld [vmem:[%s2477 + $0x2c0] sm:$0xff]
    %v2567 = vld [vmem:[%s2477 + $0x2c8] sm:$0xff]
    %v2568 = vld [vmem:[%s2477 + $0x2d0] sm:$0xff]
    %v2569 = vld [vmem:[%s2477 + $0x2d8] sm:$0xff]
    %v2570 = vld [vmem:[%s2477 + $0x2e0] sm:$0xff]
    %v2571 = vld [vmem:[%s2477 + $0x2e8] sm:$0xff]
    %v2572 = vld [vmem:[%s2477 + $0x2f0] sm:$0xff]
    %v2573 = vld [vmem:[%s2477 + $0x2f8] sm:$0xff]
    %v2574 = vld [vmem:[%s2477 + $0x300] sm:$0xff]
    %v2575 = vld [vmem:[%s2477 + $0x308] sm:$0xff]
    %v2576 = vld [vmem:[%s2477 + $0x310] sm:$0xff]
    %v2577 = vld [vmem:[%s2477 + $0x318] sm:$0xff]
    %v2578 = vld [vmem:[%s2477 + $0x320] sm:$0xff]
    %v2579 = vld [vmem:[%s2477 + $0x328] sm:$0xff]
    %v2580 = vld [vmem:[%s2477 + $0x330] sm:$0xff]
    %v2581 = vld [vmem:[%s2477 + $0x338] sm:$0xff]
    %v2582 = vld [vmem:[%s2477 + $0x340] sm:$0xff]
    %v2583 = vld [vmem:[%s2477 + $0x348] sm:$0xff]
    %v2584 = vld [vmem:[%s2477 + $0x350] sm:$0xff]
    %v2585 = vld [vmem:[%s2477 + $0x358] sm:$0xff]
    %v2586 = vld [vmem:[%s2477 + $0x360] sm:$0xff]
    %v2587 = vld [vmem:[%s2477 + $0x368] sm:$0xff]
    %v2588 = vld [vmem:[%s2477 + $0x370] sm:$0xff]
    %v2589 = vld [vmem:[%s2477 + $0x378] sm:$0xff]
    %v2590 = vld [vmem:[%s2477 + $0x380] sm:$0xff]
    %v2591 = vld [vmem:[%s2477 + $0x388] sm:$0xff]
    %v2592 = vld [vmem:[%s2477 + $0x390] sm:$0xff]
    %v2593 = vld [vmem:[%s2477 + $0x398] sm:$0xff]
    %v2594 = vld [vmem:[%s2477 + $0x3a0] sm:$0xff]
    %v2595 = vld [vmem:[%s2477 + $0x3a8] sm:$0xff]
    %v2596 = vld [vmem:[%s2477 + $0x3b0] sm:$0xff]
    %v2597 = vld [vmem:[%s2477 + $0x3b8] sm:$0xff]
    %v2598 = vld [vmem:[%s2477 + $0x3c0] sm:$0xff]
    %v2599 = vld [vmem:[%s2477 + $0x3c8] sm:$0xff]
    %v2600 = vld [vmem:[%s2477 + $0x3d0] sm:$0xff]
    %v2601 = vld [vmem:[%s2477 + $0x3d8] sm:$0xff]
    %v2602 = vld [vmem:[%s2477 + $0x3e0] sm:$0xff]
    %v2603 = vld [vmem:[%s2477 + $0x3e8] sm:$0xff]
    %v2604 = vld [vmem:[%s2477 + $0x3f0] sm:$0xff]
    %v2605 = vld [vmem:[%s2477 + $0x3f8] sm:$0xff]
    %v2734 = vunpack.c.l.b16 %v2478
    %v2735 = vunpack.c.h.b16 %v2478
    %v2736 = vunpack.c.l.b16 %v2479
    %v2737 = vunpack.c.h.b16 %v2479
    %v2738 = vunpack.c.l.b16 %v2480
    %v2739 = vunpack.c.h.b16 %v2480
    %v2740 = vunpack.c.l.b16 %v2481
    %v2741 = vunpack.c.h.b16 %v2481
    %v2742 = vunpack.c.l.b16 %v2482
    %v2743 = vunpack.c.h.b16 %v2482
    %v2744 = vunpack.c.l.b16 %v2483
    %v2745 = vunpack.c.h.b16 %v2483
    %v2746 = vunpack.c.l.b16 %v2484
    %v2747 = vunpack.c.h.b16 %v2484
    %v2748 = vunpack.c.l.b16 %v2485
    %v2749 = vunpack.c.h.b16 %v2485
    %v2750 = vunpack.c.l.b16 %v2486
    %v2751 = vunpack.c.h.b16 %v2486
    %v2752 = vunpack.c.l.b16 %v2487
    %v2753 = vunpack.c.h.b16 %v2487
    %v2754 = vunpack.c.l.b16 %v2488
    %v2755 = vunpack.c.h.b16 %v2488
    %v2756 = vunpack.c.l.b16 %v2489
    %v2757 = vunpack.c.h.b16 %v2489
    %v2758 = vunpack.c.l.b16 %v2490
    %v2759 = vunpack.c.h.b16 %v2490
    %v2760 = vunpack.c.l.b16 %v2491
    %v2761 = vunpack.c.h.b16 %v2491
    %v2762 = vunpack.c.l.b16 %v2492
    %v2763 = vunpack.c.h.b16 %v2492
    %v2764 = vunpack.c.l.b16 %v2493
    %v2765 = vunpack.c.h.b16 %v2493
    %v2766 = vunpack.c.l.b16 %v2494
    %v2767 = vunpack.c.h.b16 %v2494
    %v2768 = vunpack.c.l.b16 %v2495
    %v2769 = vunpack.c.h.b16 %v2495
    %v2770 = vunpack.c.l.b16 %v2496
    %v2771 = vunpack.c.h.b16 %v2496
    %v2772 = vunpack.c.l.b16 %v2497
    %v2773 = vunpack.c.h.b16 %v2497
    %v2774 = vunpack.c.l.b16 %v2498
    %v2775 = vunpack.c.h.b16 %v2498
    %v2776 = vunpack.c.l.b16 %v2499
    %v2777 = vunpack.c.h.b16 %v2499
    %v2778 = vunpack.c.l.b16 %v2500
    %v2779 = vunpack.c.h.b16 %v2500
    %v2780 = vunpack.c.l.b16 %v2501
    %v2781 = vunpack.c.h.b16 %v2501
    %v2782 = vunpack.c.l.b16 %v2502
    %v2783 = vunpack.c.h.b16 %v2502
    %v2784 = vunpack.c.l.b16 %v2503
    %v2785 = vunpack.c.h.b16 %v2503
    %v2786 = vunpack.c.l.b16 %v2504
    %v2787 = vunpack.c.h.b16 %v2504
    %v2788 = vunpack.c.l.b16 %v2505
    %v2789 = vunpack.c.h.b16 %v2505
    %v2790 = vunpack.c.l.b16 %v2506
    %v2791 = vunpack.c.h.b16 %v2506
    %v2792 = vunpack.c.l.b16 %v2507
    %v2793 = vunpack.c.h.b16 %v2507
    %v2794 = vunpack.c.l.b16 %v2508
    %v2795 = vunpack.c.h.b16 %v2508
    %v2796 = vunpack.c.l.b16 %v2509
    %v2797 = vunpack.c.h.b16 %v2509
    %v2798 = vunpack.c.l.b16 %v2510
    %v2799 = vunpack.c.h.b16 %v2510
    %v2800 = vunpack.c.l.b16 %v2511
    %v2801 = vunpack.c.h.b16 %v2511
    %v2802 = vunpack.c.l.b16 %v2512
    %v2803 = vunpack.c.h.b16 %v2512
    %v2804 = vunpack.c.l.b16 %v2513
    %v2805 = vunpack.c.h.b16 %v2513
    %v2806 = vunpack.c.l.b16 %v2514
    %v2807 = vunpack.c.h.b16 %v2514
    %v2808 = vunpack.c.l.b16 %v2515
    %v2809 = vunpack.c.h.b16 %v2515
    %v2810 = vunpack.c.l.b16 %v2516
    %v2811 = vunpack.c.h.b16 %v2516
    %v2812 = vunpack.c.l.b16 %v2517
    %v2813 = vunpack.c.h.b16 %v2517
    %v2814 = vunpack.c.l.b16 %v2518
    %v2815 = vunpack.c.h.b16 %v2518
    %v2816 = vunpack.c.l.b16 %v2519
    %v2817 = vunpack.c.h.b16 %v2519
    %v2818 = vunpack.c.l.b16 %v2520
    %v2819 = vunpack.c.h.b16 %v2520
    %v2820 = vunpack.c.l.b16 %v2521
    %v2821 = vunpack.c.h.b16 %v2521
    %v2822 = vunpack.c.l.b16 %v2522
    %v2823 = vunpack.c.h.b16 %v2522
    %v2824 = vunpack.c.l.b16 %v2523
    %v2825 = vunpack.c.h.b16 %v2523
    %v2826 = vunpack.c.l.b16 %v2524
    %v2827 = vunpack.c.h.b16 %v2524
    %v2828 = vunpack.c.l.b16 %v2525
    %v2829 = vunpack.c.h.b16 %v2525
    %v2830 = vunpack.c.l.b16 %v2526
    %v2831 = vunpack.c.h.b16 %v2526
    %v2832 = vunpack.c.l.b16 %v2527
    %v2833 = vunpack.c.h.b16 %v2527
    %v2834 = vunpack.c.l.b16 %v2528
    %v2835 = vunpack.c.h.b16 %v2528
    %v2836 = vunpack.c.l.b16 %v2529
    %v2837 = vunpack.c.h.b16 %v2529
    %v2838 = vunpack.c.l.b16 %v2530
    %v2839 = vunpack.c.h.b16 %v2530
    %v2840 = vunpack.c.l.b16 %v2531
    %v2841 = vunpack.c.h.b16 %v2531
    %v2842 = vunpack.c.l.b16 %v2532
    %v2843 = vunpack.c.h.b16 %v2532
    %v2844 = vunpack.c.l.b16 %v2533
    %v2845 = vunpack.c.h.b16 %v2533
    %v2846 = vunpack.c.l.b16 %v2534
    %v2847 = vunpack.c.h.b16 %v2534
    %v2848 = vunpack.c.l.b16 %v2535
    %v2849 = vunpack.c.h.b16 %v2535
    %v2850 = vunpack.c.l.b16 %v2536
    %v2851 = vunpack.c.h.b16 %v2536
    %v2852 = vunpack.c.l.b16 %v2537
    %v2853 = vunpack.c.h.b16 %v2537
    %v2854 = vunpack.c.l.b16 %v2538
    %v2855 = vunpack.c.h.b16 %v2538
    %v2856 = vunpack.c.l.b16 %v2539
    %v2857 = vunpack.c.h.b16 %v2539
    %v2858 = vunpack.c.l.b16 %v2540
    %v2859 = vunpack.c.h.b16 %v2540
    %v2860 = vunpack.c.l.b16 %v2541
    %v2861 = vunpack.c.h.b16 %v2541
    %v2862 = vunpack.c.l.b16 %v2542
    %v2863 = vunpack.c.h.b16 %v2542
    %v2864 = vunpack.c.l.b16 %v2543
    %v2865 = vunpack.c.h.b16 %v2543
    %v2866 = vunpack.c.l.b16 %v2544
    %v2867 = vunpack.c.h.b16 %v2544
    %v2868 = vunpack.c.l.b16 %v2545
    %v2869 = vunpack.c.h.b16 %v2545
    %v2870 = vunpack.c.l.b16 %v2546
    %v2871 = vunpack.c.h.b16 %v2546
    %v2872 = vunpack.c.l.b16 %v2547
    %v2873 = vunpack.c.h.b16 %v2547
    %v2874 = vunpack.c.l.b16 %v2548
    %v2875 = vunpack.c.h.b16 %v2548
    %v2876 = vunpack.c.l.b16 %v2549
    %v2877 = vunpack.c.h.b16 %v2549
    %v2878 = vunpack.c.l.b16 %v2550
    %v2879 = vunpack.c.h.b16 %v2550
    %v2880 = vunpack.c.l.b16 %v2551
    %v2881 = vunpack.c.h.b16 %v2551
    %v2882 = vunpack.c.l.b16 %v2552
    %v2883 = vunpack.c.h.b16 %v2552
    %v2884 = vunpack.c.l.b16 %v2553
    %v2885 = vunpack.c.h.b16 %v2553
    %v2886 = vunpack.c.l.b16 %v2554
    %v2887 = vunpack.c.h.b16 %v2554
    %v2888 = vunpack.c.l.b16 %v2555
    %v2889 = vunpack.c.h.b16 %v2555
    %v2890 = vunpack.c.l.b16 %v2556
    %v2891 = vunpack.c.h.b16 %v2556
    %v2892 = vunpack.c.l.b16 %v2557
    %v2893 = vunpack.c.h.b16 %v2557
    %v2894 = vunpack.c.l.b16 %v2558
    %v2895 = vunpack.c.h.b16 %v2558
    %v2896 = vunpack.c.l.b16 %v2559
    %v2897 = vunpack.c.h.b16 %v2559
    %v2898 = vunpack.c.l.b16 %v2560
    %v2899 = vunpack.c.h.b16 %v2560
    %v2900 = vunpack.c.l.b16 %v2561
    %v2901 = vunpack.c.h.b16 %v2561
    %v2902 = vunpack.c.l.b16 %v2562
    %v2903 = vunpack.c.h.b16 %v2562
    %v2904 = vunpack.c.l.b16 %v2563
    %v2905 = vunpack.c.h.b16 %v2563
    %v2906 = vunpack.c.l.b16 %v2564
    %v2907 = vunpack.c.h.b16 %v2564
    %v2908 = vunpack.c.l.b16 %v2565
    %v2909 = vunpack.c.h.b16 %v2565
    %v2910 = vunpack.c.l.b16 %v2566
    %v2911 = vunpack.c.h.b16 %v2566
    %v2912 = vunpack.c.l.b16 %v2567
    %v2913 = vunpack.c.h.b16 %v2567
    %v2914 = vunpack.c.l.b16 %v2568
    %v2915 = vunpack.c.h.b16 %v2568
    %v2916 = vunpack.c.l.b16 %v2569
    %v2917 = vunpack.c.h.b16 %v2569
    %v2918 = vunpack.c.l.b16 %v2570
    %v2919 = vunpack.c.h.b16 %v2570
    %v2920 = vunpack.c.l.b16 %v2571
    %v2921 = vunpack.c.h.b16 %v2571
    %v2922 = vunpack.c.l.b16 %v2572
    %v2923 = vunpack.c.h.b16 %v2572
    %v2924 = vunpack.c.l.b16 %v2573
    %v2925 = vunpack.c.h.b16 %v2573
    %v2926 = vunpack.c.l.b16 %v2574
    %v2927 = vunpack.c.h.b16 %v2574
    %v2928 = vunpack.c.l.b16 %v2575
    %v2929 = vunpack.c.h.b16 %v2575
    %v2930 = vunpack.c.l.b16 %v2576
    %v2931 = vunpack.c.h.b16 %v2576
    %v2932 = vunpack.c.l.b16 %v2577
    %v2933 = vunpack.c.h.b16 %v2577
    %v2934 = vunpack.c.l.b16 %v2578
    %v2935 = vunpack.c.h.b16 %v2578
    %v2936 = vunpack.c.l.b16 %v2579
    %v2937 = vunpack.c.h.b16 %v2579
    %v2938 = vunpack.c.l.b16 %v2580
    %v2939 = vunpack.c.h.b16 %v2580
    %v2940 = vunpack.c.l.b16 %v2581
    %v2941 = vunpack.c.h.b16 %v2581
    %v2942 = vunpack.c.l.b16 %v2582
    %v2943 = vunpack.c.h.b16 %v2582
    %v2944 = vunpack.c.l.b16 %v2583
    %v2945 = vunpack.c.h.b16 %v2583
    %v2946 = vunpack.c.l.b16 %v2584
    %v2947 = vunpack.c.h.b16 %v2584
    %v2948 = vunpack.c.l.b16 %v2585
    %v2949 = vunpack.c.h.b16 %v2585
    %v2950 = vunpack.c.l.b16 %v2586
    %v2951 = vunpack.c.h.b16 %v2586
    %v2952 = vunpack.c.l.b16 %v2587
    %v2953 = vunpack.c.h.b16 %v2587
    %v2954 = vunpack.c.l.b16 %v2588
    %v2955 = vunpack.c.h.b16 %v2588
    %v2956 = vunpack.c.l.b16 %v2589
    %v2957 = vunpack.c.h.b16 %v2589
    %v2958 = vunpack.c.l.b16 %v2590
    %v2959 = vunpack.c.h.b16 %v2590
    %v2960 = vunpack.c.l.b16 %v2591
    %v2961 = vunpack.c.h.b16 %v2591
    %v2962 = vunpack.c.l.b16 %v2592
    %v2963 = vunpack.c.h.b16 %v2592
    %v2964 = vunpack.c.l.b16 %v2593
    %v2965 = vunpack.c.h.b16 %v2593
    %v2966 = vunpack.c.l.b16 %v2594
    %v2967 = vunpack.c.h.b16 %v2594
    %v2968 = vunpack.c.l.b16 %v2595
    %v2969 = vunpack.c.h.b16 %v2595
    %v2970 = vunpack.c.l.b16 %v2596
    %v2971 = vunpack.c.h.b16 %v2596
    %v2972 = vunpack.c.l.b16 %v2597
    %v2973 = vunpack.c.h.b16 %v2597
    %v2974 = vunpack.c.l.b16 %v2598
    %v2975 = vunpack.c.h.b16 %v2598
    %v2976 = vunpack.c.l.b16 %v2599
    %v2977 = vunpack.c.h.b16 %v2599
    %v2978 = vunpack.c.l.b16 %v2600
    %v2979 = vunpack.c.h.b16 %v2600
    %v2980 = vunpack.c.l.b16 %v2601
    %v2981 = vunpack.c.h.b16 %v2601
    %v2982 = vunpack.c.l.b16 %v2602
    %v2983 = vunpack.c.h.b16 %v2602
    %v2984 = vunpack.c.l.b16 %v2603
    %v2985 = vunpack.c.h.b16 %v2603
    %v2986 = vunpack.c.l.b16 %v2604
    %v2987 = vunpack.c.h.b16 %v2604
    %v2988 = vunpack.c.l.b16 %v2605
    %v2989 = vunpack.c.h.b16 %v2605
    %v2990 = vpack.c.b16 %v2738, %v2734
    %v2991 = vpack.c.b16 %v2739, %v2735
    %v2992 = vpack.c.b16 %v2740, %v2736
    %v2993 = vpack.c.b16 %v2741, %v2737
    %v2994 = vpack.c.b16 %v2746, %v2742
    %v2995 = vpack.c.b16 %v2747, %v2743
    %v2996 = vpack.c.b16 %v2748, %v2744
    %v2997 = vpack.c.b16 %v2749, %v2745
    %v2998 = vpack.c.b16 %v2754, %v2750
    %v2999 = vpack.c.b16 %v2755, %v2751
    %v3000 = vpack.c.b16 %v2756, %v2752
    %v3001 = vpack.c.b16 %v2757, %v2753
    %v3002 = vpack.c.b16 %v2762, %v2758
    %v3003 = vpack.c.b16 %v2763, %v2759
    %v3004 = vpack.c.b16 %v2764, %v2760
    %v3005 = vpack.c.b16 %v2765, %v2761
    %v3006 = vpack.c.b16 %v2770, %v2766
    %v3007 = vpack.c.b16 %v2771, %v2767
    %v3008 = vpack.c.b16 %v2772, %v2768
    %v3009 = vpack.c.b16 %v2773, %v2769
    %v3010 = vpack.c.b16 %v2778, %v2774
    %v3011 = vpack.c.b16 %v2779, %v2775
    %v3012 = vpack.c.b16 %v2780, %v2776
    %v3013 = vpack.c.b16 %v2781, %v2777
    %v3014 = vpack.c.b16 %v2786, %v2782
    %v3015 = vpack.c.b16 %v2787, %v2783
    %v3016 = vpack.c.b16 %v2788, %v2784
    %v3017 = vpack.c.b16 %v2789, %v2785
    %v3018 = vpack.c.b16 %v2794, %v2790
    %v3019 = vpack.c.b16 %v2795, %v2791
    %v3020 = vpack.c.b16 %v2796, %v2792
    %v3021 = vpack.c.b16 %v2797, %v2793
    %v3022 = vpack.c.b16 %v2802, %v2798
    %v3023 = vpack.c.b16 %v2803, %v2799
    %v3024 = vpack.c.b16 %v2804, %v2800
    %v3025 = vpack.c.b16 %v2805, %v2801
    %v3026 = vpack.c.b16 %v2810, %v2806
    %v3027 = vpack.c.b16 %v2811, %v2807
    %v3028 = vpack.c.b16 %v2812, %v2808
    %v3029 = vpack.c.b16 %v2813, %v2809
    %v3030 = vpack.c.b16 %v2818, %v2814
    %v3031 = vpack.c.b16 %v2819, %v2815
    %v3032 = vpack.c.b16 %v2820, %v2816
    %v3033 = vpack.c.b16 %v2821, %v2817
    %v3034 = vpack.c.b16 %v2826, %v2822
    %v3035 = vpack.c.b16 %v2827, %v2823
    %v3036 = vpack.c.b16 %v2828, %v2824
    %v3037 = vpack.c.b16 %v2829, %v2825
    %v3038 = vpack.c.b16 %v2834, %v2830
    %v3039 = vpack.c.b16 %v2835, %v2831
    %v3040 = vpack.c.b16 %v2836, %v2832
    %v3041 = vpack.c.b16 %v2837, %v2833
    %v3042 = vpack.c.b16 %v2842, %v2838
    %v3043 = vpack.c.b16 %v2843, %v2839
    %v3044 = vpack.c.b16 %v2844, %v2840
    %v3045 = vpack.c.b16 %v2845, %v2841
    %v3046 = vpack.c.b16 %v2850, %v2846
    %v3047 = vpack.c.b16 %v2851, %v2847
    %v3048 = vpack.c.b16 %v2852, %v2848
    %v3049 = vpack.c.b16 %v2853, %v2849
    %v3050 = vpack.c.b16 %v2858, %v2854
    %v3051 = vpack.c.b16 %v2859, %v2855
    %v3052 = vpack.c.b16 %v2860, %v2856
    %v3053 = vpack.c.b16 %v2861, %v2857
    %v3054 = vpack.c.b16 %v2866, %v2862
    %v3055 = vpack.c.b16 %v2867, %v2863
    %v3056 = vpack.c.b16 %v2868, %v2864
    %v3057 = vpack.c.b16 %v2869, %v2865
    %v3058 = vpack.c.b16 %v2874, %v2870
    %v3059 = vpack.c.b16 %v2875, %v2871
    %v3060 = vpack.c.b16 %v2876, %v2872
    %v3061 = vpack.c.b16 %v2877, %v2873
    %v3062 = vpack.c.b16 %v2882, %v2878
    %v3063 = vpack.c.b16 %v2883, %v2879
    %v3064 = vpack.c.b16 %v2884, %v2880
    %v3065 = vpack.c.b16 %v2885, %v2881
    %v3066 = vpack.c.b16 %v2890, %v2886
    %v3067 = vpack.c.b16 %v2891, %v2887
    %v3068 = vpack.c.b16 %v2892, %v2888
    %v3069 = vpack.c.b16 %v2893, %v2889
    %v3070 = vpack.c.b16 %v2898, %v2894
    %v3071 = vpack.c.b16 %v2899, %v2895
    %v3072 = vpack.c.b16 %v2900, %v2896
    %v3073 = vpack.c.b16 %v2901, %v2897
    %v3074 = vpack.c.b16 %v2906, %v2902
    %v3075 = vpack.c.b16 %v2907, %v2903
    %v3076 = vpack.c.b16 %v2908, %v2904
    %v3077 = vpack.c.b16 %v2909, %v2905
    %v3078 = vpack.c.b16 %v2914, %v2910
    %v3079 = vpack.c.b16 %v2915, %v2911
    %v3080 = vpack.c.b16 %v2916, %v2912
    %v3081 = vpack.c.b16 %v2917, %v2913
    %v3082 = vpack.c.b16 %v2922, %v2918
    %v3083 = vpack.c.b16 %v2923, %v2919
    %v3084 = vpack.c.b16 %v2924, %v2920
    %v3085 = vpack.c.b16 %v2925, %v2921
    %v3086 = vpack.c.b16 %v2930, %v2926
    %v3087 = vpack.c.b16 %v2931, %v2927
    %v3088 = vpack.c.b16 %v2932, %v2928
    %v3089 = vpack.c.b16 %v2933, %v2929
    %v3090 = vpack.c.b16 %v2938, %v2934
    %v3091 = vpack.c.b16 %v2939, %v2935
    %v3092 = vpack.c.b16 %v2940, %v2936
    %v3093 = vpack.c.b16 %v2941, %v2937
    %v3094 = vpack.c.b16 %v2946, %v2942
    %v3095 = vpack.c.b16 %v2947, %v2943
    %v3096 = vpack.c.b16 %v2948, %v2944
    %v3097 = vpack.c.b16 %v2949, %v2945
    %v3098 = vpack.c.b16 %v2954, %v2950
    %v3099 = vpack.c.b16 %v2955, %v2951
    %v3100 = vpack.c.b16 %v2956, %v2952
    %v3101 = vpack.c.b16 %v2957, %v2953
    %v3102 = vpack.c.b16 %v2962, %v2958
    %v3103 = vpack.c.b16 %v2963, %v2959
    %v3104 = vpack.c.b16 %v2964, %v2960
    %v3105 = vpack.c.b16 %v2965, %v2961
    %v3106 = vpack.c.b16 %v2970, %v2966
    %v3107 = vpack.c.b16 %v2971, %v2967
    %v3108 = vpack.c.b16 %v2972, %v2968
    %v3109 = vpack.c.b16 %v2973, %v2969
    %v3110 = vpack.c.b16 %v2978, %v2974
    %v3111 = vpack.c.b16 %v2979, %v2975
    %v3112 = vpack.c.b16 %v2980, %v2976
    %v3113 = vpack.c.b16 %v2981, %v2977
    %v3114 = vpack.c.b16 %v2986, %v2982
    %v3115 = vpack.c.b16 %v2987, %v2983
    %v3116 = vpack.c.b16 %v2988, %v2984
    %v3117 = vpack.c.b16 %v2989, %v2985
    %3246 = vmatprep.subr.bf16.mxu0 %v3019
    %3247 = vmatpush1.bf16.msra.mxu0 %v3018
    %3248 = vmatprep.subr.bf16.mxu0 %v3015
    %3249 = vmatpush1.bf16.msra.mxu0 %v3014
    %3250 = vmatprep.subr.bf16.mxu0 %v3011
    %3251 = vmatpush1.bf16.msra.mxu0 %v3010
    %3252 = vmatprep.subr.bf16.mxu0 %v3007
    %3253 = vmatpush1.bf16.msra.mxu0 %v3006
    %3254 = vmatprep.subr.bf16.mxu0 %v3003
    %3255 = vmatpush1.bf16.msra.mxu0 %v3002
    %3256 = vmatprep.subr.bf16.mxu0 %v2999
    %3257 = vmatpush1.bf16.msra.mxu0 %v2998
    %3258 = vmatprep.subr.bf16.mxu0 %v2995
    %3259 = vmatpush1.bf16.msra.mxu0 %v2994
    %3260 = vmatprep.subr.bf16.mxu0 %v2991
    %3261 = vmatpush1.bf16.msra.mxu0 %v2990
    %3262 = vmatprep.subr.bf16.mxu0 %v3051
    %3263 = vmatpush2.bf16.msra.mxu0 %v3050
    %3264 = vmatprep.subr.bf16.mxu0 %v3047
    %3265 = vmatpush2.bf16.msra.mxu0 %v3046
    %3266 = vmatprep.subr.bf16.mxu0 %v3043
    %3267 = vmatpush2.bf16.msra.mxu0 %v3042
    %3268 = vmatprep.subr.bf16.mxu0 %v3039
    %3269 = vmatpush2.bf16.msra.mxu0 %v3038
    %3270 = vmatprep.subr.bf16.mxu0 %v3035
    %3271 = vmatpush2.bf16.msra.mxu0 %v3034
    %3272 = vmatprep.subr.bf16.mxu0 %v3031
    %3273 = vmatpush2.bf16.msra.mxu0 %v3030
    %3274 = vmatprep.subr.bf16.mxu0 %v3027
    %3275 = vmatpush2.bf16.msra.mxu0 %v3026
    %3276 = vmatprep.subr.bf16.mxu0 %v3023
    %3277 = vmatpush2.bf16.msra.mxu0 %v3022
    %3278 = vmatprep.mubr.bf16.mxu0 %v2472
    %3279 = vmatmul.mubr.bf16.gmra.mxu0 %v2471
    %v3280 = vpop.f32.mrf.mxu0
    %v3281 = vadd.f32 0.0, %v3280
    %v3282 = vpop.f32.mrf.mxu0
    %v3283 = vadd.f32 0.0, %v3282
    %v3284 = vpop.f32.mrf.mxu0
    %v3285 = vpop.f32.mrf.mxu0
    %3286 = vdwg.mxu0
    %3287 = vmatprep.subr.bf16.mxu0 %v3083
    %3288 = vmatpush1.bf16.msra.mxu0 %v3082
    %3289 = vmatprep.subr.bf16.mxu0 %v3079
    %3290 = vmatpush1.bf16.msra.mxu0 %v3078
    %3291 = vmatprep.subr.bf16.mxu0 %v3075
    %3292 = vmatpush1.bf16.msra.mxu0 %v3074
    %3293 = vmatprep.subr.bf16.mxu0 %v3071
    %3294 = vmatpush1.bf16.msra.mxu0 %v3070
    %3295 = vmatprep.subr.bf16.mxu0 %v3067
    %3296 = vmatpush1.bf16.msra.mxu0 %v3066
    %3297 = vmatprep.subr.bf16.mxu0 %v3063
    %3298 = vmatpush1.bf16.msra.mxu0 %v3062
    %3299 = vmatprep.subr.bf16.mxu0 %v3059
    %3300 = vmatpush1.bf16.msra.mxu0 %v3058
    %3301 = vmatprep.subr.bf16.mxu0 %v3055
    %3302 = vmatpush1.bf16.msra.mxu0 %v3054
    %3303 = vmatprep.subr.bf16.mxu0 %v3115
    %3304 = vmatpush2.bf16.msra.mxu0 %v3114
    %3305 = vmatprep.subr.bf16.mxu0 %v3111
    %3306 = vmatpush2.bf16.msra.mxu0 %v3110
    %3307 = vmatprep.subr.bf16.mxu0 %v3107
    %3308 = vmatpush2.bf16.msra.mxu0 %v3106
    %3309 = vmatprep.subr.bf16.mxu0 %v3103
    %3310 = vmatpush2.bf16.msra.mxu0 %v3102
    %3311 = vmatprep.subr.bf16.mxu0 %v3099
    %3312 = vmatpush2.bf16.msra.mxu0 %v3098
    %3313 = vmatprep.subr.bf16.mxu0 %v3095
    %3314 = vmatpush2.bf16.msra.mxu0 %v3094
    %3315 = vmatprep.subr.bf16.mxu0 %v3091
    %3316 = vmatpush2.bf16.msra.mxu0 %v3090
    %3317 = vmatprep.subr.bf16.mxu0 %v3087
    %3318 = vmatpush2.bf16.msra.mxu0 %v3086
    %3319 = vmatprep.mubr.bf16.mxu0 %v2474
    %3320 = vmatmul.mubr.bf16.gmra.mxu0 %v2473
    %v3321 = vpop.f32.mrf.mxu0
    %v3322 = vadd.f32 %v3281, %v3321
    %v3323 = vpop.f32.mrf.mxu0
    %v3324 = vadd.f32 %v3283, %v3323
    %v3325 = vpop.f32.mrf.mxu0
    %v3326 = vpop.f32.mrf.mxu0
    %3327 = vdwg.mxu0
    %3328 = vmatprep.subr.bf16.mxu0 %v3021
    %3329 = vmatpush1.bf16.msra.mxu0 %v3020
    %3330 = vmatprep.subr.bf16.mxu0 %v3017
    %3331 = vmatpush1.bf16.msra.mxu0 %v3016
    %3332 = vmatprep.subr.bf16.mxu0 %v3013
    %3333 = vmatpush1.bf16.msra.mxu0 %v3012
    %3334 = vmatprep.subr.bf16.mxu0 %v3009
    %3335 = vmatpush1.bf16.msra.mxu0 %v3008
    %3336 = vmatprep.subr.bf16.mxu0 %v3005
    %3337 = vmatpush1.bf16.msra.mxu0 %v3004
    %3338 = vmatprep.subr.bf16.mxu0 %v3001
    %3339 = vmatpush1.bf16.msra.mxu0 %v3000
    %3340 = vmatprep.subr.bf16.mxu0 %v2997
    %3341 = vmatpush1.bf16.msra.mxu0 %v2996
    %3342 = vmatprep.subr.bf16.mxu0 %v2993
    %3343 = vmatpush1.bf16.msra.mxu0 %v2992
    %3344 = vmatprep.subr.bf16.mxu0 %v3053
    %3345 = vmatpush2.bf16.msra.mxu0 %v3052
    %3346 = vmatprep.subr.bf16.mxu0 %v3049
    %3347 = vmatpush2.bf16.msra.mxu0 %v3048
    %3348 = vmatprep.subr.bf16.mxu0 %v3045
    %3349 = vmatpush2.bf16.msra.mxu0 %v3044
    %3350 = vmatprep.subr.bf16.mxu0 %v3041
    %3351 = vmatpush2.bf16.msra.mxu0 %v3040
    %3352 = vmatprep.subr.bf16.mxu0 %v3037
    %3353 = vmatpush2.bf16.msra.mxu0 %v3036
    %3354 = vmatprep.subr.bf16.mxu0 %v3033
    %3355 = vmatpush2.bf16.msra.mxu0 %v3032
    %3356 = vmatprep.subr.bf16.mxu0 %v3029
    %3357 = vmatpush2.bf16.msra.mxu0 %v3028
    %3358 = vmatprep.subr.bf16.mxu0 %v3025
    %3359 = vmatpush2.bf16.msra.mxu0 %v3024
    %3360 = vmatprep.mubr.bf16.mxu0 %v2472
    %3361 = vmatmul.mubr.bf16.gmra.mxu0 %v2471
    %v3362 = vpop.f32.mrf.mxu0
    %v3363 = vadd.f32 0.0, %v3362
    %v3364 = vpop.f32.mrf.mxu0
    %v3365 = vadd.f32 0.0, %v3364
    %v3366 = vpop.f32.mrf.mxu0
    %v3367 = vpop.f32.mrf.mxu0
    %3368 = vdwg.mxu0
    %3369 = vmatprep.subr.bf16.mxu0 %v3085
    %3370 = vmatpush1.bf16.msra.mxu0 %v3084
    %3371 = vmatprep.subr.bf16.mxu0 %v3081
    %3372 = vmatpush1.bf16.msra.mxu0 %v3080
    %3373 = vmatprep.subr.bf16.mxu0 %v3077
    %3374 = vmatpush1.bf16.msra.mxu0 %v3076
    %3375 = vmatprep.subr.bf16.mxu0 %v3073
    %3376 = vmatpush1.bf16.msra.mxu0 %v3072
    %3377 = vmatprep.subr.bf16.mxu0 %v3069
    %3378 = vmatpush1.bf16.msra.mxu0 %v3068
    %3379 = vmatprep.subr.bf16.mxu0 %v3065
    %3380 = vmatpush1.bf16.msra.mxu0 %v3064
    %3381 = vmatprep.subr.bf16.mxu0 %v3061
    %3382 = vmatpush1.bf16.msra.mxu0 %v3060
    %3383 = vmatprep.subr.bf16.mxu0 %v3057
    %3384 = vmatpush1.bf16.msra.mxu0 %v3056
    %3385 = vmatprep.subr.bf16.mxu0 %v3117
    %3386 = vmatpush2.bf16.msra.mxu0 %v3116
    %3387 = vmatprep.subr.bf16.mxu0 %v3113
    %3388 = vmatpush2.bf16.msra.mxu0 %v3112
    %3389 = vmatprep.subr.bf16.mxu0 %v3109
    %3390 = vmatpush2.bf16.msra.mxu0 %v3108
    %3391 = vmatprep.subr.bf16.mxu0 %v3105
    %3392 = vmatpush2.bf16.msra.mxu0 %v3104
    %3393 = vmatprep.subr.bf16.mxu0 %v3101
    %3394 = vmatpush2.bf16.msra.mxu0 %v3100
    %3395 = vmatprep.subr.bf16.mxu0 %v3097
    %3396 = vmatpush2.bf16.msra.mxu0 %v3096
    %3397 = vmatprep.subr.bf16.mxu0 %v3093
    %3398 = vmatpush2.bf16.msra.mxu0 %v3092
    %3399 = vmatprep.subr.bf16.mxu0 %v3089
    %3400 = vmatpush2.bf16.msra.mxu0 %v3088
    %3401 = vmatprep.mubr.bf16.mxu0 %v2474
    %3402 = vmatmul.mubr.bf16.gmra.mxu0 %v2473
    %v3403 = vpop.f32.mrf.mxu0
    %v3404 = vadd.f32 %v3363, %v3403
    %v3405 = vpop.f32.mrf.mxu0
    %v3406 = vadd.f32 %v3365, %v3405
    %v3407 = vpop.f32.mrf.mxu0
    %v3408 = vpop.f32.mrf.mxu0
    %3409 = vdwg.mxu0
    %v3410 = vadd.f32 %v2225, %v3322
    %v3411 = vadd.f32 %v2227, %v3324
    %v3412 = vadd.f32 %v2307, %v3404
    %v3413 = vadd.f32 %v2309, %v3406
    %s3414 = scalar_lea.vmem [#allocation5], 48
    %v3415 = vld [vmem:[%s3414] sm:$0xff]
    %v3416 = vld [vmem:[%s3414 + $0x8] sm:$0xff]
    %v3417 = vld [vmem:[%s3414 + $0x40] sm:$0xff]
    %v3418 = vld [vmem:[%s3414 + $0x48] sm:$0xff]
    %v3419 = vld [vmem:[%s3414 + $0x80] sm:$0xff]
    %v3420 = vld [vmem:[%s3414 + $0x88] sm:$0xff]
    %v3421 = vld [vmem:[%s3414 + $0xc0] sm:$0xff]
    %v3422 = vld [vmem:[%s3414 + $0xc8] sm:$0xff]
    %s3423 = scalar_lea.vmem [#allocation7], 12
    %v3424 = vld [vmem:[%s3423] sm:$0xf]
    %v3426 = vlaneseq
    %v3427 = vshrl.u32 %v3426, 7
    %v3428 = vsub.s32 0, %v3427
    %v3429 = vrot.slane %v3424, %v3428
    %v3430 = vlaneseq
    %v3431 = vshrl.u32 %v3430, 7
    %v3432 = vsub.s32 1, %v3431
    %v3433 = vrot.slane %v3424, %v3432
    %v3434 = vlaneseq
    %v3435 = vshrl.u32 %v3434, 7
    %v3436 = vsub.s32 2, %v3435
    %v3437 = vrot.slane %v3424, %v3436
    %v3438 = vlaneseq
    %v3439 = vshrl.u32 %v3438, 7
    %v3440 = vsub.s32 3, %v3439
    %v3441 = vrot.slane %v3424, %v3440
    %v3454 = vunpack.c.l.b16 %v3415
    %v3455 = vunpack.c.h.b16 %v3415
    %v3456 = vunpack.c.l.b16 %v3416
    %v3457 = vunpack.c.h.b16 %v3416
    %v3458 = vunpack.c.l.b16 %v3417
    %v3459 = vunpack.c.h.b16 %v3417
    %v3460 = vunpack.c.l.b16 %v3418
    %v3461 = vunpack.c.h.b16 %v3418
    %v3462 = vunpack.c.l.b16 %v3419
    %v3463 = vunpack.c.h.b16 %v3419
    %v3464 = vunpack.c.l.b16 %v3420
    %v3465 = vunpack.c.h.b16 %v3420
    %v3466 = vunpack.c.l.b16 %v3421
    %v3467 = vunpack.c.h.b16 %v3421
    %v3468 = vunpack.c.l.b16 %v3422
    %v3469 = vunpack.c.h.b16 %v3422
    %v3470 = vpack.c.b16 %v3458, %v3454
    %v3471 = vpack.c.b16 %v3459, %v3455
    %v3472 = vpack.c.b16 %v3460, %v3456
    %v3473 = vpack.c.b16 %v3461, %v3457
    %v3474 = vpack.c.b16 %v3466, %v3462
    %v3475 = vpack.c.b16 %v3467, %v3463
    %v3476 = vpack.c.b16 %v3468, %v3464
    %v3477 = vpack.c.b16 %v3469, %v3465
    %3486 = vmatprep.subr.bf16.mxu0 0
    %3487 = vmatpush1.bf16.msra.mxu0 0
    %3488 = vmatprep.subr.bf16.mxu0 0
    %3489 = vmatpush1.bf16.msra.mxu0 0
    %3490 = vmatprep.subr.bf16.mxu0 0
    %3491 = vmatpush1.bf16.msra.mxu0 0
    %3492 = vmatprep.subr.bf16.mxu0 0
    %3493 = vmatpush1.bf16.msra.mxu0 0
    %3494 = vmatprep.subr.bf16.mxu0 0
    %3495 = vmatpush1.bf16.msra.mxu0 0
    %3496 = vmatprep.subr.bf16.mxu0 0
    %3497 = vmatpush1.bf16.msra.mxu0 0
    %3498 = vmatprep.subr.bf16.mxu0 %v3475
    %3499 = vmatpush1.bf16.msra.mxu0 %v3474
    %3500 = vmatprep.subr.bf16.mxu0 %v3471
    %3501 = vmatpush1.bf16.msra.mxu0 %v3470
    %3502 = vmatprep.subr.bf16.mxu0 0
    %3503 = vmatpush2.bf16.msra.mxu0 0
    %3504 = vmatprep.subr.bf16.mxu0 0
    %3505 = vmatpush2.bf16.msra.mxu0 0
    %3506 = vmatprep.subr.bf16.mxu0 0
    %3507 = vmatpush2.bf16.msra.mxu0 0
    %3508 = vmatprep.subr.bf16.mxu0 0
    %3509 = vmatpush2.bf16.msra.mxu0 0
    %3510 = vmatprep.subr.bf16.mxu0 0
    %3511 = vmatpush2.bf16.msra.mxu0 0
    %3512 = vmatprep.subr.bf16.mxu0 0
    %3513 = vmatpush2.bf16.msra.mxu0 0
    %3514 = vmatprep.subr.bf16.mxu0 0
    %3515 = vmatpush2.bf16.msra.mxu0 0
    %3516 = vmatprep.subr.bf16.mxu0 0
    %3517 = vmatpush2.bf16.msra.mxu0 0
    %3518 = vmatprep.mubr.bf16.mxu0 0
    %3519 = vmatmul.mubr.bf16.gmra.mxu0 %v189
    %v3520 = vpop.f32.mrf.mxu0
    %v3521 = vadd.f32 %v3429, %v3520
    %v3522 = vpop.f32.mrf.mxu0
    %v3523 = vadd.f32 %v3433, %v3522
    %v3524 = vpop.f32.mrf.mxu0
    %v3525 = vpop.f32.mrf.mxu0
    %3526 = vdwg.mxu0
    %3527 = vmatprep.subr.bf16.mxu0 0
    %3528 = vmatpush1.bf16.msra.mxu0 0
    %3529 = vmatprep.subr.bf16.mxu0 0
    %3530 = vmatpush1.bf16.msra.mxu0 0
    %3531 = vmatprep.subr.bf16.mxu0 0
    %3532 = vmatpush1.bf16.msra.mxu0 0
    %3533 = vmatprep.subr.bf16.mxu0 0
    %3534 = vmatpush1.bf16.msra.mxu0 0
    %3535 = vmatprep.subr.bf16.mxu0 0
    %3536 = vmatpush1.bf16.msra.mxu0 0
    %3537 = vmatprep.subr.bf16.mxu0 0
    %3538 = vmatpush1.bf16.msra.mxu0 0
    %3539 = vmatprep.subr.bf16.mxu0 %v3477
    %3540 = vmatpush1.bf16.msra.mxu0 %v3476
    %3541 = vmatprep.subr.bf16.mxu0 %v3473
    %3542 = vmatpush1.bf16.msra.mxu0 %v3472
    %3543 = vmatprep.subr.bf16.mxu0 0
    %3544 = vmatpush2.bf16.msra.mxu0 0
    %3545 = vmatprep.subr.bf16.mxu0 0
    %3546 = vmatpush2.bf16.msra.mxu0 0
    %3547 = vmatprep.subr.bf16.mxu0 0
    %3548 = vmatpush2.bf16.msra.mxu0 0
    %3549 = vmatprep.subr.bf16.mxu0 0
    %3550 = vmatpush2.bf16.msra.mxu0 0
    %3551 = vmatprep.subr.bf16.mxu0 0
    %3552 = vmatpush2.bf16.msra.mxu0 0
    %3553 = vmatprep.subr.bf16.mxu0 0
    %3554 = vmatpush2.bf16.msra.mxu0 0
    %3555 = vmatprep.subr.bf16.mxu0 0
    %3556 = vmatpush2.bf16.msra.mxu0 0
    %3557 = vmatprep.subr.bf16.mxu0 0
    %3558 = vmatpush2.bf16.msra.mxu0 0
    %3559 = vmatprep.mubr.bf16.mxu0 0
    %3560 = vmatmul.mubr.bf16.gmra.mxu0 %v189
    %v3561 = vpop.f32.mrf.mxu0
    %v3562 = vadd.f32 %v3437, %v3561
    %v3563 = vpop.f32.mrf.mxu0
    %v3564 = vadd.f32 %v3441, %v3563
    %v3565 = vpop.f32.mrf.mxu0
    %v3566 = vpop.f32.mrf.mxu0
    %3567 = vdwg.mxu0
    %v3568 = vmax.f32 %v3521, 0.0
    %v3569 = vmax.f32 %v3523, 0.0
    %v3570 = vmax.f32 %v3562, 0.0
    %v3571 = vmax.f32 %v3564, 0.0
    %v3572 = vpack.c.bf16 %v3568, %v3568
    %v3573 = vpack.c.bf16 %v3569, %v3569
    %v3574 = vpack.c.bf16 %v3570, %v3570
    %v3575 = vpack.c.bf16 %v3571, %v3571
    %s3576 = smul.u32 192, 4
    %s3577 = smul.addr %s3576, 4
    %s3578 = scalar_lea.vmem [#allocation8], %s3577
    %v3579 = vld [vmem:[%s3578] sm:$0xff]
    %v3580 = vld [vmem:[%s3578 + $0x8] sm:$0xff]
    %v3581 = vld [vmem:[%s3578 + $0x10] sm:$0xff]
    %v3582 = vld [vmem:[%s3578 + $0x18] sm:$0xff]
    %v3583 = vld [vmem:[%s3578 + $0x20] sm:$0xff]
    %v3584 = vld [vmem:[%s3578 + $0x28] sm:$0xff]
    %v3585 = vld [vmem:[%s3578 + $0x30] sm:$0xff]
    %v3586 = vld [vmem:[%s3578 + $0x38] sm:$0xff]
    %v3587 = vld [vmem:[%s3578 + $0x40] sm:$0xff]
    %v3588 = vld [vmem:[%s3578 + $0x48] sm:$0xff]
    %v3589 = vld [vmem:[%s3578 + $0x50] sm:$0xff]
    %v3590 = vld [vmem:[%s3578 + $0x58] sm:$0xff]
    %v3591 = vld [vmem:[%s3578 + $0x60] sm:$0xff]
    %v3592 = vld [vmem:[%s3578 + $0x68] sm:$0xff]
    %v3593 = vld [vmem:[%s3578 + $0x70] sm:$0xff]
    %v3594 = vld [vmem:[%s3578 + $0x78] sm:$0xff]
    %v3595 = vld [vmem:[%s3578 + $0x80] sm:$0xff]
    %v3596 = vld [vmem:[%s3578 + $0x88] sm:$0xff]
    %v3597 = vld [vmem:[%s3578 + $0x90] sm:$0xff]
    %v3598 = vld [vmem:[%s3578 + $0x98] sm:$0xff]
    %v3599 = vld [vmem:[%s3578 + $0xa0] sm:$0xff]
    %v3600 = vld [vmem:[%s3578 + $0xa8] sm:$0xff]
    %v3601 = vld [vmem:[%s3578 + $0xb0] sm:$0xff]
    %v3602 = vld [vmem:[%s3578 + $0xb8] sm:$0xff]
    %v3603 = vld [vmem:[%s3578 + $0xc0] sm:$0xff]
    %v3604 = vld [vmem:[%s3578 + $0xc8] sm:$0xff]
    %v3605 = vld [vmem:[%s3578 + $0xd0] sm:$0xff]
    %v3606 = vld [vmem:[%s3578 + $0xd8] sm:$0xff]
    %v3607 = vld [vmem:[%s3578 + $0xe0] sm:$0xff]
    %v3608 = vld [vmem:[%s3578 + $0xe8] sm:$0xff]
    %v3609 = vld [vmem:[%s3578 + $0xf0] sm:$0xff]
    %v3610 = vld [vmem:[%s3578 + $0xf8] sm:$0xff]
    %v3611 = vld [vmem:[%s3578 + $0x100] sm:$0xff]
    %v3612 = vld [vmem:[%s3578 + $0x108] sm:$0xff]
    %v3613 = vld [vmem:[%s3578 + $0x110] sm:$0xff]
    %v3614 = vld [vmem:[%s3578 + $0x118] sm:$0xff]
    %v3615 = vld [vmem:[%s3578 + $0x120] sm:$0xff]
    %v3616 = vld [vmem:[%s3578 + $0x128] sm:$0xff]
    %v3617 = vld [vmem:[%s3578 + $0x130] sm:$0xff]
    %v3618 = vld [vmem:[%s3578 + $0x138] sm:$0xff]
    %v3619 = vld [vmem:[%s3578 + $0x140] sm:$0xff]
    %v3620 = vld [vmem:[%s3578 + $0x148] sm:$0xff]
    %v3621 = vld [vmem:[%s3578 + $0x150] sm:$0xff]
    %v3622 = vld [vmem:[%s3578 + $0x158] sm:$0xff]
    %v3623 = vld [vmem:[%s3578 + $0x160] sm:$0xff]
    %v3624 = vld [vmem:[%s3578 + $0x168] sm:$0xff]
    %v3625 = vld [vmem:[%s3578 + $0x170] sm:$0xff]
    %v3626 = vld [vmem:[%s3578 + $0x178] sm:$0xff]
    %v3627 = vld [vmem:[%s3578 + $0x180] sm:$0xff]
    %v3628 = vld [vmem:[%s3578 + $0x188] sm:$0xff]
    %v3629 = vld [vmem:[%s3578 + $0x190] sm:$0xff]
    %v3630 = vld [vmem:[%s3578 + $0x198] sm:$0xff]
    %v3631 = vld [vmem:[%s3578 + $0x1a0] sm:$0xff]
    %v3632 = vld [vmem:[%s3578 + $0x1a8] sm:$0xff]
    %v3633 = vld [vmem:[%s3578 + $0x1b0] sm:$0xff]
    %v3634 = vld [vmem:[%s3578 + $0x1b8] sm:$0xff]
    %v3635 = vld [vmem:[%s3578 + $0x1c0] sm:$0xff]
    %v3636 = vld [vmem:[%s3578 + $0x1c8] sm:$0xff]
    %v3637 = vld [vmem:[%s3578 + $0x1d0] sm:$0xff]
    %v3638 = vld [vmem:[%s3578 + $0x1d8] sm:$0xff]
    %v3639 = vld [vmem:[%s3578 + $0x1e0] sm:$0xff]
    %v3640 = vld [vmem:[%s3578 + $0x1e8] sm:$0xff]
    %v3641 = vld [vmem:[%s3578 + $0x1f0] sm:$0xff]
    %v3642 = vld [vmem:[%s3578 + $0x1f8] sm:$0xff]
    %v3643 = vld [vmem:[%s3578 + $0x200] sm:$0xff]
    %v3644 = vld [vmem:[%s3578 + $0x208] sm:$0xff]
    %v3645 = vld [vmem:[%s3578 + $0x210] sm:$0xff]
    %v3646 = vld [vmem:[%s3578 + $0x218] sm:$0xff]
    %v3647 = vld [vmem:[%s3578 + $0x220] sm:$0xff]
    %v3648 = vld [vmem:[%s3578 + $0x228] sm:$0xff]
    %v3649 = vld [vmem:[%s3578 + $0x230] sm:$0xff]
    %v3650 = vld [vmem:[%s3578 + $0x238] sm:$0xff]
    %v3651 = vld [vmem:[%s3578 + $0x240] sm:$0xff]
    %v3652 = vld [vmem:[%s3578 + $0x248] sm:$0xff]
    %v3653 = vld [vmem:[%s3578 + $0x250] sm:$0xff]
    %v3654 = vld [vmem:[%s3578 + $0x258] sm:$0xff]
    %v3655 = vld [vmem:[%s3578 + $0x260] sm:$0xff]
    %v3656 = vld [vmem:[%s3578 + $0x268] sm:$0xff]
    %v3657 = vld [vmem:[%s3578 + $0x270] sm:$0xff]
    %v3658 = vld [vmem:[%s3578 + $0x278] sm:$0xff]
    %v3659 = vld [vmem:[%s3578 + $0x280] sm:$0xff]
    %v3660 = vld [vmem:[%s3578 + $0x288] sm:$0xff]
    %v3661 = vld [vmem:[%s3578 + $0x290] sm:$0xff]
    %v3662 = vld [vmem:[%s3578 + $0x298] sm:$0xff]
    %v3663 = vld [vmem:[%s3578 + $0x2a0] sm:$0xff]
    %v3664 = vld [vmem:[%s3578 + $0x2a8] sm:$0xff]
    %v3665 = vld [vmem:[%s3578 + $0x2b0] sm:$0xff]
    %v3666 = vld [vmem:[%s3578 + $0x2b8] sm:$0xff]
    %v3667 = vld [vmem:[%s3578 + $0x2c0] sm:$0xff]
    %v3668 = vld [vmem:[%s3578 + $0x2c8] sm:$0xff]
    %v3669 = vld [vmem:[%s3578 + $0x2d0] sm:$0xff]
    %v3670 = vld [vmem:[%s3578 + $0x2d8] sm:$0xff]
    %v3671 = vld [vmem:[%s3578 + $0x2e0] sm:$0xff]
    %v3672 = vld [vmem:[%s3578 + $0x2e8] sm:$0xff]
    %v3673 = vld [vmem:[%s3578 + $0x2f0] sm:$0xff]
    %v3674 = vld [vmem:[%s3578 + $0x2f8] sm:$0xff]
    %v3675 = vld [vmem:[%s3578 + $0x300] sm:$0xff]
    %v3676 = vld [vmem:[%s3578 + $0x308] sm:$0xff]
    %v3677 = vld [vmem:[%s3578 + $0x310] sm:$0xff]
    %v3678 = vld [vmem:[%s3578 + $0x318] sm:$0xff]
    %v3679 = vld [vmem:[%s3578 + $0x320] sm:$0xff]
    %v3680 = vld [vmem:[%s3578 + $0x328] sm:$0xff]
    %v3681 = vld [vmem:[%s3578 + $0x330] sm:$0xff]
    %v3682 = vld [vmem:[%s3578 + $0x338] sm:$0xff]
    %v3683 = vld [vmem:[%s3578 + $0x340] sm:$0xff]
    %v3684 = vld [vmem:[%s3578 + $0x348] sm:$0xff]
    %v3685 = vld [vmem:[%s3578 + $0x350] sm:$0xff]
    %v3686 = vld [vmem:[%s3578 + $0x358] sm:$0xff]
    %v3687 = vld [vmem:[%s3578 + $0x360] sm:$0xff]
    %v3688 = vld [vmem:[%s3578 + $0x368] sm:$0xff]
    %v3689 = vld [vmem:[%s3578 + $0x370] sm:$0xff]
    %v3690 = vld [vmem:[%s3578 + $0x378] sm:$0xff]
    %v3691 = vld [vmem:[%s3578 + $0x380] sm:$0xff]
    %v3692 = vld [vmem:[%s3578 + $0x388] sm:$0xff]
    %v3693 = vld [vmem:[%s3578 + $0x390] sm:$0xff]
    %v3694 = vld [vmem:[%s3578 + $0x398] sm:$0xff]
    %v3695 = vld [vmem:[%s3578 + $0x3a0] sm:$0xff]
    %v3696 = vld [vmem:[%s3578 + $0x3a8] sm:$0xff]
    %v3697 = vld [vmem:[%s3578 + $0x3b0] sm:$0xff]
    %v3698 = vld [vmem:[%s3578 + $0x3b8] sm:$0xff]
    %v3699 = vld [vmem:[%s3578 + $0x3c0] sm:$0xff]
    %v3700 = vld [vmem:[%s3578 + $0x3c8] sm:$0xff]
    %v3701 = vld [vmem:[%s3578 + $0x3d0] sm:$0xff]
    %v3702 = vld [vmem:[%s3578 + $0x3d8] sm:$0xff]
    %v3703 = vld [vmem:[%s3578 + $0x3e0] sm:$0xff]
    %v3704 = vld [vmem:[%s3578 + $0x3e8] sm:$0xff]
    %v3705 = vld [vmem:[%s3578 + $0x3f0] sm:$0xff]
    %v3706 = vld [vmem:[%s3578 + $0x3f8] sm:$0xff]
    %v3835 = vunpack.c.l.b16 %v3579
    %v3836 = vunpack.c.h.b16 %v3579
    %v3837 = vunpack.c.l.b16 %v3580
    %v3838 = vunpack.c.h.b16 %v3580
    %v3839 = vunpack.c.l.b16 %v3581
    %v3840 = vunpack.c.h.b16 %v3581
    %v3841 = vunpack.c.l.b16 %v3582
    %v3842 = vunpack.c.h.b16 %v3582
    %v3843 = vunpack.c.l.b16 %v3583
    %v3844 = vunpack.c.h.b16 %v3583
    %v3845 = vunpack.c.l.b16 %v3584
    %v3846 = vunpack.c.h.b16 %v3584
    %v3847 = vunpack.c.l.b16 %v3585
    %v3848 = vunpack.c.h.b16 %v3585
    %v3849 = vunpack.c.l.b16 %v3586
    %v3850 = vunpack.c.h.b16 %v3586
    %v3851 = vunpack.c.l.b16 %v3587
    %v3852 = vunpack.c.h.b16 %v3587
    %v3853 = vunpack.c.l.b16 %v3588
    %v3854 = vunpack.c.h.b16 %v3588
    %v3855 = vunpack.c.l.b16 %v3589
    %v3856 = vunpack.c.h.b16 %v3589
    %v3857 = vunpack.c.l.b16 %v3590
    %v3858 = vunpack.c.h.b16 %v3590
    %v3859 = vunpack.c.l.b16 %v3591
    %v3860 = vunpack.c.h.b16 %v3591
    %v3861 = vunpack.c.l.b16 %v3592
    %v3862 = vunpack.c.h.b16 %v3592
    %v3863 = vunpack.c.l.b16 %v3593
    %v3864 = vunpack.c.h.b16 %v3593
    %v3865 = vunpack.c.l.b16 %v3594
    %v3866 = vunpack.c.h.b16 %v3594
    %v3867 = vunpack.c.l.b16 %v3595
    %v3868 = vunpack.c.h.b16 %v3595
    %v3869 = vunpack.c.l.b16 %v3596
    %v3870 = vunpack.c.h.b16 %v3596
    %v3871 = vunpack.c.l.b16 %v3597
    %v3872 = vunpack.c.h.b16 %v3597
    %v3873 = vunpack.c.l.b16 %v3598
    %v3874 = vunpack.c.h.b16 %v3598
    %v3875 = vunpack.c.l.b16 %v3599
    %v3876 = vunpack.c.h.b16 %v3599
    %v3877 = vunpack.c.l.b16 %v3600
    %v3878 = vunpack.c.h.b16 %v3600
    %v3879 = vunpack.c.l.b16 %v3601
    %v3880 = vunpack.c.h.b16 %v3601
    %v3881 = vunpack.c.l.b16 %v3602
    %v3882 = vunpack.c.h.b16 %v3602
    %v3883 = vunpack.c.l.b16 %v3603
    %v3884 = vunpack.c.h.b16 %v3603
    %v3885 = vunpack.c.l.b16 %v3604
    %v3886 = vunpack.c.h.b16 %v3604
    %v3887 = vunpack.c.l.b16 %v3605
    %v3888 = vunpack.c.h.b16 %v3605
    %v3889 = vunpack.c.l.b16 %v3606
    %v3890 = vunpack.c.h.b16 %v3606
    %v3891 = vunpack.c.l.b16 %v3607
    %v3892 = vunpack.c.h.b16 %v3607
    %v3893 = vunpack.c.l.b16 %v3608
    %v3894 = vunpack.c.h.b16 %v3608
    %v3895 = vunpack.c.l.b16 %v3609
    %v3896 = vunpack.c.h.b16 %v3609
    %v3897 = vunpack.c.l.b16 %v3610
    %v3898 = vunpack.c.h.b16 %v3610
    %v3899 = vunpack.c.l.b16 %v3611
    %v3900 = vunpack.c.h.b16 %v3611
    %v3901 = vunpack.c.l.b16 %v3612
    %v3902 = vunpack.c.h.b16 %v3612
    %v3903 = vunpack.c.l.b16 %v3613
    %v3904 = vunpack.c.h.b16 %v3613
    %v3905 = vunpack.c.l.b16 %v3614
    %v3906 = vunpack.c.h.b16 %v3614
    %v3907 = vunpack.c.l.b16 %v3615
    %v3908 = vunpack.c.h.b16 %v3615
    %v3909 = vunpack.c.l.b16 %v3616
    %v3910 = vunpack.c.h.b16 %v3616
    %v3911 = vunpack.c.l.b16 %v3617
    %v3912 = vunpack.c.h.b16 %v3617
    %v3913 = vunpack.c.l.b16 %v3618
    %v3914 = vunpack.c.h.b16 %v3618
    %v3915 = vunpack.c.l.b16 %v3619
    %v3916 = vunpack.c.h.b16 %v3619
    %v3917 = vunpack.c.l.b16 %v3620
    %v3918 = vunpack.c.h.b16 %v3620
    %v3919 = vunpack.c.l.b16 %v3621
    %v3920 = vunpack.c.h.b16 %v3621
    %v3921 = vunpack.c.l.b16 %v3622
    %v3922 = vunpack.c.h.b16 %v3622
    %v3923 = vunpack.c.l.b16 %v3623
    %v3924 = vunpack.c.h.b16 %v3623
    %v3925 = vunpack.c.l.b16 %v3624
    %v3926 = vunpack.c.h.b16 %v3624
    %v3927 = vunpack.c.l.b16 %v3625
    %v3928 = vunpack.c.h.b16 %v3625
    %v3929 = vunpack.c.l.b16 %v3626
    %v3930 = vunpack.c.h.b16 %v3626
    %v3931 = vunpack.c.l.b16 %v3627
    %v3932 = vunpack.c.h.b16 %v3627
    %v3933 = vunpack.c.l.b16 %v3628
    %v3934 = vunpack.c.h.b16 %v3628
    %v3935 = vunpack.c.l.b16 %v3629
    %v3936 = vunpack.c.h.b16 %v3629
    %v3937 = vunpack.c.l.b16 %v3630
    %v3938 = vunpack.c.h.b16 %v3630
    %v3939 = vunpack.c.l.b16 %v3631
    %v3940 = vunpack.c.h.b16 %v3631
    %v3941 = vunpack.c.l.b16 %v3632
    %v3942 = vunpack.c.h.b16 %v3632
    %v3943 = vunpack.c.l.b16 %v3633
    %v3944 = vunpack.c.h.b16 %v3633
    %v3945 = vunpack.c.l.b16 %v3634
    %v3946 = vunpack.c.h.b16 %v3634
    %v3947 = vunpack.c.l.b16 %v3635
    %v3948 = vunpack.c.h.b16 %v3635
    %v3949 = vunpack.c.l.b16 %v3636
    %v3950 = vunpack.c.h.b16 %v3636
    %v3951 = vunpack.c.l.b16 %v3637
    %v3952 = vunpack.c.h.b16 %v3637
    %v3953 = vunpack.c.l.b16 %v3638
    %v3954 = vunpack.c.h.b16 %v3638
    %v3955 = vunpack.c.l.b16 %v3639
    %v3956 = vunpack.c.h.b16 %v3639
    %v3957 = vunpack.c.l.b16 %v3640
    %v3958 = vunpack.c.h.b16 %v3640
    %v3959 = vunpack.c.l.b16 %v3641
    %v3960 = vunpack.c.h.b16 %v3641
    %v3961 = vunpack.c.l.b16 %v3642
    %v3962 = vunpack.c.h.b16 %v3642
    %v3963 = vunpack.c.l.b16 %v3643
    %v3964 = vunpack.c.h.b16 %v3643
    %v3965 = vunpack.c.l.b16 %v3644
    %v3966 = vunpack.c.h.b16 %v3644
    %v3967 = vunpack.c.l.b16 %v3645
    %v3968 = vunpack.c.h.b16 %v3645
    %v3969 = vunpack.c.l.b16 %v3646
    %v3970 = vunpack.c.h.b16 %v3646
    %v3971 = vunpack.c.l.b16 %v3647
    %v3972 = vunpack.c.h.b16 %v3647
    %v3973 = vunpack.c.l.b16 %v3648
    %v3974 = vunpack.c.h.b16 %v3648
    %v3975 = vunpack.c.l.b16 %v3649
    %v3976 = vunpack.c.h.b16 %v3649
    %v3977 = vunpack.c.l.b16 %v3650
    %v3978 = vunpack.c.h.b16 %v3650
    %v3979 = vunpack.c.l.b16 %v3651
    %v3980 = vunpack.c.h.b16 %v3651
    %v3981 = vunpack.c.l.b16 %v3652
    %v3982 = vunpack.c.h.b16 %v3652
    %v3983 = vunpack.c.l.b16 %v3653
    %v3984 = vunpack.c.h.b16 %v3653
    %v3985 = vunpack.c.l.b16 %v3654
    %v3986 = vunpack.c.h.b16 %v3654
    %v3987 = vunpack.c.l.b16 %v3655
    %v3988 = vunpack.c.h.b16 %v3655
    %v3989 = vunpack.c.l.b16 %v3656
    %v3990 = vunpack.c.h.b16 %v3656
    %v3991 = vunpack.c.l.b16 %v3657
    %v3992 = vunpack.c.h.b16 %v3657
    %v3993 = vunpack.c.l.b16 %v3658
    %v3994 = vunpack.c.h.b16 %v3658
    %v3995 = vunpack.c.l.b16 %v3659
    %v3996 = vunpack.c.h.b16 %v3659
    %v3997 = vunpack.c.l.b16 %v3660
    %v3998 = vunpack.c.h.b16 %v3660
    %v3999 = vunpack.c.l.b16 %v3661
    %v4000 = vunpack.c.h.b16 %v3661
    %v4001 = vunpack.c.l.b16 %v3662
    %v4002 = vunpack.c.h.b16 %v3662
    %v4003 = vunpack.c.l.b16 %v3663
    %v4004 = vunpack.c.h.b16 %v3663
    %v4005 = vunpack.c.l.b16 %v3664
    %v4006 = vunpack.c.h.b16 %v3664
    %v4007 = vunpack.c.l.b16 %v3665
    %v4008 = vunpack.c.h.b16 %v3665
    %v4009 = vunpack.c.l.b16 %v3666
    %v4010 = vunpack.c.h.b16 %v3666
    %v4011 = vunpack.c.l.b16 %v3667
    %v4012 = vunpack.c.h.b16 %v3667
    %v4013 = vunpack.c.l.b16 %v3668
    %v4014 = vunpack.c.h.b16 %v3668
    %v4015 = vunpack.c.l.b16 %v3669
    %v4016 = vunpack.c.h.b16 %v3669
    %v4017 = vunpack.c.l.b16 %v3670
    %v4018 = vunpack.c.h.b16 %v3670
    %v4019 = vunpack.c.l.b16 %v3671
    %v4020 = vunpack.c.h.b16 %v3671
    %v4021 = vunpack.c.l.b16 %v3672
    %v4022 = vunpack.c.h.b16 %v3672
    %v4023 = vunpack.c.l.b16 %v3673
    %v4024 = vunpack.c.h.b16 %v3673
    %v4025 = vunpack.c.l.b16 %v3674
    %v4026 = vunpack.c.h.b16 %v3674
    %v4027 = vunpack.c.l.b16 %v3675
    %v4028 = vunpack.c.h.b16 %v3675
    %v4029 = vunpack.c.l.b16 %v3676
    %v4030 = vunpack.c.h.b16 %v3676
    %v4031 = vunpack.c.l.b16 %v3677
    %v4032 = vunpack.c.h.b16 %v3677
    %v4033 = vunpack.c.l.b16 %v3678
    %v4034 = vunpack.c.h.b16 %v3678
    %v4035 = vunpack.c.l.b16 %v3679
    %v4036 = vunpack.c.h.b16 %v3679
    %v4037 = vunpack.c.l.b16 %v3680
    %v4038 = vunpack.c.h.b16 %v3680
    %v4039 = vunpack.c.l.b16 %v3681
    %v4040 = vunpack.c.h.b16 %v3681
    %v4041 = vunpack.c.l.b16 %v3682
    %v4042 = vunpack.c.h.b16 %v3682
    %v4043 = vunpack.c.l.b16 %v3683
    %v4044 = vunpack.c.h.b16 %v3683
    %v4045 = vunpack.c.l.b16 %v3684
    %v4046 = vunpack.c.h.b16 %v3684
    %v4047 = vunpack.c.l.b16 %v3685
    %v4048 = vunpack.c.h.b16 %v3685
    %v4049 = vunpack.c.l.b16 %v3686
    %v4050 = vunpack.c.h.b16 %v3686
    %v4051 = vunpack.c.l.b16 %v3687
    %v4052 = vunpack.c.h.b16 %v3687
    %v4053 = vunpack.c.l.b16 %v3688
    %v4054 = vunpack.c.h.b16 %v3688
    %v4055 = vunpack.c.l.b16 %v3689
    %v4056 = vunpack.c.h.b16 %v3689
    %v4057 = vunpack.c.l.b16 %v3690
    %v4058 = vunpack.c.h.b16 %v3690
    %v4059 = vunpack.c.l.b16 %v3691
    %v4060 = vunpack.c.h.b16 %v3691
    %v4061 = vunpack.c.l.b16 %v3692
    %v4062 = vunpack.c.h.b16 %v3692
    %v4063 = vunpack.c.l.b16 %v3693
    %v4064 = vunpack.c.h.b16 %v3693
    %v4065 = vunpack.c.l.b16 %v3694
    %v4066 = vunpack.c.h.b16 %v3694
    %v4067 = vunpack.c.l.b16 %v3695
    %v4068 = vunpack.c.h.b16 %v3695
    %v4069 = vunpack.c.l.b16 %v3696
    %v4070 = vunpack.c.h.b16 %v3696
    %v4071 = vunpack.c.l.b16 %v3697
    %v4072 = vunpack.c.h.b16 %v3697
    %v4073 = vunpack.c.l.b16 %v3698
    %v4074 = vunpack.c.h.b16 %v3698
    %v4075 = vunpack.c.l.b16 %v3699
    %v4076 = vunpack.c.h.b16 %v3699
    %v4077 = vunpack.c.l.b16 %v3700
    %v4078 = vunpack.c.h.b16 %v3700
    %v4079 = vunpack.c.l.b16 %v3701
    %v4080 = vunpack.c.h.b16 %v3701
    %v4081 = vunpack.c.l.b16 %v3702
    %v4082 = vunpack.c.h.b16 %v3702
    %v4083 = vunpack.c.l.b16 %v3703
    %v4084 = vunpack.c.h.b16 %v3703
    %v4085 = vunpack.c.l.b16 %v3704
    %v4086 = vunpack.c.h.b16 %v3704
    %v4087 = vunpack.c.l.b16 %v3705
    %v4088 = vunpack.c.h.b16 %v3705
    %v4089 = vunpack.c.l.b16 %v3706
    %v4090 = vunpack.c.h.b16 %v3706
    %v4091 = vpack.c.b16 %v3839, %v3835
    %v4092 = vpack.c.b16 %v3840, %v3836
    %v4093 = vpack.c.b16 %v3841, %v3837
    %v4094 = vpack.c.b16 %v3842, %v3838
    %v4095 = vpack.c.b16 %v3847, %v3843
    %v4096 = vpack.c.b16 %v3848, %v3844
    %v4097 = vpack.c.b16 %v3849, %v3845
    %v4098 = vpack.c.b16 %v3850, %v3846
    %v4099 = vpack.c.b16 %v3855, %v3851
    %v4100 = vpack.c.b16 %v3856, %v3852
    %v4101 = vpack.c.b16 %v3857, %v3853
    %v4102 = vpack.c.b16 %v3858, %v3854
    %v4103 = vpack.c.b16 %v3863, %v3859
    %v4104 = vpack.c.b16 %v3864, %v3860
    %v4105 = vpack.c.b16 %v3865, %v3861
    %v4106 = vpack.c.b16 %v3866, %v3862
    %v4107 = vpack.c.b16 %v3871, %v3867
    %v4108 = vpack.c.b16 %v3872, %v3868
    %v4109 = vpack.c.b16 %v3873, %v3869
    %v4110 = vpack.c.b16 %v3874, %v3870
    %v4111 = vpack.c.b16 %v3879, %v3875
    %v4112 = vpack.c.b16 %v3880, %v3876
    %v4113 = vpack.c.b16 %v3881, %v3877
    %v4114 = vpack.c.b16 %v3882, %v3878
    %v4115 = vpack.c.b16 %v3887, %v3883
    %v4116 = vpack.c.b16 %v3888, %v3884
    %v4117 = vpack.c.b16 %v3889, %v3885
    %v4118 = vpack.c.b16 %v3890, %v3886
    %v4119 = vpack.c.b16 %v3895, %v3891
    %v4120 = vpack.c.b16 %v3896, %v3892
    %v4121 = vpack.c.b16 %v3897, %v3893
    %v4122 = vpack.c.b16 %v3898, %v3894
    %v4123 = vpack.c.b16 %v3903, %v3899
    %v4124 = vpack.c.b16 %v3904, %v3900
    %v4125 = vpack.c.b16 %v3905, %v3901
    %v4126 = vpack.c.b16 %v3906, %v3902
    %v4127 = vpack.c.b16 %v3911, %v3907
    %v4128 = vpack.c.b16 %v3912, %v3908
    %v4129 = vpack.c.b16 %v3913, %v3909
    %v4130 = vpack.c.b16 %v3914, %v3910
    %v4131 = vpack.c.b16 %v3919, %v3915
    %v4132 = vpack.c.b16 %v3920, %v3916
    %v4133 = vpack.c.b16 %v3921, %v3917
    %v4134 = vpack.c.b16 %v3922, %v3918
    %v4135 = vpack.c.b16 %v3927, %v3923
    %v4136 = vpack.c.b16 %v3928, %v3924
    %v4137 = vpack.c.b16 %v3929, %v3925
    %v4138 = vpack.c.b16 %v3930, %v3926
    %v4139 = vpack.c.b16 %v3935, %v3931
    %v4140 = vpack.c.b16 %v3936, %v3932
    %v4141 = vpack.c.b16 %v3937, %v3933
    %v4142 = vpack.c.b16 %v3938, %v3934
    %v4143 = vpack.c.b16 %v3943, %v3939
    %v4144 = vpack.c.b16 %v3944, %v3940
    %v4145 = vpack.c.b16 %v3945, %v3941
    %v4146 = vpack.c.b16 %v3946, %v3942
    %v4147 = vpack.c.b16 %v3951, %v3947
    %v4148 = vpack.c.b16 %v3952, %v3948
    %v4149 = vpack.c.b16 %v3953, %v3949
    %v4150 = vpack.c.b16 %v3954, %v3950
    %v4151 = vpack.c.b16 %v3959, %v3955
    %v4152 = vpack.c.b16 %v3960, %v3956
    %v4153 = vpack.c.b16 %v3961, %v3957
    %v4154 = vpack.c.b16 %v3962, %v3958
    %v4155 = vpack.c.b16 %v3967, %v3963
    %v4156 = vpack.c.b16 %v3968, %v3964
    %v4157 = vpack.c.b16 %v3969, %v3965
    %v4158 = vpack.c.b16 %v3970, %v3966
    %v4159 = vpack.c.b16 %v3975, %v3971
    %v4160 = vpack.c.b16 %v3976, %v3972
    %v4161 = vpack.c.b16 %v3977, %v3973
    %v4162 = vpack.c.b16 %v3978, %v3974
    %v4163 = vpack.c.b16 %v3983, %v3979
    %v4164 = vpack.c.b16 %v3984, %v3980
    %v4165 = vpack.c.b16 %v3985, %v3981
    %v4166 = vpack.c.b16 %v3986, %v3982
    %v4167 = vpack.c.b16 %v3991, %v3987
    %v4168 = vpack.c.b16 %v3992, %v3988
    %v4169 = vpack.c.b16 %v3993, %v3989
    %v4170 = vpack.c.b16 %v3994, %v3990
    %v4171 = vpack.c.b16 %v3999, %v3995
    %v4172 = vpack.c.b16 %v4000, %v3996
    %v4173 = vpack.c.b16 %v4001, %v3997
    %v4174 = vpack.c.b16 %v4002, %v3998
    %v4175 = vpack.c.b16 %v4007, %v4003
    %v4176 = vpack.c.b16 %v4008, %v4004
    %v4177 = vpack.c.b16 %v4009, %v4005
    %v4178 = vpack.c.b16 %v4010, %v4006
    %v4179 = vpack.c.b16 %v4015, %v4011
    %v4180 = vpack.c.b16 %v4016, %v4012
    %v4181 = vpack.c.b16 %v4017, %v4013
    %v4182 = vpack.c.b16 %v4018, %v4014
    %v4183 = vpack.c.b16 %v4023, %v4019
    %v4184 = vpack.c.b16 %v4024, %v4020
    %v4185 = vpack.c.b16 %v4025, %v4021
    %v4186 = vpack.c.b16 %v4026, %v4022
    %v4187 = vpack.c.b16 %v4031, %v4027
    %v4188 = vpack.c.b16 %v4032, %v4028
    %v4189 = vpack.c.b16 %v4033, %v4029
    %v4190 = vpack.c.b16 %v4034, %v4030
    %v4191 = vpack.c.b16 %v4039, %v4035
    %v4192 = vpack.c.b16 %v4040, %v4036
    %v4193 = vpack.c.b16 %v4041, %v4037
    %v4194 = vpack.c.b16 %v4042, %v4038
    %v4195 = vpack.c.b16 %v4047, %v4043
    %v4196 = vpack.c.b16 %v4048, %v4044
    %v4197 = vpack.c.b16 %v4049, %v4045
    %v4198 = vpack.c.b16 %v4050, %v4046
    %v4199 = vpack.c.b16 %v4055, %v4051
    %v4200 = vpack.c.b16 %v4056, %v4052
    %v4201 = vpack.c.b16 %v4057, %v4053
    %v4202 = vpack.c.b16 %v4058, %v4054
    %v4203 = vpack.c.b16 %v4063, %v4059
    %v4204 = vpack.c.b16 %v4064, %v4060
    %v4205 = vpack.c.b16 %v4065, %v4061
    %v4206 = vpack.c.b16 %v4066, %v4062
    %v4207 = vpack.c.b16 %v4071, %v4067
    %v4208 = vpack.c.b16 %v4072, %v4068
    %v4209 = vpack.c.b16 %v4073, %v4069
    %v4210 = vpack.c.b16 %v4074, %v4070
    %v4211 = vpack.c.b16 %v4079, %v4075
    %v4212 = vpack.c.b16 %v4080, %v4076
    %v4213 = vpack.c.b16 %v4081, %v4077
    %v4214 = vpack.c.b16 %v4082, %v4078
    %v4215 = vpack.c.b16 %v4087, %v4083
    %v4216 = vpack.c.b16 %v4088, %v4084
    %v4217 = vpack.c.b16 %v4089, %v4085
    %v4218 = vpack.c.b16 %v4090, %v4086
    %4347 = vmatprep.subr.bf16.mxu0 %v4120
    %4348 = vmatpush1.bf16.msra.mxu0 %v4119
    %4349 = vmatprep.subr.bf16.mxu0 %v4116
    %4350 = vmatpush1.bf16.msra.mxu0 %v4115
    %4351 = vmatprep.subr.bf16.mxu0 %v4112
    %4352 = vmatpush1.bf16.msra.mxu0 %v4111
    %4353 = vmatprep.subr.bf16.mxu0 %v4108
    %4354 = vmatpush1.bf16.msra.mxu0 %v4107
    %4355 = vmatprep.subr.bf16.mxu0 %v4104
    %4356 = vmatpush1.bf16.msra.mxu0 %v4103
    %4357 = vmatprep.subr.bf16.mxu0 %v4100
    %4358 = vmatpush1.bf16.msra.mxu0 %v4099
    %4359 = vmatprep.subr.bf16.mxu0 %v4096
    %4360 = vmatpush1.bf16.msra.mxu0 %v4095
    %4361 = vmatprep.subr.bf16.mxu0 %v4092
    %4362 = vmatpush1.bf16.msra.mxu0 %v4091
    %4363 = vmatprep.subr.bf16.mxu0 %v4152
    %4364 = vmatpush2.bf16.msra.mxu0 %v4151
    %4365 = vmatprep.subr.bf16.mxu0 %v4148
    %4366 = vmatpush2.bf16.msra.mxu0 %v4147
    %4367 = vmatprep.subr.bf16.mxu0 %v4144
    %4368 = vmatpush2.bf16.msra.mxu0 %v4143
    %4369 = vmatprep.subr.bf16.mxu0 %v4140
    %4370 = vmatpush2.bf16.msra.mxu0 %v4139
    %4371 = vmatprep.subr.bf16.mxu0 %v4136
    %4372 = vmatpush2.bf16.msra.mxu0 %v4135
    %4373 = vmatprep.subr.bf16.mxu0 %v4132
    %4374 = vmatpush2.bf16.msra.mxu0 %v4131
    %4375 = vmatprep.subr.bf16.mxu0 %v4128
    %4376 = vmatpush2.bf16.msra.mxu0 %v4127
    %4377 = vmatprep.subr.bf16.mxu0 %v4124
    %4378 = vmatpush2.bf16.msra.mxu0 %v4123
    %4379 = vmatprep.mubr.bf16.mxu0 %v3573
    %4380 = vmatmul.mubr.bf16.gmra.mxu0 %v3572
    %v4381 = vpop.f32.mrf.mxu0
    %v4382 = vadd.f32 0.0, %v4381
    %v4383 = vpop.f32.mrf.mxu0
    %v4384 = vadd.f32 0.0, %v4383
    %v4385 = vpop.f32.mrf.mxu0
    %v4386 = vpop.f32.mrf.mxu0
    %4387 = vdwg.mxu0
    %4388 = vmatprep.subr.bf16.mxu0 %v4184
    %4389 = vmatpush1.bf16.msra.mxu0 %v4183
    %4390 = vmatprep.subr.bf16.mxu0 %v4180
    %4391 = vmatpush1.bf16.msra.mxu0 %v4179
    %4392 = vmatprep.subr.bf16.mxu0 %v4176
    %4393 = vmatpush1.bf16.msra.mxu0 %v4175
    %4394 = vmatprep.subr.bf16.mxu0 %v4172
    %4395 = vmatpush1.bf16.msra.mxu0 %v4171
    %4396 = vmatprep.subr.bf16.mxu0 %v4168
    %4397 = vmatpush1.bf16.msra.mxu0 %v4167
    %4398 = vmatprep.subr.bf16.mxu0 %v4164
    %4399 = vmatpush1.bf16.msra.mxu0 %v4163
    %4400 = vmatprep.subr.bf16.mxu0 %v4160
    %4401 = vmatpush1.bf16.msra.mxu0 %v4159
    %4402 = vmatprep.subr.bf16.mxu0 %v4156
    %4403 = vmatpush1.bf16.msra.mxu0 %v4155
    %4404 = vmatprep.subr.bf16.mxu0 %v4216
    %4405 = vmatpush2.bf16.msra.mxu0 %v4215
    %4406 = vmatprep.subr.bf16.mxu0 %v4212
    %4407 = vmatpush2.bf16.msra.mxu0 %v4211
    %4408 = vmatprep.subr.bf16.mxu0 %v4208
    %4409 = vmatpush2.bf16.msra.mxu0 %v4207
    %4410 = vmatprep.subr.bf16.mxu0 %v4204
    %4411 = vmatpush2.bf16.msra.mxu0 %v4203
    %4412 = vmatprep.subr.bf16.mxu0 %v4200
    %4413 = vmatpush2.bf16.msra.mxu0 %v4199
    %4414 = vmatprep.subr.bf16.mxu0 %v4196
    %4415 = vmatpush2.bf16.msra.mxu0 %v4195
    %4416 = vmatprep.subr.bf16.mxu0 %v4192
    %4417 = vmatpush2.bf16.msra.mxu0 %v4191
    %4418 = vmatprep.subr.bf16.mxu0 %v4188
    %4419 = vmatpush2.bf16.msra.mxu0 %v4187
    %4420 = vmatprep.mubr.bf16.mxu0 %v3575
    %4421 = vmatmul.mubr.bf16.gmra.mxu0 %v3574
    %v4422 = vpop.f32.mrf.mxu0
    %v4423 = vadd.f32 %v4382, %v4422
    %v4424 = vpop.f32.mrf.mxu0
    %v4425 = vadd.f32 %v4384, %v4424
    %v4426 = vpop.f32.mrf.mxu0
    %v4427 = vpop.f32.mrf.mxu0
    %4428 = vdwg.mxu0
    %4429 = vmatprep.subr.bf16.mxu0 %v4122
    %4430 = vmatpush1.bf16.msra.mxu0 %v4121
    %4431 = vmatprep.subr.bf16.mxu0 %v4118
    %4432 = vmatpush1.bf16.msra.mxu0 %v4117
    %4433 = vmatprep.subr.bf16.mxu0 %v4114
    %4434 = vmatpush1.bf16.msra.mxu0 %v4113
    %4435 = vmatprep.subr.bf16.mxu0 %v4110
    %4436 = vmatpush1.bf16.msra.mxu0 %v4109
    %4437 = vmatprep.subr.bf16.mxu0 %v4106
    %4438 = vmatpush1.bf16.msra.mxu0 %v4105
    %4439 = vmatprep.subr.bf16.mxu0 %v4102
    %4440 = vmatpush1.bf16.msra.mxu0 %v4101
    %4441 = vmatprep.subr.bf16.mxu0 %v4098
    %4442 = vmatpush1.bf16.msra.mxu0 %v4097
    %4443 = vmatprep.subr.bf16.mxu0 %v4094
    %4444 = vmatpush1.bf16.msra.mxu0 %v4093
    %4445 = vmatprep.subr.bf16.mxu0 %v4154
    %4446 = vmatpush2.bf16.msra.mxu0 %v4153
    %4447 = vmatprep.subr.bf16.mxu0 %v4150
    %4448 = vmatpush2.bf16.msra.mxu0 %v4149
    %4449 = vmatprep.subr.bf16.mxu0 %v4146
    %4450 = vmatpush2.bf16.msra.mxu0 %v4145
    %4451 = vmatprep.subr.bf16.mxu0 %v4142
    %4452 = vmatpush2.bf16.msra.mxu0 %v4141
    %4453 = vmatprep.subr.bf16.mxu0 %v4138
    %4454 = vmatpush2.bf16.msra.mxu0 %v4137
    %4455 = vmatprep.subr.bf16.mxu0 %v4134
    %4456 = vmatpush2.bf16.msra.mxu0 %v4133
    %4457 = vmatprep.subr.bf16.mxu0 %v4130
    %4458 = vmatpush2.bf16.msra.mxu0 %v4129
    %4459 = vmatprep.subr.bf16.mxu0 %v4126
    %4460 = vmatpush2.bf16.msra.mxu0 %v4125
    %4461 = vmatprep.mubr.bf16.mxu0 %v3573
    %4462 = vmatmul.mubr.bf16.gmra.mxu0 %v3572
    %v4463 = vpop.f32.mrf.mxu0
    %v4464 = vadd.f32 0.0, %v4463
    %v4465 = vpop.f32.mrf.mxu0
    %v4466 = vadd.f32 0.0, %v4465
    %v4467 = vpop.f32.mrf.mxu0
    %v4468 = vpop.f32.mrf.mxu0
    %4469 = vdwg.mxu0
    %4470 = vmatprep.subr.bf16.mxu0 %v4186
    %4471 = vmatpush1.bf16.msra.mxu0 %v4185
    %4472 = vmatprep.subr.bf16.mxu0 %v4182
    %4473 = vmatpush1.bf16.msra.mxu0 %v4181
    %4474 = vmatprep.subr.bf16.mxu0 %v4178
    %4475 = vmatpush1.bf16.msra.mxu0 %v4177
    %4476 = vmatprep.subr.bf16.mxu0 %v4174
    %4477 = vmatpush1.bf16.msra.mxu0 %v4173
    %4478 = vmatprep.subr.bf16.mxu0 %v4170
    %4479 = vmatpush1.bf16.msra.mxu0 %v4169
    %4480 = vmatprep.subr.bf16.mxu0 %v4166
    %4481 = vmatpush1.bf16.msra.mxu0 %v4165
    %4482 = vmatprep.subr.bf16.mxu0 %v4162
    %4483 = vmatpush1.bf16.msra.mxu0 %v4161
    %4484 = vmatprep.subr.bf16.mxu0 %v4158
    %4485 = vmatpush1.bf16.msra.mxu0 %v4157
    %4486 = vmatprep.subr.bf16.mxu0 %v4218
    %4487 = vmatpush2.bf16.msra.mxu0 %v4217
    %4488 = vmatprep.subr.bf16.mxu0 %v4214
    %4489 = vmatpush2.bf16.msra.mxu0 %v4213
    %4490 = vmatprep.subr.bf16.mxu0 %v4210
    %4491 = vmatpush2.bf16.msra.mxu0 %v4209
    %4492 = vmatprep.subr.bf16.mxu0 %v4206
    %4493 = vmatpush2.bf16.msra.mxu0 %v4205
    %4494 = vmatprep.subr.bf16.mxu0 %v4202
    %4495 = vmatpush2.bf16.msra.mxu0 %v4201
    %4496 = vmatprep.subr.bf16.mxu0 %v4198
    %4497 = vmatpush2.bf16.msra.mxu0 %v4197
    %4498 = vmatprep.subr.bf16.mxu0 %v4194
    %4499 = vmatpush2.bf16.msra.mxu0 %v4193
    %4500 = vmatprep.subr.bf16.mxu0 %v4190
    %4501 = vmatpush2.bf16.msra.mxu0 %v4189
    %4502 = vmatprep.mubr.bf16.mxu0 %v3575
    %4503 = vmatmul.mubr.bf16.gmra.mxu0 %v3574
    %v4504 = vpop.f32.mrf.mxu0
    %v4505 = vadd.f32 %v4464, %v4504
    %v4506 = vpop.f32.mrf.mxu0
    %v4507 = vadd.f32 %v4466, %v4506
    %v4508 = vpop.f32.mrf.mxu0
    %v4509 = vpop.f32.mrf.mxu0
    %4510 = vdwg.mxu0
    %v4511 = vadd.f32 %v3410, %v4423
    %v4512 = vadd.f32 %v3411, %v4425
    %v4513 = vadd.f32 %v3412, %v4505
    %v4514 = vadd.f32 %v3413, %v4507
    %v4515 = vld [vmem:[#allocation10] sm:$0xf]
    %v4517 = vlaneseq
    %v4518 = vshrl.u32 %v4517, 7
    %v4519 = vsub.s32 0, %v4518
    %v4520 = vrot.slane %v4515, %v4519
    %v4521 = vlaneseq
    %v4522 = vshrl.u32 %v4521, 7
    %v4523 = vsub.s32 1, %v4522
    %v4524 = vrot.slane %v4515, %v4523
    %v4525 = vlaneseq
    %v4526 = vshrl.u32 %v4525, 7
    %v4527 = vsub.s32 2, %v4526
    %v4528 = vrot.slane %v4515, %v4527
    %v4529 = vlaneseq
    %v4530 = vshrl.u32 %v4529, 7
    %v4531 = vsub.s32 3, %v4530
    %v4532 = vrot.slane %v4515, %v4531
    %v4537 = vadd.f32 %v4511, %v4520
    %v4538 = vadd.f32 %v4512, %v4524
    %v4539 = vadd.f32 %v4513, %v4528
    %v4540 = vadd.f32 %v4514, %v4532
    %v4541 = vmax.f32 %v4537, 0.0
    %v4542 = vmax.f32 %v4538, 0.0
    %v4543 = vmax.f32 %v4539, 0.0
    %v4544 = vmax.f32 %v4540, 0.0
    %v4545 = vpack.c.bf16 %v4541, %v4541
    %v4546 = vpack.c.bf16 %v4542, %v4542
    %v4547 = vpack.c.bf16 %v4543, %v4543
    %v4548 = vpack.c.bf16 %v4544, %v4544
    %v4549 = vld [vmem:[#allocation11] sm:$0xf]
    %v4550 = vld [vmem:[#allocation11 + $0x4] sm:$0xf]
    %v4551 = vld [vmem:[#allocation11 + $0x8] sm:$0xf]
    %v4552 = vld [vmem:[#allocation11 + $0xc] sm:$0xf]
    %v4553 = vld [vmem:[#allocation11 + $0x10] sm:$0xf]
    %v4554 = vld [vmem:[#allocation11 + $0x14] sm:$0xf]
    %v4555 = vld [vmem:[#allocation11 + $0x18] sm:$0xf]
    %v4556 = vld [vmem:[#allocation11 + $0x1c] sm:$0xf]
    %v4557 = vld [vmem:[#allocation11 + $0x20] sm:$0xf]
    %v4558 = vld [vmem:[#allocation11 + $0x24] sm:$0xf]
    %v4559 = vld [vmem:[#allocation11 + $0x28] sm:$0xf]
    %v4560 = vld [vmem:[#allocation11 + $0x2c] sm:$0xf]
    %v4561 = vld [vmem:[#allocation11 + $0x30] sm:$0xf]
    %v4562 = vld [vmem:[#allocation11 + $0x34] sm:$0xf]
    %v4563 = vld [vmem:[#allocation11 + $0x38] sm:$0xf]
    %v4564 = vld [vmem:[#allocation11 + $0x3c] sm:$0xf]
    %v4565 = vld [vmem:[#allocation11 + $0x40] sm:$0xf]
    %v4566 = vld [vmem:[#allocation11 + $0x44] sm:$0xf]
    %v4567 = vld [vmem:[#allocation11 + $0x48] sm:$0xf]
    %v4568 = vld [vmem:[#allocation11 + $0x4c] sm:$0xf]
    %v4569 = vld [vmem:[#allocation11 + $0x50] sm:$0xf]
    %v4570 = vld [vmem:[#allocation11 + $0x54] sm:$0xf]
    %v4571 = vld [vmem:[#allocation11 + $0x58] sm:$0xf]
    %v4572 = vld [vmem:[#allocation11 + $0x5c] sm:$0xf]
    %v4573 = vld [vmem:[#allocation11 + $0x60] sm:$0xf]
    %v4574 = vld [vmem:[#allocation11 + $0x64] sm:$0xf]
    %v4575 = vld [vmem:[#allocation11 + $0x68] sm:$0xf]
    %v4576 = vld [vmem:[#allocation11 + $0x6c] sm:$0xf]
    %v4577 = vld [vmem:[#allocation11 + $0x70] sm:$0xf]
    %v4578 = vld [vmem:[#allocation11 + $0x74] sm:$0xf]
    %v4579 = vld [vmem:[#allocation11 + $0x78] sm:$0xf]
    %v4580 = vld [vmem:[#allocation11 + $0x7c] sm:$0xf]
    %v4581 = vld [vmem:[#allocation11 + $0x80] sm:$0xf]
    %v4582 = vld [vmem:[#allocation11 + $0x84] sm:$0xf]
    %v4583 = vld [vmem:[#allocation11 + $0x88] sm:$0xf]
    %v4584 = vld [vmem:[#allocation11 + $0x8c] sm:$0xf]
    %v4585 = vld [vmem:[#allocation11 + $0x90] sm:$0xf]
    %v4586 = vld [vmem:[#allocation11 + $0x94] sm:$0xf]
    %v4587 = vld [vmem:[#allocation11 + $0x98] sm:$0xf]
    %v4588 = vld [vmem:[#allocation11 + $0x9c] sm:$0xf]
    %v4589 = vld [vmem:[#allocation11 + $0xa0] sm:$0xf]
    %v4590 = vld [vmem:[#allocation11 + $0xa4] sm:$0xf]
    %v4591 = vld [vmem:[#allocation11 + $0xa8] sm:$0xf]
    %v4592 = vld [vmem:[#allocation11 + $0xac] sm:$0xf]
    %v4593 = vld [vmem:[#allocation11 + $0xb0] sm:$0xf]
    %v4594 = vld [vmem:[#allocation11 + $0xb4] sm:$0xf]
    %v4595 = vld [vmem:[#allocation11 + $0xb8] sm:$0xf]
    %v4596 = vld [vmem:[#allocation11 + $0xbc] sm:$0xf]
    %v4597 = vld [vmem:[#allocation11 + $0xc0] sm:$0xf]
    %v4598 = vld [vmem:[#allocation11 + $0xc4] sm:$0xf]
    %v4599 = vld [vmem:[#allocation11 + $0xc8] sm:$0xf]
    %v4600 = vld [vmem:[#allocation11 + $0xcc] sm:$0xf]
    %v4601 = vld [vmem:[#allocation11 + $0xd0] sm:$0xf]
    %v4602 = vld [vmem:[#allocation11 + $0xd4] sm:$0xf]
    %v4603 = vld [vmem:[#allocation11 + $0xd8] sm:$0xf]
    %v4604 = vld [vmem:[#allocation11 + $0xdc] sm:$0xf]
    %v4605 = vld [vmem:[#allocation11 + $0xe0] sm:$0xf]
    %v4606 = vld [vmem:[#allocation11 + $0xe4] sm:$0xf]
    %v4607 = vld [vmem:[#allocation11 + $0xe8] sm:$0xf]
    %v4608 = vld [vmem:[#allocation11 + $0xec] sm:$0xf]
    %v4609 = vld [vmem:[#allocation11 + $0xf0] sm:$0xf]
    %v4610 = vld [vmem:[#allocation11 + $0xf4] sm:$0xf]
    %v4611 = vld [vmem:[#allocation11 + $0xf8] sm:$0xf]
    %v4612 = vld [vmem:[#allocation11 + $0xfc] sm:$0xf]
    %v4613 = vld [vmem:[#allocation13] sm:$0x1]
    %v4615 = vlaneseq
    %v4616 = vshrl.u32 %v4615, 7
    %v4617 = vsub.s32 0, %v4616
    %v4618 = vrot.slane %v4613, %v4617
    %v4684 = vunpack.c.l.b16 %v4549
    %v4685 = vunpack.c.l.b16 %v4550
    %v4686 = vunpack.c.l.b16 %v4551
    %v4687 = vunpack.c.l.b16 %v4552
    %v4688 = vunpack.c.l.b16 %v4553
    %v4689 = vunpack.c.l.b16 %v4554
    %v4690 = vunpack.c.l.b16 %v4555
    %v4691 = vunpack.c.l.b16 %v4556
    %v4692 = vunpack.c.l.b16 %v4557
    %v4693 = vunpack.c.l.b16 %v4558
    %v4694 = vunpack.c.l.b16 %v4559
    %v4695 = vunpack.c.l.b16 %v4560
    %v4696 = vunpack.c.l.b16 %v4561
    %v4697 = vunpack.c.l.b16 %v4562
    %v4698 = vunpack.c.l.b16 %v4563
    %v4699 = vunpack.c.l.b16 %v4564
    %v4700 = vunpack.c.l.b16 %v4565
    %v4701 = vunpack.c.l.b16 %v4566
    %v4702 = vunpack.c.l.b16 %v4567
    %v4703 = vunpack.c.l.b16 %v4568
    %v4704 = vunpack.c.l.b16 %v4569
    %v4705 = vunpack.c.l.b16 %v4570
    %v4706 = vunpack.c.l.b16 %v4571
    %v4707 = vunpack.c.l.b16 %v4572
    %v4708 = vunpack.c.l.b16 %v4573
    %v4709 = vunpack.c.l.b16 %v4574
    %v4710 = vunpack.c.l.b16 %v4575
    %v4711 = vunpack.c.l.b16 %v4576
    %v4712 = vunpack.c.l.b16 %v4577
    %v4713 = vunpack.c.l.b16 %v4578
    %v4714 = vunpack.c.l.b16 %v4579
    %v4715 = vunpack.c.l.b16 %v4580
    %v4716 = vunpack.c.l.b16 %v4581
    %v4717 = vunpack.c.l.b16 %v4582
    %v4718 = vunpack.c.l.b16 %v4583
    %v4719 = vunpack.c.l.b16 %v4584
    %v4720 = vunpack.c.l.b16 %v4585
    %v4721 = vunpack.c.l.b16 %v4586
    %v4722 = vunpack.c.l.b16 %v4587
    %v4723 = vunpack.c.l.b16 %v4588
    %v4724 = vunpack.c.l.b16 %v4589
    %v4725 = vunpack.c.l.b16 %v4590
    %v4726 = vunpack.c.l.b16 %v4591
    %v4727 = vunpack.c.l.b16 %v4592
    %v4728 = vunpack.c.l.b16 %v4593
    %v4729 = vunpack.c.l.b16 %v4594
    %v4730 = vunpack.c.l.b16 %v4595
    %v4731 = vunpack.c.l.b16 %v4596
    %v4732 = vunpack.c.l.b16 %v4597
    %v4733 = vunpack.c.l.b16 %v4598
    %v4734 = vunpack.c.l.b16 %v4599
    %v4735 = vunpack.c.l.b16 %v4600
    %v4736 = vunpack.c.l.b16 %v4601
    %v4737 = vunpack.c.l.b16 %v4602
    %v4738 = vunpack.c.l.b16 %v4603
    %v4739 = vunpack.c.l.b16 %v4604
    %v4740 = vunpack.c.l.b16 %v4605
    %v4741 = vunpack.c.l.b16 %v4606
    %v4742 = vunpack.c.l.b16 %v4607
    %v4743 = vunpack.c.l.b16 %v4608
    %v4744 = vunpack.c.l.b16 %v4609
    %v4745 = vunpack.c.l.b16 %v4610
    %v4746 = vunpack.c.l.b16 %v4611
    %v4747 = vunpack.c.l.b16 %v4612
    %v4748 = vpack.c.b16 %v4685, %v4684
    %v4749 = vpack.c.b16 %v4687, %v4686
    %v4750 = vpack.c.b16 %v4689, %v4688
    %v4751 = vpack.c.b16 %v4691, %v4690
    %v4752 = vpack.c.b16 %v4693, %v4692
    %v4753 = vpack.c.b16 %v4695, %v4694
    %v4754 = vpack.c.b16 %v4697, %v4696
    %v4755 = vpack.c.b16 %v4699, %v4698
    %v4756 = vpack.c.b16 %v4701, %v4700
    %v4757 = vpack.c.b16 %v4703, %v4702
    %v4758 = vpack.c.b16 %v4705, %v4704
    %v4759 = vpack.c.b16 %v4707, %v4706
    %v4760 = vpack.c.b16 %v4709, %v4708
    %v4761 = vpack.c.b16 %v4711, %v4710
    %v4762 = vpack.c.b16 %v4713, %v4712
    %v4763 = vpack.c.b16 %v4715, %v4714
    %v4764 = vpack.c.b16 %v4717, %v4716
    %v4765 = vpack.c.b16 %v4719, %v4718
    %v4766 = vpack.c.b16 %v4721, %v4720
    %v4767 = vpack.c.b16 %v4723, %v4722
    %v4768 = vpack.c.b16 %v4725, %v4724
    %v4769 = vpack.c.b16 %v4727, %v4726
    %v4770 = vpack.c.b16 %v4729, %v4728
    %v4771 = vpack.c.b16 %v4731, %v4730
    %v4772 = vpack.c.b16 %v4733, %v4732
    %v4773 = vpack.c.b16 %v4735, %v4734
    %v4774 = vpack.c.b16 %v4737, %v4736
    %v4775 = vpack.c.b16 %v4739, %v4738
    %v4776 = vpack.c.b16 %v4741, %v4740
    %v4777 = vpack.c.b16 %v4743, %v4742
    %v4778 = vpack.c.b16 %v4745, %v4744
    %v4779 = vpack.c.b16 %v4747, %v4746
    %4812 = vmatprep.subr.bf16.mxu0 0
    %4813 = vmatpush1.bf16.msra.mxu0 %v4755
    %4814 = vmatprep.subr.bf16.mxu0 0
    %4815 = vmatpush1.bf16.msra.mxu0 %v4754
    %4816 = vmatprep.subr.bf16.mxu0 0
    %4817 = vmatpush1.bf16.msra.mxu0 %v4753
    %4818 = vmatprep.subr.bf16.mxu0 0
    %4819 = vmatpush1.bf16.msra.mxu0 %v4752
    %4820 = vmatprep.subr.bf16.mxu0 0
    %4821 = vmatpush1.bf16.msra.mxu0 %v4751
    %4822 = vmatprep.subr.bf16.mxu0 0
    %4823 = vmatpush1.bf16.msra.mxu0 %v4750
    %4824 = vmatprep.subr.bf16.mxu0 0
    %4825 = vmatpush1.bf16.msra.mxu0 %v4749
    %4826 = vmatprep.subr.bf16.mxu0 0
    %4827 = vmatpush1.bf16.msra.mxu0 %v4748
    %4828 = vmatprep.subr.bf16.mxu0 0
    %4829 = vmatpush2.bf16.msra.mxu0 %v4763
    %4830 = vmatprep.subr.bf16.mxu0 0
    %4831 = vmatpush2.bf16.msra.mxu0 %v4762
    %4832 = vmatprep.subr.bf16.mxu0 0
    %4833 = vmatpush2.bf16.msra.mxu0 %v4761
    %4834 = vmatprep.subr.bf16.mxu0 0
    %4835 = vmatpush2.bf16.msra.mxu0 %v4760
    %4836 = vmatprep.subr.bf16.mxu0 0
    %4837 = vmatpush2.bf16.msra.mxu0 %v4759
    %4838 = vmatprep.subr.bf16.mxu0 0
    %4839 = vmatpush2.bf16.msra.mxu0 %v4758
    %4840 = vmatprep.subr.bf16.mxu0 0
    %4841 = vmatpush2.bf16.msra.mxu0 %v4757
    %4842 = vmatprep.subr.bf16.mxu0 0
    %4843 = vmatpush2.bf16.msra.mxu0 %v4756
    %4844 = vmatprep.mubr.bf16.mxu0 %v4546
    %4845 = vmatmul.mubr.bf16.gmra.mxu0 %v4545
    %v4846 = vpop.f32.mrf.mxu0
    %v4847 = vadd.f32 %v4618, %v4846
    %v4848 = vpop.f32.mrf.mxu0
    %v4849 = vpop.f32.mrf.mxu0
    %v4850 = vpop.f32.mrf.mxu0
    %4851 = vdwg.mxu0
    %4852 = vmatprep.subr.bf16.mxu0 0
    %4853 = vmatpush1.bf16.msra.mxu0 %v4771
    %4854 = vmatprep.subr.bf16.mxu0 0
    %4855 = vmatpush1.bf16.msra.mxu0 %v4770
    %4856 = vmatprep.subr.bf16.mxu0 0
    %4857 = vmatpush1.bf16.msra.mxu0 %v4769
    %4858 = vmatprep.subr.bf16.mxu0 0
    %4859 = vmatpush1.bf16.msra.mxu0 %v4768
    %4860 = vmatprep.subr.bf16.mxu0 0
    %4861 = vmatpush1.bf16.msra.mxu0 %v4767
    %4862 = vmatprep.subr.bf16.mxu0 0
    %4863 = vmatpush1.bf16.msra.mxu0 %v4766
    %4864 = vmatprep.subr.bf16.mxu0 0
    %4865 = vmatpush1.bf16.msra.mxu0 %v4765
    %4866 = vmatprep.subr.bf16.mxu0 0
    %4867 = vmatpush1.bf16.msra.mxu0 %v4764
    %4868 = vmatprep.subr.bf16.mxu0 0
    %4869 = vmatpush2.bf16.msra.mxu0 %v4779
    %4870 = vmatprep.subr.bf16.mxu0 0
    %4871 = vmatpush2.bf16.msra.mxu0 %v4778
    %4872 = vmatprep.subr.bf16.mxu0 0
    %4873 = vmatpush2.bf16.msra.mxu0 %v4777
    %4874 = vmatprep.subr.bf16.mxu0 0
    %4875 = vmatpush2.bf16.msra.mxu0 %v4776
    %4876 = vmatprep.subr.bf16.mxu0 0
    %4877 = vmatpush2.bf16.msra.mxu0 %v4775
    %4878 = vmatprep.subr.bf16.mxu0 0
    %4879 = vmatpush2.bf16.msra.mxu0 %v4774
    %4880 = vmatprep.subr.bf16.mxu0 0
    %4881 = vmatpush2.bf16.msra.mxu0 %v4773
    %4882 = vmatprep.subr.bf16.mxu0 0
    %4883 = vmatpush2.bf16.msra.mxu0 %v4772
    %4884 = vmatprep.mubr.bf16.mxu0 %v4548
    %4885 = vmatmul.mubr.bf16.gmra.mxu0 %v4547
    %v4886 = vpop.f32.mrf.mxu0
    %v4887 = vadd.f32 %v4847, %v4886
    %v4888 = vpop.f32.mrf.mxu0
    %v4889 = vpop.f32.mrf.mxu0
    %v4890 = vpop.f32.mrf.mxu0
    %4891 = vdwg.mxu0
    %4892 = vst [vmem:[#allocation14] sm:$0xff] %v4887
    // Predicated region
    $region58: #{tpu_custom_call.1} parent=1 // pred_check
      _
    $region59: #{tpu_custom_call.1} parent=1 // pred_check_branch
      %4894 = sbr.rel (0) target = $region61
    $region60: #{tpu_custom_call.1} parent=1 // pred_region
      %s4896 = ssub.s32 128, 128
      %4897 = vsyncadd [#allocation4], %s4896
      %s4899 = sshll.u32 [#allocation14], 4
      %s4900 = int_to_ptr.vmem [resolvable:$true] %s4899
      %4902 = dma.vmem_to_hbm [thread:$0]  %s4900, 128, %s7, [#allocation4]
    $region61: #{tpu_custom_call.1} parent=1 // pred_fallthru
      _
    // Predicated region
    $region62: #{tpu_custom_call.1} parent=1 // pred_check
      _
    $region63: #{tpu_custom_call.1} parent=1 // pred_check_branch
      %4904 = sbr.rel (0) target = $region65
    $region64: #{tpu_custom_call.1} parent=1 // pred_region
      %4905 = dma.done [#allocation4], 128
    $region65: #{tpu_custom_call.1} parent=1 // pred_fallthru
      _
    %4906 = vsyncpa [#allocation3], 1
    %4907 = vsyncpa [#allocation6], 1
    %4908 = vsyncpa [#allocation9], 1
    %4909 = vsyncpa [#allocation12], 1
    %4910 = vsyncpa [#allocation4], 1

</llo_original>
